<compile_context>
chip_gen: v5e
topology: v5e:2x2
jax: 0.10.0
libtpu: 0.0.40
codegen_flags: <defaults>
</compile_context>

<pallas_src>
import functools

import jax
import jax.numpy as jnp
from jax.experimental import pallas as pl
from jax.experimental.pallas import tpu as pltpu


# ----------------------------- in-kernel helpers ----------------------------


def _layernorm(v, g, b, eps=1e-5):
    mu = jnp.mean(v, axis=-1, keepdims=True)
    var = jnp.mean((v - mu) ** 2, axis=-1, keepdims=True)
    return (v - mu) * jax.lax.rsqrt(var + eps) * g + b


def _softmax(s):
    m = jnp.max(s, axis=-1, keepdims=True)
    e = jnp.exp(s - m)
    return e * pl.reciprocal(jnp.sum(e, axis=-1, keepdims=True), approx=True)


# ----------------------------- kernel ---------------------------------------


def text_transformer_kernel(x_ref, mask_ref,
                            ln1_g, ln1_b, wqkv, bqkv, wo, bo,
                            ln2_g, ln2_b, wfc, bfc, wproj, bproj,
                            lnf_g, lnf_b, tproj,
                            ln_out_ref, proj_out_ref, carry_ref, *, num_heads):
    """One grid step = (one batch tile, one transformer layer).

    The activation is carried across the layer axis in `carry_ref` (VMEM scratch).
    On the last layer the final LayerNorm + text projection are computed and the two
    module outputs are written; nothing else touches HBM on the output side.
    """
    layer = pl.program_id(1)

    @pl.when(layer == 0)
    def _():
        carry_ref[...] = x_ref[...]

    Bt, L, W = carry_ref.shape
    N = Bt * L
    H = num_heads
    dh = W // H
    scale = 1.0 / float(dh) ** 0.5

    x = carry_ref[...].reshape(N, W)                                  # f32 [N, W]

    # ---- attention branch ----
    h = _layernorm(x, ln1_g[0], ln1_b[0])                             # f32
    qkv = jnp.dot(h.astype(jnp.bfloat16), wqkv[0],
                  preferred_element_type=jnp.float32) + bqkv[0]       # f32 [N, 3W]
    qkv = qkv.reshape(Bt, L, 3 * W).astype(jnp.bfloat16)

    head_outs = []
    for hi in range(H):
        q_h = qkv[:, :, 0 * W + hi * dh: 0 * W + (hi + 1) * dh]       # bf16 [Bt, L, dh]
        k_h = qkv[:, :, 1 * W + hi * dh: 1 * W + (hi + 1) * dh]
        v_h = qkv[:, :, 2 * W + hi * dh: 2 * W + (hi + 1) * dh]
        # contraction on last axes of both operands -> no transpose op
        s = jnp.einsum('bld,bmd->blm', q_h, k_h,
                       preferred_element_type=jnp.float32) * scale    # f32 [Bt, L, L]
        s = s + mask_ref[...][None]                                   # causal mask, f32
        p = _softmax(s)                                               # f32
        head_outs.append(
            jnp.einsum('blm,bmd->bld', p.astype(jnp.bfloat16), v_h,
                       preferred_element_type=jnp.float32))           # f32 [Bt, L, dh]
    attn = jnp.concatenate(head_outs, axis=-1).reshape(N, W)          # f32 [N, W]
    attn = jnp.dot(attn.astype(jnp.bfloat16), wo[0],
                   preferred_element_type=jnp.float32) + bo[0]
    x = x + attn

    # ---- MLP branch (QuickGELU) ----
    h = _layernorm(x, ln2_g[0], ln2_b[0])
    h = jnp.dot(h.astype(jnp.bfloat16), wfc[0],
                preferred_element_type=jnp.float32) + bfc[0]
    h = h * jax.nn.sigmoid(1.702 * h)                                 # f32
    h = jnp.dot(h.astype(jnp.bfloat16), wproj[0],
                preferred_element_type=jnp.float32) + bproj[0]
    x = x + h

    carry_ref[...] = x.reshape(Bt, L, W)

    # ---- final LayerNorm + text projection fused into the last layer ----
    @pl.when(layer == pl.num_programs(1) - 1)
    def _():
        lnf = _layernorm(x, lnf_g[...], lnf_b[...])                   # f32 [N, W]
        ln_out_ref[...] = lnf.reshape(Bt, L, W)
        pr = jnp.dot(lnf.astype(jnp.bfloat16), tproj[...],
                     preferred_element_type=jnp.float32)              # f32 [N, E]
        proj_out_ref[...] = pr.reshape(Bt, L, -1)


# ----------------------------- wrapper ---------------------------------------


def _pick_batch_tile(batch, seq, target_rows=256):
    """Smallest divisor of `batch` whose tile packs >= target_rows rows per matmul."""
    for cand in range(1, batch + 1):
        if batch % cand == 0 and cand * seq >= target_rows:
            return cand
    return batch


def run_text_transformer(x, mask, stacked, lnf_g, lnf_b, tproj, num_heads,
                         *, vmem_limit_bytes=64 * 1024 * 1024):
    B, L, W = x.shape
    E = tproj.shape[1]
    layers = stacked[0].shape[0]
    Bt = _pick_batch_tile(B, L)

    def batch_spec(last):
        return pl.BlockSpec((Bt, L, last), lambda b, l: (b, 0, 0))

    def bcast_spec(a):
        nd = a.ndim
        return pl.BlockSpec(a.shape, lambda b, l, _nd=nd: (0,) * _nd)

    def layer_spec(a):
        nd = a.ndim
        return pl.BlockSpec((1,) + a.shape[1:],
                            lambda b, l, _nd=nd: (l,) + (0,) * (_nd - 1))

    in_specs = ([batch_spec(W), bcast_spec(mask)]
                + [layer_spec(a) for a in stacked]
                + [bcast_spec(lnf_g), bcast_spec(lnf_b), bcast_spec(tproj)])

    out_shape = (jax.ShapeDtypeStruct((B, L, W), jnp.float32),
                 jax.ShapeDtypeStruct((B, L, E), jnp.float32))
    out_specs = (batch_spec(W), batch_spec(E))

    return pl.pallas_call(
        functools.partial(text_transformer_kernel, num_heads=num_heads),
        out_shape=out_shape,
        grid=(B // Bt, layers),
        in_specs=in_specs,
        out_specs=out_specs,
        scratch_shapes=[pltpu.VMEM((Bt, L, W), jnp.float32)],
        compiler_params=pltpu.CompilerParams(
            dimension_semantics=("parallel", "arbitrary"),
            vmem_limit_bytes=vmem_limit_bytes),
    )(x, mask, *stacked, lnf_g, lnf_b, tproj)


# ----------------------------- parameters -------------------------------------


def init_params(key, *, vocab_size, context_length, width, heads, layers, embed_dim):
    del heads  # layout-independent
    attn_std = width ** -0.5
    proj_std = (width ** -0.5) * ((2 * layers) ** -0.5)
    fc_std = (2 * width) ** -0.5

    keys = iter(jax.random.split(key, 3 + 4 * layers))
    params = {
        "token_embedding": 0.02 * jax.random.normal(next(keys), (vocab_size, width), jnp.float32),
        "positional_embedding": 0.01 * jax.random.normal(next(keys), (context_length, width), jnp.float32),
        "text_projection": (attn_std * jax.random.normal(next(keys), (width, embed_dim), jnp.float32)
                            ).astype(jnp.bfloat16),
        "ln_final_g": jnp.ones((1, width), jnp.float32),
        "ln_final_b": jnp.zeros((1, width), jnp.float32),
        # causal mask (torch: -inf above diagonal, 0 elsewhere); kept f32 for the logit add
        "attn_mask": jnp.triu(jnp.full((context_length, context_length), -jnp.inf, jnp.float32), k=1),
        "logit_scale": jnp.log(jnp.float32(1.0 / 0.07)),   # unused in forward
    }

    wqkv, wo, wfc, wproj = [], [], [], []
    for _ in range(layers):
        k_in, k_out, k_fc, k_pr = (next(keys) for _ in range(4))
        in_proj_w = attn_std * jax.random.normal(k_in, (3 * width, width), jnp.float32)   # torch [3W, W]
        out_proj_w = proj_std * jax.random.normal(k_out, (width, width), jnp.float32)     # torch [W, W]
        c_fc_w = fc_std * jax.random.normal(k_fc, (4 * width, width), jnp.float32)        # torch [4W, W]
        c_proj_w = proj_std * jax.random.normal(k_pr, (width, 4 * width), jnp.float32)    # torch [W, 4W]
        wqkv.append(in_proj_w.T)      # [W, 3W] (pre-transposed for x @ W^T)
        wo.append(out_proj_w.T)       # [W, W]
        wfc.append(c_fc_w.T)          # [W, 4W]
        wproj.append(c_proj_w.T)      # [4W, W]

    Lr = layers
    params["stacked"] = (
        jnp.ones((Lr, 1, width), jnp.float32),               # ln_1 gamma
        jnp.zeros((Lr, 1, width), jnp.float32),              # ln_1 beta
        jnp.stack(wqkv).astype(jnp.bfloat16),                # [L, W, 3W]
        jnp.zeros((Lr, 1, 3 * width), jnp.float32),          # in_proj bias
        jnp.stack(wo).astype(jnp.bfloat16),                  # [L, W, W]
        jnp.zeros((Lr, 1, width), jnp.float32),               # out_proj bias
        jnp.ones((Lr, 1, width), jnp.float32),               # ln_2 gamma
        jnp.zeros((Lr, 1, width), jnp.float32),              # ln_2 beta
        jnp.stack(wfc).astype(jnp.bfloat16),                 # [L, W, 4W]
        jnp.zeros((Lr, 1, 4 * width), jnp.float32),          # c_fc bias
        jnp.stack(wproj).astype(jnp.bfloat16),               # [L, 4W, W]
        jnp.zeros((Lr, 1, width), jnp.float32),              # c_proj bias
    )
    return params


def text_transformer_forward(text, params, num_heads):
    # token embedding + positional embedding (plain-JAX glue; the vocab gather has no
    # clean rectangular BlockSpec equivalent)
    # TODO(synk): token-embedding gather could be done with a manual DMA-gather kernel.
    x = params["token_embedding"][text] + params["positional_embedding"][None]
    return run_text_transformer(x, params["attn_mask"], params["stacked"],
                                params["ln_final_g"], params["ln_final_b"],
                                params["text_projection"], num_heads)


# ----------------------------- pure-JAX reference ------------------------------


def _ref_forward(text, params, num_heads):
    def ln(v, g, b, eps=1e-5):
        mu = jnp.mean(v, -1, keepdims=True)
        var = jnp.mean((v - mu) ** 2, -1, keepdims=True)
        return (v - mu) * jax.lax.rsqrt(var + eps) * g + b

    x = params["token_embedding"][text] + params["positional_embedding"][None]
    mask = params["attn_mask"]
    B, L, W = x.shape
    dh = W // num_heads
    (g1s, b1s, wqkvs, bqkvs, wos, bos, g2s, b2s, wfcs, bfcs, wprojs, bprojs) = params["stacked"]
    for li in range(g1s.shape[0]):
        g1, b1, g2, b2 = g1s[li], b1s[li], g2s[li], b2s[li]
        wqkv_t = wqkvs[li].astype(jnp.float32)
        wo_t = wos[li].astype(jnp.float32)
        wfc_t = wfcs[li].astype(jnp.float32)
        wproj_t = wprojs[li].astype(jnp.float32)
        bqkv, bo, bfc, bproj = bqkvs[li], bos[li], bfcs[li], bprojs[li]

        h = ln(x, g1, b1)
        qkv = h @ wqkv_t + bqkv
        q, k, v = jnp.split(qkv, 3, axis=-1)
        q = q.reshape(B, L, num_heads, dh)
        k = k.reshape(B, L, num_heads, dh)
        v = v.reshape(B, L, num_heads, dh)
        s = jnp.einsum("blhd,bmhd->bhlm", q, k) / (dh ** 0.5) + mask
        p = jax.nn.softmax(s, axis=-1)
        o = jnp.einsum("bhlm,bmhd->blhd", p, v).reshape(B, L, W)
        x = x + (o @ wo_t + bo)
        h = ln(x, g2, b2)
        h = h @ wfc_t + bfc
        h = h * jax.nn.sigmoid(1.702 * h)
        x = x + (h @ wproj_t + bproj)
    lo = ln(x, params["ln_final_g"], params["ln_final_b"])
    return lo, lo @ params["text_projection"].astype(jnp.float32)


# ----------------------------- main ---------------------------------------------


if __name__ == "__main__":
    # small, self-consistent, lane-dense (W and E multiples of 128) config
    EMBED_DIM = 128
    CONTEXT_LENGTH = 8
    VOCAB_SIZE = 64
    WIDTH = 128
    HEADS = 4
    LAYERS = 2
    BATCH = 2

    key = jax.random.PRNGKey(0)
    k_params, k_text = jax.random.split(key)
    params = init_params(k_params, vocab_size=VOCAB_SIZE, context_length=CONTEXT_LENGTH,
                         width=WIDTH, heads=HEADS, layers=LAYERS, embed_dim=EMBED_DIM)

    text = jax.random.randint(k_text, (BATCH, CONTEXT_LENGTH), 0, VOCAB_SIZE, dtype=jnp.int32)

    ln_out, proj_out = text_transformer_forward(text, params, HEADS)
    ln_out = jax.block_until_ready(ln_out)
    proj_out = jax.block_until_ready(proj_out)

    ref_ln, ref_proj = _ref_forward(text, params, HEADS)
    assert ln_out.shape == (BATCH, CONTEXT_LENGTH, WIDTH)
    assert proj_out.shape == (BATCH, CONTEXT_LENGTH, EMBED_DIM)
    # bf16 matmul operands (f32 accumulate) + approx reciprocal => loosened tolerance
    assert jnp.allclose(ln_out, ref_ln, atol=5e-2, rtol=5e-2), \
        float(jnp.max(jnp.abs(ln_out - ref_ln)))
    assert jnp.allclose(proj_out, ref_proj, atol=5e-2, rtol=5e-2), \
        float(jnp.max(jnp.abs(proj_out - ref_proj)))

    print("KERNEL_OK")
</pallas_src>

<mosaic_0001>
module attributes {stable_mosaic.version = 11 : i64} {
  func.func @text_transformer_kernel(%arg0: i32, %arg1: i32, %arg2: memref<2x8x128xf32, #tpu.memory_space<vmem>>, %arg3: memref<8x8xf32, #tpu.memory_space<vmem>>, %arg4: memref<1x1x128xf32, #tpu.memory_space<vmem>>, %arg5: memref<1x1x128xf32, #tpu.memory_space<vmem>>, %arg6: memref<1x128x384xbf16, #tpu.memory_space<vmem>>, %arg7: memref<1x1x384xf32, #tpu.memory_space<vmem>>, %arg8: memref<1x128x128xbf16, #tpu.memory_space<vmem>>, %arg9: memref<1x1x128xf32, #tpu.memory_space<vmem>>, %arg10: memref<1x1x128xf32, #tpu.memory_space<vmem>>, %arg11: memref<1x1x128xf32, #tpu.memory_space<vmem>>, %arg12: memref<1x128x512xbf16, #tpu.memory_space<vmem>>, %arg13: memref<1x1x512xf32, #tpu.memory_space<vmem>>, %arg14: memref<1x512x128xbf16, #tpu.memory_space<vmem>>, %arg15: memref<1x1x128xf32, #tpu.memory_space<vmem>>, %arg16: memref<1x128xf32, #tpu.memory_space<vmem>>, %arg17: memref<1x128xf32, #tpu.memory_space<vmem>>, %arg18: memref<128x128xbf16, #tpu.memory_space<vmem>>, %arg19: memref<2x8x128xf32, #tpu.memory_space<vmem>>, %arg20: memref<2x8x128xf32, #tpu.memory_space<vmem>>, %arg21: memref<2x8x128xf32, #tpu.memory_space<vmem>>) attributes {dimension_semantics = [#tpu.dimension_semantics<parallel>, #tpu.dimension_semantics<arbitrary>], iteration_bounds = array<i64: 1, 2>, scalar_prefetch = 0 : i64, scratch_operands = 1 : i64, tpu.core_type = #tpu.core_type<tc>, window_params = [{transform_indices = @transform_0, window_bounds = array<i64: 2, 8, 128>}, {pipeline_mode = #tpu.pipeline_mode<synchronous>, transform_indices = @transform_1, window_bounds = array<i64: 8, 8>}, {transform_indices = @transform_2, window_bounds = array<i64: 1, 1, 128>}, {transform_indices = @transform_3, window_bounds = array<i64: 1, 1, 128>}, {transform_indices = @transform_4, window_bounds = array<i64: 1, 128, 384>}, {transform_indices = @transform_5, window_bounds = array<i64: 1, 1, 384>}, {transform_indices = @transform_6, window_bounds = array<i64: 1, 128, 128>}, {transform_indices = @transform_7, window_bounds = array<i64: 1, 1, 128>}, {transform_indices = @transform_8, window_bounds = array<i64: 1, 1, 128>}, {transform_indices = @transform_9, window_bounds = array<i64: 1, 1, 128>}, {transform_indices = @transform_10, window_bounds = array<i64: 1, 128, 512>}, {transform_indices = @transform_11, window_bounds = array<i64: 1, 1, 512>}, {transform_indices = @transform_12, window_bounds = array<i64: 1, 512, 128>}, {transform_indices = @transform_13, window_bounds = array<i64: 1, 1, 128>}, {pipeline_mode = #tpu.pipeline_mode<synchronous>, transform_indices = @transform_14, window_bounds = array<i64: 1, 128>}, {pipeline_mode = #tpu.pipeline_mode<synchronous>, transform_indices = @transform_15, window_bounds = array<i64: 1, 128>}, {pipeline_mode = #tpu.pipeline_mode<synchronous>, transform_indices = @transform_16, window_bounds = array<i64: 128, 128>}, {transform_indices = @transform_17, window_bounds = array<i64: 2, 8, 128>}, {transform_indices = @transform_18, window_bounds = array<i64: 2, 8, 128>}]} {
    %c0_i32 = arith.constant 0 : i32
    %0 = arith.cmpi eq, %arg1, %c0_i32 : i32
    %1 = arith.extui %0 : i1 to i32
    %c0_i32_0 = arith.constant 0 : i32
    %2 = arith.cmpi ne, %1, %c0_i32_0 : i32
    scf.if %2 {
      %c0_86 = arith.constant 0 : index
      %c0_87 = arith.constant 0 : index
      %c0_88 = arith.constant 0 : index
      %196 = vector.load %arg2[%c0_86, %c0_87, %c0_88] : memref<2x8x128xf32, #tpu.memory_space<vmem>>, vector<2x8x128xf32>
      %c0_89 = arith.constant 0 : index
      %c0_90 = arith.constant 0 : index
      %c0_91 = arith.constant 0 : index
      %197 = vector.load %arg21[%c0_89, %c0_90, %c0_91] : memref<2x8x128xf32, #tpu.memory_space<vmem>>, vector<2x8x128xf32>
      tpu.vector_store %arg21[%c0_89, %c0_90, %c0_91], %196 {strides = array<i32>} : memref<2x8x128xf32, #tpu.memory_space<vmem>>, vector<2x8x128xf32>,
    } else {
    }
    %c0 = arith.constant 0 : index
    %c0_1 = arith.constant 0 : index
    %c0_2 = arith.constant 0 : index
    %3 = vector.load %arg21[%c0, %c0_1, %c0_2] : memref<2x8x128xf32, #tpu.memory_space<vmem>>, vector<2x8x128xf32>
    %4 = vector.shape_cast %3 : vector<2x8x128xf32> to vector<16x128xf32>
    %c0_3 = arith.constant 0 : index
    %c0_4 = arith.constant 0 : index
    %c0_5 = arith.constant 0 : index
    %5 = vector.load %arg4[%c0_3, %c0_4, %c0_5] : memref<1x1x128xf32, #tpu.memory_space<vmem>>, vector<1x1x128xf32>
    %6 = vector.shape_cast %5 : vector<1x1x128xf32> to vector<1x128xf32>
    %c0_6 = arith.constant 0 : index
    %c0_7 = arith.constant 0 : index
    %c0_8 = arith.constant 0 : index
    %7 = vector.load %arg5[%c0_6, %c0_7, %c0_8] : memref<1x1x128xf32, #tpu.memory_space<vmem>>, vector<1x1x128xf32>
    %8 = vector.shape_cast %7 : vector<1x1x128xf32> to vector<1x128xf32>
    %cst = arith.constant dense<0.000000e+00> : vector<16xf32>
    %9 = vector.multi_reduction <add>, %4, %cst [1] : vector<16x128xf32> to vector<16xf32>
    %10 = vector.shape_cast %9 : vector<16xf32> to vector<16x1xf32>
    %cst_9 = arith.constant 1.280000e+02 : f32
    %11 = vector.broadcast %cst_9 : f32 to vector<16x1xf32>
    %12 = arith.divf %10, %11 : vector<16x1xf32>
    %13 = vector.broadcast %12 : vector<16x1xf32> to vector<16x128xf32>
    %14 = arith.subf %4, %13 : vector<16x128xf32>
    %15 = arith.mulf %14, %14 : vector<16x128xf32>
    %cst_10 = arith.constant dense<0.000000e+00> : vector<16xf32>
    %16 = vector.multi_reduction <add>, %15, %cst_10 [1] : vector<16x128xf32> to vector<16xf32>
    %17 = vector.shape_cast %16 : vector<16xf32> to vector<16x1xf32>
    %cst_11 = arith.constant 1.280000e+02 : f32
    %18 = vector.broadcast %cst_11 : f32 to vector<16x1xf32>
    %19 = arith.divf %17, %18 : vector<16x1xf32>
    %20 = vector.broadcast %12 : vector<16x1xf32> to vector<16x128xf32>
    %21 = arith.subf %4, %20 : vector<16x128xf32>
    %cst_12 = arith.constant 9.99999974E-6 : f32
    %22 = vector.broadcast %cst_12 : f32 to vector<16x1xf32>
    %23 = arith.addf %19, %22 : vector<16x1xf32>
    %24 = math.rsqrt %23 : vector<16x1xf32>
    %25 = vector.broadcast %24 : vector<16x1xf32> to vector<16x128xf32>
    %26 = arith.mulf %21, %25 : vector<16x128xf32>
    %27 = vector.broadcast %6 : vector<1x128xf32> to vector<16x128xf32>
    %28 = arith.mulf %26, %27 : vector<16x128xf32>
    %29 = vector.broadcast %8 : vector<1x128xf32> to vector<16x128xf32>
    %30 = arith.addf %28, %29 : vector<16x128xf32>
    %31 = arith.truncf %30 : vector<16x128xf32> to vector<16x128xbf16>
    %c0_13 = arith.constant 0 : index
    %c0_14 = arith.constant 0 : index
    %c0_15 = arith.constant 0 : index
    %32 = vector.load %arg6[%c0_13, %c0_14, %c0_15] : memref<1x128x384xbf16, #tpu.memory_space<vmem>>, vector<1x128x384xbf16>
    %33 = vector.shape_cast %32 : vector<1x128x384xbf16> to vector<128x384xbf16>
    %cst_16 = arith.constant dense<0.000000e+00> : vector<16x384xf32>
    %34 = tpu.matmul %31, %33, %cst_16 {dimension_numbers = #tpu.dot_dimension_numbers<[1], [0], [0], [1], [0, 0, 1, 1], [], []>} : vector<16x128xbf16>, vector<128x384xbf16>, vector<16x384xf32> -> vector<16x384xf32>
    %c0_17 = arith.constant 0 : index
    %c0_18 = arith.constant 0 : index
    %c0_19 = arith.constant 0 : index
    %35 = vector.load %arg7[%c0_17, %c0_18, %c0_19] : memref<1x1x384xf32, #tpu.memory_space<vmem>>, vector<1x1x384xf32>
    %36 = vector.shape_cast %35 : vector<1x1x384xf32> to vector<1x384xf32>
    %37 = vector.broadcast %36 : vector<1x384xf32> to vector<16x384xf32>
    %38 = arith.addf %34, %37 : vector<16x384xf32>
    %39 = vector.shape_cast %38 : vector<16x384xf32> to vector<2x8x384xf32>
    %40 = arith.truncf %39 : vector<2x8x384xf32> to vector<2x8x384xbf16>
    %41 = vector.extract_strided_slice %40 {offsets = [0, 0, 0], sizes = [2, 8, 32], strides = [1, 1, 1]} : vector<2x8x384xbf16> to vector<2x8x32xbf16>
    %42 = vector.extract_strided_slice %40 {offsets = [0, 0, 128], sizes = [2, 8, 32], strides = [1, 1, 1]} : vector<2x8x384xbf16> to vector<2x8x32xbf16>
    %43 = vector.extract_strided_slice %40 {offsets = [0, 0, 256], sizes = [2, 8, 32], strides = [1, 1, 1]} : vector<2x8x384xbf16> to vector<2x8x32xbf16>
    "tpu.trace_start"() <{level = 10 : i32, message = "bld,bmd->blm"}> : () -> ()
    %cst_20 = arith.constant dense<0.000000e+00> : vector<2x8x8xf32>
    %44 = tpu.matmul %41, %42, %cst_20 {dimension_numbers = #tpu.dot_dimension_numbers<[2], [2], [1], [1], [0, 0, 0, 1, 1, 1], [0], [0]>} : vector<2x8x32xbf16>, vector<2x8x32xbf16>, vector<2x8x8xf32> -> vector<2x8x8xf32>
    "tpu.trace_stop"() : () -> ()
    %cst_21 = arith.constant 0.176776692 : f32
    %45 = vector.broadcast %cst_21 : f32 to vector<2x8x8xf32>
    %46 = arith.mulf %44, %45 : vector<2x8x8xf32>
    %c0_22 = arith.constant 0 : index
    %c0_23 = arith.constant 0 : index
    %47 = vector.load %arg3[%c0_22, %c0_23] : memref<8x8xf32, #tpu.memory_space<vmem>>, vector<8x8xf32>
    %48 = vector.shape_cast %47 : vector<8x8xf32> to vector<1x8x8xf32>
    %49 = vector.broadcast %48 : vector<1x8x8xf32> to vector<2x8x8xf32>
    %50 = arith.addf %46, %49 : vector<2x8x8xf32>
    %cst_24 = arith.constant dense<0xFF800000> : vector<2x8xf32>
    %51 = vector.multi_reduction <maximumf>, %50, %cst_24 [2] : vector<2x8x8xf32> to vector<2x8xf32>
    %52 = vector.shape_cast %51 : vector<2x8xf32> to vector<2x8x1xf32>
    %53 = vector.broadcast %52 : vector<2x8x1xf32> to vector<2x8x8xf32>
    %54 = arith.subf %50, %53 : vector<2x8x8xf32>
    %55 = math.exp %54 : vector<2x8x8xf32>
    %cst_25 = arith.constant dense<0.000000e+00> : vector<2x8xf32>
    %56 = vector.multi_reduction <add>, %55, %cst_25 [2] : vector<2x8x8xf32> to vector<2x8xf32>
    %57 = vector.shape_cast %56 : vector<2x8xf32> to vector<2x8x1xf32>
    %58 = tpu.reciprocal %57 {approx = true} : vector<2x8x1xf32> -> vector<2x8x1xf32>
    %59 = vector.broadcast %58 : vector<2x8x1xf32> to vector<2x8x8xf32>
    %60 = arith.mulf %55, %59 : vector<2x8x8xf32>
    %61 = arith.truncf %60 : vector<2x8x8xf32> to vector<2x8x8xbf16>
    "tpu.trace_start"() <{level = 10 : i32, message = "blm,bmd->bld"}> : () -> ()
    %cst_26 = arith.constant dense<0.000000e+00> : vector<2x8x32xf32>
    %62 = tpu.matmul %61, %43, %cst_26 {dimension_numbers = #tpu.dot_dimension_numbers<[2], [1], [1], [2], [0, 0, 0, 1, 1, 2], [0], [0]>} : vector<2x8x8xbf16>, vector<2x8x32xbf16>, vector<2x8x32xf32> -> vector<2x8x32xf32>
    "tpu.trace_stop"() : () -> ()
    %63 = vector.extract_strided_slice %40 {offsets = [0, 0, 32], sizes = [2, 8, 32], strides = [1, 1, 1]} : vector<2x8x384xbf16> to vector<2x8x32xbf16>
    %64 = vector.extract_strided_slice %40 {offsets = [0, 0, 160], sizes = [2, 8, 32], strides = [1, 1, 1]} : vector<2x8x384xbf16> to vector<2x8x32xbf16>
    %65 = vector.extract_strided_slice %40 {offsets = [0, 0, 288], sizes = [2, 8, 32], strides = [1, 1, 1]} : vector<2x8x384xbf16> to vector<2x8x32xbf16>
    "tpu.trace_start"() <{level = 10 : i32, message = "bld,bmd->blm"}> : () -> ()
    %cst_27 = arith.constant dense<0.000000e+00> : vector<2x8x8xf32>
    %66 = tpu.matmul %63, %64, %cst_27 {dimension_numbers = #tpu.dot_dimension_numbers<[2], [2], [1], [1], [0, 0, 0, 1, 1, 1], [0], [0]>} : vector<2x8x32xbf16>, vector<2x8x32xbf16>, vector<2x8x8xf32> -> vector<2x8x8xf32>
    "tpu.trace_stop"() : () -> ()
    %cst_28 = arith.constant 0.176776692 : f32
    %67 = vector.broadcast %cst_28 : f32 to vector<2x8x8xf32>
    %68 = arith.mulf %66, %67 : vector<2x8x8xf32>
    %c0_29 = arith.constant 0 : index
    %c0_30 = arith.constant 0 : index
    %69 = vector.load %arg3[%c0_29, %c0_30] : memref<8x8xf32, #tpu.memory_space<vmem>>, vector<8x8xf32>
    %70 = vector.shape_cast %69 : vector<8x8xf32> to vector<1x8x8xf32>
    %71 = vector.broadcast %70 : vector<1x8x8xf32> to vector<2x8x8xf32>
    %72 = arith.addf %68, %71 : vector<2x8x8xf32>
    %cst_31 = arith.constant dense<0xFF800000> : vector<2x8xf32>
    %73 = vector.multi_reduction <maximumf>, %72, %cst_31 [2] : vector<2x8x8xf32> to vector<2x8xf32>
    %74 = vector.shape_cast %73 : vector<2x8xf32> to vector<2x8x1xf32>
    %75 = vector.broadcast %74 : vector<2x8x1xf32> to vector<2x8x8xf32>
    %76 = arith.subf %72, %75 : vector<2x8x8xf32>
    %77 = math.exp %76 : vector<2x8x8xf32>
    %cst_32 = arith.constant dense<0.000000e+00> : vector<2x8xf32>
    %78 = vector.multi_reduction <add>, %77, %cst_32 [2] : vector<2x8x8xf32> to vector<2x8xf32>
    %79 = vector.shape_cast %78 : vector<2x8xf32> to vector<2x8x1xf32>
    %80 = tpu.reciprocal %79 {approx = true} : vector<2x8x1xf32> -> vector<2x8x1xf32>
    %81 = vector.broadcast %80 : vector<2x8x1xf32> to vector<2x8x8xf32>
    %82 = arith.mulf %77, %81 : vector<2x8x8xf32>
    %83 = arith.truncf %82 : vector<2x8x8xf32> to vector<2x8x8xbf16>
    "tpu.trace_start"() <{level = 10 : i32, message = "blm,bmd->bld"}> : () -> ()
    %cst_33 = arith.constant dense<0.000000e+00> : vector<2x8x32xf32>
    %84 = tpu.matmul %83, %65, %cst_33 {dimension_numbers = #tpu.dot_dimension_numbers<[2], [1], [1], [2], [0, 0, 0, 1, 1, 2], [0], [0]>} : vector<2x8x8xbf16>, vector<2x8x32xbf16>, vector<2x8x32xf32> -> vector<2x8x32xf32>
    "tpu.trace_stop"() : () -> ()
    %85 = vector.extract_strided_slice %40 {offsets = [0, 0, 64], sizes = [2, 8, 32], strides = [1, 1, 1]} : vector<2x8x384xbf16> to vector<2x8x32xbf16>
    %86 = vector.extract_strided_slice %40 {offsets = [0, 0, 192], sizes = [2, 8, 32], strides = [1, 1, 1]} : vector<2x8x384xbf16> to vector<2x8x32xbf16>
    %87 = vector.extract_strided_slice %40 {offsets = [0, 0, 320], sizes = [2, 8, 32], strides = [1, 1, 1]} : vector<2x8x384xbf16> to vector<2x8x32xbf16>
    "tpu.trace_start"() <{level = 10 : i32, message = "bld,bmd->blm"}> : () -> ()
    %cst_34 = arith.constant dense<0.000000e+00> : vector<2x8x8xf32>
    %88 = tpu.matmul %85, %86, %cst_34 {dimension_numbers = #tpu.dot_dimension_numbers<[2], [2], [1], [1], [0, 0, 0, 1, 1, 1], [0], [0]>} : vector<2x8x32xbf16>, vector<2x8x32xbf16>, vector<2x8x8xf32> -> vector<2x8x8xf32>
    "tpu.trace_stop"() : () -> ()
    %cst_35 = arith.constant 0.176776692 : f32
    %89 = vector.broadcast %cst_35 : f32 to vector<2x8x8xf32>
    %90 = arith.mulf %88, %89 : vector<2x8x8xf32>
    %c0_36 = arith.constant 0 : index
    %c0_37 = arith.constant 0 : index
    %91 = vector.load %arg3[%c0_36, %c0_37] : memref<8x8xf32, #tpu.memory_space<vmem>>, vector<8x8xf32>
    %92 = vector.shape_cast %91 : vector<8x8xf32> to vector<1x8x8xf32>
    %93 = vector.broadcast %92 : vector<1x8x8xf32> to vector<2x8x8xf32>
    %94 = arith.addf %90, %93 : vector<2x8x8xf32>
    %cst_38 = arith.constant dense<0xFF800000> : vector<2x8xf32>
    %95 = vector.multi_reduction <maximumf>, %94, %cst_38 [2] : vector<2x8x8xf32> to vector<2x8xf32>
    %96 = vector.shape_cast %95 : vector<2x8xf32> to vector<2x8x1xf32>
    %97 = vector.broadcast %96 : vector<2x8x1xf32> to vector<2x8x8xf32>
    %98 = arith.subf %94, %97 : vector<2x8x8xf32>
    %99 = math.exp %98 : vector<2x8x8xf32>
    %cst_39 = arith.constant dense<0.000000e+00> : vector<2x8xf32>
    %100 = vector.multi_reduction <add>, %99, %cst_39 [2] : vector<2x8x8xf32> to vector<2x8xf32>
    %101 = vector.shape_cast %100 : vector<2x8xf32> to vector<2x8x1xf32>
    %102 = tpu.reciprocal %101 {approx = true} : vector<2x8x1xf32> -> vector<2x8x1xf32>
    %103 = vector.broadcast %102 : vector<2x8x1xf32> to vector<2x8x8xf32>
    %104 = arith.mulf %99, %103 : vector<2x8x8xf32>
    %105 = arith.truncf %104 : vector<2x8x8xf32> to vector<2x8x8xbf16>
    "tpu.trace_start"() <{level = 10 : i32, message = "blm,bmd->bld"}> : () -> ()
    %cst_40 = arith.constant dense<0.000000e+00> : vector<2x8x32xf32>
    %106 = tpu.matmul %105, %87, %cst_40 {dimension_numbers = #tpu.dot_dimension_numbers<[2], [1], [1], [2], [0, 0, 0, 1, 1, 2], [0], [0]>} : vector<2x8x8xbf16>, vector<2x8x32xbf16>, vector<2x8x32xf32> -> vector<2x8x32xf32>
    "tpu.trace_stop"() : () -> ()
    %107 = vector.extract_strided_slice %40 {offsets = [0, 0, 96], sizes = [2, 8, 32], strides = [1, 1, 1]} : vector<2x8x384xbf16> to vector<2x8x32xbf16>
    %108 = vector.extract_strided_slice %40 {offsets = [0, 0, 224], sizes = [2, 8, 32], strides = [1, 1, 1]} : vector<2x8x384xbf16> to vector<2x8x32xbf16>
    %109 = vector.extract_strided_slice %40 {offsets = [0, 0, 352], sizes = [2, 8, 32], strides = [1, 1, 1]} : vector<2x8x384xbf16> to vector<2x8x32xbf16>
    "tpu.trace_start"() <{level = 10 : i32, message = "bld,bmd->blm"}> : () -> ()
    %cst_41 = arith.constant dense<0.000000e+00> : vector<2x8x8xf32>
    %110 = tpu.matmul %107, %108, %cst_41 {dimension_numbers = #tpu.dot_dimension_numbers<[2], [2], [1], [1], [0, 0, 0, 1, 1, 1], [0], [0]>} : vector<2x8x32xbf16>, vector<2x8x32xbf16>, vector<2x8x8xf32> -> vector<2x8x8xf32>
    "tpu.trace_stop"() : () -> ()
    %cst_42 = arith.constant 0.176776692 : f32
    %111 = vector.broadcast %cst_42 : f32 to vector<2x8x8xf32>
    %112 = arith.mulf %110, %111 : vector<2x8x8xf32>
    %c0_43 = arith.constant 0 : index
    %c0_44 = arith.constant 0 : index
    %113 = vector.load %arg3[%c0_43, %c0_44] : memref<8x8xf32, #tpu.memory_space<vmem>>, vector<8x8xf32>
    %114 = vector.shape_cast %113 : vector<8x8xf32> to vector<1x8x8xf32>
    %115 = vector.broadcast %114 : vector<1x8x8xf32> to vector<2x8x8xf32>
    %116 = arith.addf %112, %115 : vector<2x8x8xf32>
    %cst_45 = arith.constant dense<0xFF800000> : vector<2x8xf32>
    %117 = vector.multi_reduction <maximumf>, %116, %cst_45 [2] : vector<2x8x8xf32> to vector<2x8xf32>
    %118 = vector.shape_cast %117 : vector<2x8xf32> to vector<2x8x1xf32>
    %119 = vector.broadcast %118 : vector<2x8x1xf32> to vector<2x8x8xf32>
    %120 = arith.subf %116, %119 : vector<2x8x8xf32>
    %121 = math.exp %120 : vector<2x8x8xf32>
    %cst_46 = arith.constant dense<0.000000e+00> : vector<2x8xf32>
    %122 = vector.multi_reduction <add>, %121, %cst_46 [2] : vector<2x8x8xf32> to vector<2x8xf32>
    %123 = vector.shape_cast %122 : vector<2x8xf32> to vector<2x8x1xf32>
    %124 = tpu.reciprocal %123 {approx = true} : vector<2x8x1xf32> -> vector<2x8x1xf32>
    %125 = vector.broadcast %124 : vector<2x8x1xf32> to vector<2x8x8xf32>
    %126 = arith.mulf %121, %125 : vector<2x8x8xf32>
    %127 = arith.truncf %126 : vector<2x8x8xf32> to vector<2x8x8xbf16>
    "tpu.trace_start"() <{level = 10 : i32, message = "blm,bmd->bld"}> : () -> ()
    %cst_47 = arith.constant dense<0.000000e+00> : vector<2x8x32xf32>
    %128 = tpu.matmul %127, %109, %cst_47 {dimension_numbers = #tpu.dot_dimension_numbers<[2], [1], [1], [2], [0, 0, 0, 1, 1, 2], [0], [0]>} : vector<2x8x8xbf16>, vector<2x8x32xbf16>, vector<2x8x32xf32> -> vector<2x8x32xf32>
    "tpu.trace_stop"() : () -> ()
    %129 = tpu.concatenate %62, %84, %106, %128 in 2 : vector<2x8x32xf32>, vector<2x8x32xf32>, vector<2x8x32xf32>, vector<2x8x32xf32> -> vector<2x8x128xf32>
    %130 = vector.shape_cast %129 : vector<2x8x128xf32> to vector<16x128xf32>
    %131 = arith.truncf %130 : vector<16x128xf32> to vector<16x128xbf16>
    %c0_48 = arith.constant 0 : index
    %c0_49 = arith.constant 0 : index
    %c0_50 = arith.constant 0 : index
    %132 = vector.load %arg8[%c0_48, %c0_49, %c0_50] : memref<1x128x128xbf16, #tpu.memory_space<vmem>>, vector<1x128x128xbf16>
    %133 = vector.shape_cast %132 : vector<1x128x128xbf16> to vector<128x128xbf16>
    %cst_51 = arith.constant dense<0.000000e+00> : vector<16x128xf32>
    %134 = tpu.matmul %131, %133, %cst_51 {dimension_numbers = #tpu.dot_dimension_numbers<[1], [0], [0], [1], [0, 0, 1, 1], [], []>} : vector<16x128xbf16>, vector<128x128xbf16>, vector<16x128xf32> -> vector<16x128xf32>
    %c0_52 = arith.constant 0 : index
    %c0_53 = arith.constant 0 : index
    %c0_54 = arith.constant 0 : index
    %135 = vector.load %arg9[%c0_52, %c0_53, %c0_54] : memref<1x1x128xf32, #tpu.memory_space<vmem>>, vector<1x1x128xf32>
    %136 = vector.shape_cast %135 : vector<1x1x128xf32> to vector<1x128xf32>
    %137 = vector.broadcast %136 : vector<1x128xf32> to vector<16x128xf32>
    %138 = arith.addf %134, %137 : vector<16x128xf32>
    %139 = arith.addf %4, %138 : vector<16x128xf32>
    %c0_55 = arith.constant 0 : index
    %c0_56 = arith.constant 0 : index
    %c0_57 = arith.constant 0 : index
    %140 = vector.load %arg10[%c0_55, %c0_56, %c0_57] : memref<1x1x128xf32, #tpu.memory_space<vmem>>, vector<1x1x128xf32>
    %141 = vector.shape_cast %140 : vector<1x1x128xf32> to vector<1x128xf32>
    %c0_58 = arith.constant 0 : index
    %c0_59 = arith.constant 0 : index
    %c0_60 = arith.constant 0 : index
    %142 = vector.load %arg11[%c0_58, %c0_59, %c0_60] : memref<1x1x128xf32, #tpu.memory_space<vmem>>, vector<1x1x128xf32>
    %143 = vector.shape_cast %142 : vector<1x1x128xf32> to vector<1x128xf32>
    %cst_61 = arith.constant dense<0.000000e+00> : vector<16xf32>
    %144 = vector.multi_reduction <add>, %139, %cst_61 [1] : vector<16x128xf32> to vector<16xf32>
    %145 = vector.shape_cast %144 : vector<16xf32> to vector<16x1xf32>
    %cst_62 = arith.constant 1.280000e+02 : f32
    %146 = vector.broadcast %cst_62 : f32 to vector<16x1xf32>
    %147 = arith.divf %145, %146 : vector<16x1xf32>
    %148 = vector.broadcast %147 : vector<16x1xf32> to vector<16x128xf32>
    %149 = arith.subf %139, %148 : vector<16x128xf32>
    %150 = arith.mulf %149, %149 : vector<16x128xf32>
    %cst_63 = arith.constant dense<0.000000e+00> : vector<16xf32>
    %151 = vector.multi_reduction <add>, %150, %cst_63 [1] : vector<16x128xf32> to vector<16xf32>
    %152 = vector.shape_cast %151 : vector<16xf32> to vector<16x1xf32>
    %cst_64 = arith.constant 1.280000e+02 : f32
    %153 = vector.broadcast %cst_64 : f32 to vector<16x1xf32>
    %154 = arith.divf %152, %153 : vector<16x1xf32>
    %155 = vector.broadcast %147 : vector<16x1xf32> to vector<16x128xf32>
    %156 = arith.subf %139, %155 : vector<16x128xf32>
    %cst_65 = arith.constant 9.99999974E-6 : f32
    %157 = vector.broadcast %cst_65 : f32 to vector<16x1xf32>
    %158 = arith.addf %154, %157 : vector<16x1xf32>
    %159 = math.rsqrt %158 : vector<16x1xf32>
    %160 = vector.broadcast %159 : vector<16x1xf32> to vector<16x128xf32>
    %161 = arith.mulf %156, %160 : vector<16x128xf32>
    %162 = vector.broadcast %141 : vector<1x128xf32> to vector<16x128xf32>
    %163 = arith.mulf %161, %162 : vector<16x128xf32>
    %164 = vector.broadcast %143 : vector<1x128xf32> to vector<16x128xf32>
    %165 = arith.addf %163, %164 : vector<16x128xf32>
    %166 = arith.truncf %165 : vector<16x128xf32> to vector<16x128xbf16>
    %c0_66 = arith.constant 0 : index
    %c0_67 = arith.constant 0 : index
    %c0_68 = arith.constant 0 : index
    %167 = vector.load %arg12[%c0_66, %c0_67, %c0_68] : memref<1x128x512xbf16, #tpu.memory_space<vmem>>, vector<1x128x512xbf16>
    %168 = vector.shape_cast %167 : vector<1x128x512xbf16> to vector<128x512xbf16>
    %cst_69 = arith.constant dense<0.000000e+00> : vector<16x512xf32>
    %169 = tpu.matmul %166, %168, %cst_69 {dimension_numbers = #tpu.dot_dimension_numbers<[1], [0], [0], [1], [0, 0, 1, 1], [], []>} : vector<16x128xbf16>, vector<128x512xbf16>, vector<16x512xf32> -> vector<16x512xf32>
    %c0_70 = arith.constant 0 : index
    %c0_71 = arith.constant 0 : index
    %c0_72 = arith.constant 0 : index
    %170 = vector.load %arg13[%c0_70, %c0_71, %c0_72] : memref<1x1x512xf32, #tpu.memory_space<vmem>>, vector<1x1x512xf32>
    %171 = vector.shape_cast %170 : vector<1x1x512xf32> to vector<1x512xf32>
    %172 = vector.broadcast %171 : vector<1x512xf32> to vector<16x512xf32>
    %173 = arith.addf %169, %172 : vector<16x512xf32>
    %cst_73 = arith.constant 1.702000e+00 : f32
    %174 = vector.broadcast %cst_73 : f32 to vector<16x512xf32>
    %175 = arith.mulf %174, %173 : vector<16x512xf32>
    %176 = arith.negf %175 : vector<16x512xf32>
    %177 = math.exp %176 : vector<16x512xf32>
    %cst_74 = arith.constant 1.000000e+00 : f32
    %178 = vector.broadcast %cst_74 : f32 to vector<16x512xf32>
    %179 = arith.addf %178, %177 : vector<16x512xf32>
    %180 = arith.divf %178, %179 : vector<16x512xf32>
    %181 = arith.mulf %173, %180 : vector<16x512xf32>
    %182 = arith.truncf %181 : vector<16x512xf32> to vector<16x512xbf16>
    %c0_75 = arith.constant 0 : index
    %c0_76 = arith.constant 0 : index
    %c0_77 = arith.constant 0 : index
    %183 = vector.load %arg14[%c0_75, %c0_76, %c0_77] : memref<1x512x128xbf16, #tpu.memory_space<vmem>>, vector<1x512x128xbf16>
    %184 = vector.shape_cast %183 : vector<1x512x128xbf16> to vector<512x128xbf16>
    %cst_78 = arith.constant dense<0.000000e+00> : vector<16x128xf32>
    %185 = tpu.matmul %182, %184, %cst_78 {dimension_numbers = #tpu.dot_dimension_numbers<[1], [0], [0], [1], [0, 0, 1, 1], [], []>} : vector<16x512xbf16>, vector<512x128xbf16>, vector<16x128xf32> -> vector<16x128xf32>
    %c0_79 = arith.constant 0 : index
    %c0_80 = arith.constant 0 : index
    %c0_81 = arith.constant 0 : index
    %186 = vector.load %arg15[%c0_79, %c0_80, %c0_81] : memref<1x1x128xf32, #tpu.memory_space<vmem>>, vector<1x1x128xf32>
    %187 = vector.shape_cast %186 : vector<1x1x128xf32> to vector<1x128xf32>
    %188 = vector.broadcast %187 : vector<1x128xf32> to vector<16x128xf32>
    %189 = arith.addf %185, %188 : vector<16x128xf32>
    %190 = arith.addf %139, %189 : vector<16x128xf32>
    %191 = vector.shape_cast %190 : vector<16x128xf32> to vector<2x8x128xf32>
    %c0_82 = arith.constant 0 : index
    %c0_83 = arith.constant 0 : index
    %c0_84 = arith.constant 0 : index
    %192 = vector.load %arg21[%c0_82, %c0_83, %c0_84] : memref<2x8x128xf32, #tpu.memory_space<vmem>>, vector<2x8x128xf32>
    tpu.vector_store %arg21[%c0_82, %c0_83, %c0_84], %191 {strides = array<i32>} : memref<2x8x128xf32, #tpu.memory_space<vmem>>, vector<2x8x128xf32>,
    %c1_i32 = arith.constant 1 : i32
    %193 = arith.cmpi eq, %arg1, %c1_i32 : i32
    %194 = arith.extui %193 : i1 to i32
    %c0_i32_85 = arith.constant 0 : i32
    %195 = arith.cmpi ne, %194, %c0_i32_85 : i32
    scf.if %195 {
      %c0_86 = arith.constant 0 : index
      %c0_87 = arith.constant 0 : index
      %196 = vector.load %arg16[%c0_86, %c0_87] : memref<1x128xf32, #tpu.memory_space<vmem>>, vector<1x128xf32>
      %c0_88 = arith.constant 0 : index
      %c0_89 = arith.constant 0 : index
      %197 = vector.load %arg17[%c0_88, %c0_89] : memref<1x128xf32, #tpu.memory_space<vmem>>, vector<1x128xf32>
      %cst_90 = arith.constant dense<0.000000e+00> : vector<16xf32>
      %198 = vector.multi_reduction <add>, %190, %cst_90 [1] : vector<16x128xf32> to vector<16xf32>
      %199 = vector.shape_cast %198 : vector<16xf32> to vector<16x1xf32>
      %cst_91 = arith.constant 1.280000e+02 : f32
      %200 = vector.broadcast %cst_91 : f32 to vector<16x1xf32>
      %201 = arith.divf %199, %200 : vector<16x1xf32>
      %202 = vector.broadcast %201 : vector<16x1xf32> to vector<16x128xf32>
      %203 = arith.subf %190, %202 : vector<16x128xf32>
      %204 = arith.mulf %203, %203 : vector<16x128xf32>
      %cst_92 = arith.constant dense<0.000000e+00> : vector<16xf32>
      %205 = vector.multi_reduction <add>, %204, %cst_92 [1] : vector<16x128xf32> to vector<16xf32>
      %206 = vector.shape_cast %205 : vector<16xf32> to vector<16x1xf32>
      %cst_93 = arith.constant 1.280000e+02 : f32
      %207 = vector.broadcast %cst_93 : f32 to vector<16x1xf32>
      %208 = arith.divf %206, %207 : vector<16x1xf32>
      %209 = vector.broadcast %201 : vector<16x1xf32> to vector<16x128xf32>
      %210 = arith.subf %190, %209 : vector<16x128xf32>
      %cst_94 = arith.constant 9.99999974E-6 : f32
      %211 = vector.broadcast %cst_94 : f32 to vector<16x1xf32>
      %212 = arith.addf %208, %211 : vector<16x1xf32>
      %213 = math.rsqrt %212 : vector<16x1xf32>
      %214 = vector.broadcast %213 : vector<16x1xf32> to vector<16x128xf32>
      %215 = arith.mulf %210, %214 : vector<16x128xf32>
      %216 = vector.broadcast %196 : vector<1x128xf32> to vector<16x128xf32>
      %217 = arith.mulf %215, %216 : vector<16x128xf32>
      %218 = vector.broadcast %197 : vector<1x128xf32> to vector<16x128xf32>
      %219 = arith.addf %217, %218 : vector<16x128xf32>
      %220 = vector.shape_cast %219 : vector<16x128xf32> to vector<2x8x128xf32>
      %c0_95 = arith.constant 0 : index
      %c0_96 = arith.constant 0 : index
      %c0_97 = arith.constant 0 : index
      %221 = vector.load %arg19[%c0_95, %c0_96, %c0_97] : memref<2x8x128xf32, #tpu.memory_space<vmem>>, vector<2x8x128xf32>
      tpu.vector_store %arg19[%c0_95, %c0_96, %c0_97], %220 {strides = array<i32>} : memref<2x8x128xf32, #tpu.memory_space<vmem>>, vector<2x8x128xf32>,
      %222 = arith.truncf %219 : vector<16x128xf32> to vector<16x128xbf16>
      %c0_98 = arith.constant 0 : index
      %c0_99 = arith.constant 0 : index
      %223 = vector.load %arg18[%c0_98, %c0_99] : memref<128x128xbf16, #tpu.memory_space<vmem>>, vector<128x128xbf16>
      %cst_100 = arith.constant dense<0.000000e+00> : vector<16x128xf32>
      %224 = tpu.matmul %222, %223, %cst_100 {dimension_numbers = #tpu.dot_dimension_numbers<[1], [0], [0], [1], [0, 0, 1, 1], [], []>} : vector<16x128xbf16>, vector<128x128xbf16>, vector<16x128xf32> -> vector<16x128xf32>
      %225 = vector.shape_cast %224 : vector<16x128xf32> to vector<2x8x128xf32>
      %c0_101 = arith.constant 0 : index
      %c0_102 = arith.constant 0 : index
      %c0_103 = arith.constant 0 : index
      %226 = vector.load %arg20[%c0_101, %c0_102, %c0_103] : memref<2x8x128xf32, #tpu.memory_space<vmem>>, vector<2x8x128xf32>
      tpu.vector_store %arg20[%c0_101, %c0_102, %c0_103], %225 {strides = array<i32>} : memref<2x8x128xf32, #tpu.memory_space<vmem>>, vector<2x8x128xf32>,
    } else {
    }
    return
  }
  func.func @transform_0(%arg0: i32, %arg1: i32) -> (i32, i32, i32) {
    %c0_i32 = arith.constant 0 : i32
    %c0_i32_0 = arith.constant 0 : i32
    %c0_i32_1 = arith.constant 0 : i32
    return %arg0, %c0_i32, %c0_i32_0 : i32, i32, i32
  }
  func.func @transform_1(%arg0: i32, %arg1: i32) -> (i32, i32) {
    %c0_i32 = arith.constant 0 : i32
    %c0_i32_0 = arith.constant 0 : i32
    %c0_i32_1 = arith.constant 0 : i32
    return %c0_i32, %c0_i32_0 : i32, i32
  }
  func.func @transform_2(%arg0: i32, %arg1: i32) -> (i32, i32, i32) {
    %c0_i32 = arith.constant 0 : i32
    %c0_i32_0 = arith.constant 0 : i32
    %c0_i32_1 = arith.constant 0 : i32
    return %arg1, %c0_i32, %c0_i32_0 : i32, i32, i32
  }
  func.func @transform_3(%arg0: i32, %arg1: i32) -> (i32, i32, i32) {
    %c0_i32 = arith.constant 0 : i32
    %c0_i32_0 = arith.constant 0 : i32
    %c0_i32_1 = arith.constant 0 : i32
    return %arg1, %c0_i32, %c0_i32_0 : i32, i32, i32
  }
  func.func @transform_4(%arg0: i32, %arg1: i32) -> (i32, i32, i32) {
    %c0_i32 = arith.constant 0 : i32
    %c0_i32_0 = arith.constant 0 : i32
    %c0_i32_1 = arith.constant 0 : i32
    return %arg1, %c0_i32, %c0_i32_0 : i32, i32, i32
  }
  func.func @transform_5(%arg0: i32, %arg1: i32) -> (i32, i32, i32) {
    %c0_i32 = arith.constant 0 : i32
    %c0_i32_0 = arith.constant 0 : i32
    %c0_i32_1 = arith.constant 0 : i32
    return %arg1, %c0_i32, %c0_i32_0 : i32, i32, i32
  }
  func.func @transform_6(%arg0: i32, %arg1: i32) -> (i32, i32, i32) {
    %c0_i32 = arith.constant 0 : i32
    %c0_i32_0 = arith.constant 0 : i32
    %c0_i32_1 = arith.constant 0 : i32
    return %arg1, %c0_i32, %c0_i32_0 : i32, i32, i32
  }
  func.func @transform_7(%arg0: i32, %arg1: i32) -> (i32, i32, i32) {
    %c0_i32 = arith.constant 0 : i32
    %c0_i32_0 = arith.constant 0 : i32
    %c0_i32_1 = arith.constant 0 : i32
    return %arg1, %c0_i32, %c0_i32_0 : i32, i32, i32
  }
  func.func @transform_8(%arg0: i32, %arg1: i32) -> (i32, i32, i32) {
    %c0_i32 = arith.constant 0 : i32
    %c0_i32_0 = arith.constant 0 : i32
    %c0_i32_1 = arith.constant 0 : i32
    return %arg1, %c0_i32, %c0_i32_0 : i32, i32, i32
  }
  func.func @transform_9(%arg0: i32, %arg1: i32) -> (i32, i32, i32) {
    %c0_i32 = arith.constant 0 : i32
    %c0_i32_0 = arith.constant 0 : i32
    %c0_i32_1 = arith.constant 0 : i32
    return %arg1, %c0_i32, %c0_i32_0 : i32, i32, i32
  }
  func.func @transform_10(%arg0: i32, %arg1: i32) -> (i32, i32, i32) {
    %c0_i32 = arith.constant 0 : i32
    %c0_i32_0 = arith.constant 0 : i32
    %c0_i32_1 = arith.constant 0 : i32
    return %arg1, %c0_i32, %c0_i32_0 : i32, i32, i32
  }
  func.func @transform_11(%arg0: i32, %arg1: i32) -> (i32, i32, i32) {
    %c0_i32 = arith.constant 0 : i32
    %c0_i32_0 = arith.constant 0 : i32
    %c0_i32_1 = arith.constant 0 : i32
    return %arg1, %c0_i32, %c0_i32_0 : i32, i32, i32
  }
  func.func @transform_12(%arg0: i32, %arg1: i32) -> (i32, i32, i32) {
    %c0_i32 = arith.constant 0 : i32
    %c0_i32_0 = arith.constant 0 : i32
    %c0_i32_1 = arith.constant 0 : i32
    return %arg1, %c0_i32, %c0_i32_0 : i32, i32, i32
  }
  func.func @transform_13(%arg0: i32, %arg1: i32) -> (i32, i32, i32) {
    %c0_i32 = arith.constant 0 : i32
    %c0_i32_0 = arith.constant 0 : i32
    %c0_i32_1 = arith.constant 0 : i32
    return %arg1, %c0_i32, %c0_i32_0 : i32, i32, i32
  }
  func.func @transform_14(%arg0: i32, %arg1: i32) -> (i32, i32) {
    %c0_i32 = arith.constant 0 : i32
    %c0_i32_0 = arith.constant 0 : i32
    %c0_i32_1 = arith.constant 0 : i32
    return %c0_i32, %c0_i32_0 : i32, i32
  }
  func.func @transform_15(%arg0: i32, %arg1: i32) -> (i32, i32) {
    %c0_i32 = arith.constant 0 : i32
    %c0_i32_0 = arith.constant 0 : i32
    %c0_i32_1 = arith.constant 0 : i32
    return %c0_i32, %c0_i32_0 : i32, i32
  }
  func.func @transform_16(%arg0: i32, %arg1: i32) -> (i32, i32) {
    %c0_i32 = arith.constant 0 : i32
    %c0_i32_0 = arith.constant 0 : i32
    %c0_i32_1 = arith.constant 0 : i32
    return %c0_i32, %c0_i32_0 : i32, i32
  }
  func.func @transform_17(%arg0: i32, %arg1: i32) -> (i32, i32, i32) {
    %c0_i32 = arith.constant 0 : i32
    %c0_i32_0 = arith.constant 0 : i32
    %c0_i32_1 = arith.constant 0 : i32
    return %arg0, %c0_i32, %c0_i32_0 : i32, i32, i32
  }
  func.func @transform_18(%arg0: i32, %arg1: i32) -> (i32, i32, i32) {
    %c0_i32 = arith.constant 0 : i32
    %c0_i32_0 = arith.constant 0 : i32
    %c0_i32_1 = arith.constant 0 : i32
    return %arg0, %c0_i32, %c0_i32_0 : i32, i32, i32
  }
}

</mosaic_0001>

<llo_original>
// kernel: tpu_custom_call.1
$region0: #{tpu_custom_call.1}
  #allocation0 [shape = 'u32[]', space=smem, size = 0x4, offset = 0x4, fixed_abs, tag = 'smem constant byte address 0x4 - core index']
  #allocation1 [shape = 'u32[72,128]{1,0:T(1,128)}', space=vmem, size = 0x9000, scoped, tag = 'internal scratch']
  #allocation2 [shape = 'f32[2,8,128]{2,1,0:T(8,128)}', space=vmem, size = 0x2000, scoped, tag = 'scratch operand']
  %s0 = inlined_call_operand.hbm [shape: f32[2,8,128], index: 0, kind: input, shape index: {}]
  %s1 = inlined_call_operand.hbm [shape: f32[8,8], index: 1, kind: input, shape index: {}]
  %s2 = inlined_call_operand.hbm [shape: f32[2,1,128], index: 2, kind: input, shape index: {}]
  %s3 = inlined_call_operand.vmem [shape: f32[2,1,128], index: 3, kind: input, shape index: {}]
  %s4 = inlined_call_operand.hbm [shape: bf16[2,128,384], index: 4, kind: input, shape index: {}]
  %s5 = inlined_call_operand.hbm [shape: f32[2,1,384], index: 5, kind: input, shape index: {}]
  %s6 = inlined_call_operand.hbm [shape: bf16[2,128,128], index: 6, kind: input, shape index: {}]
  %s7 = inlined_call_operand.hbm [shape: f32[2,1,128], index: 7, kind: input, shape index: {}]
  %s8 = inlined_call_operand.hbm [shape: f32[2,1,128], index: 8, kind: input, shape index: {}]
  %s9 = inlined_call_operand.hbm [shape: f32[2,1,128], index: 9, kind: input, shape index: {}]
  %s10 = inlined_call_operand.hbm [shape: bf16[2,128,512], index: 10, kind: input, shape index: {}]
  %s11 = inlined_call_operand.vmem [shape: f32[2,1,512], index: 11, kind: input, shape index: {}]
  %s12 = inlined_call_operand.hbm [shape: bf16[2,512,128], index: 12, kind: input, shape index: {}]
  %s13 = inlined_call_operand.vmem [shape: f32[2,1,128], index: 13, kind: input, shape index: {}]
  %s14 = inlined_call_operand.vmem [shape: f32[1,128], index: 14, kind: input, shape index: {}]
  %s15 = inlined_call_operand.vmem [shape: f32[1,128], index: 15, kind: input, shape index: {}]
  %s16 = inlined_call_operand.hbm [shape: bf16[128,128], index: 16, kind: input, shape index: {}]
  %s17 = inlined_call_operand.hbm [shape: f32[2,8,128], index: 17, kind: output, shape index: {0}]
  %s18 = inlined_call_operand.hbm [shape: f32[2,8,128], index: 18, kind: output, shape index: {1}]
  %19 = xla_tuple %s17, %s18
  %s20 = sld [smem:[#allocation0]]
  $region165: #{tpu_custom_call.1} parent=0
    _
  %s22 = ssub.s32 1, %s20
  %s23 = scalar_select 0, %s22, %s20
  $region1: #{tpu_custom_call.1} parent=0
    #allocation3 [shape = 'u8[8192]{0}', space=vmem, size = 0x2000, scoped, tag = 'input window, operand 0, single buffered']
    #allocation4 [shape = 's32[2]{0}', space=sflag, size = 0x8, scoped, tag = 'scoped memory for tpu_custom_call.1']
    #allocation5 [shape = 's32[2]{0}', space=sflag, size = 0x8, scoped, tag = 'scoped memory for tpu_custom_call.1']
    #allocation6 [shape = 'u8[4096]{0}', space=vmem, size = 0x1000, scoped, tag = 'input window, operand 1, single buffered']
    #allocation7 [shape = 's32[1]{0}', space=sflag, size = 0x4, scoped, tag = 'scoped memory for tpu_custom_call.1']
    #allocation8 [shape = 'u8[1024]{0}', space=vmem, size = 0x400, scoped, tag = 'input window, operand 2']
    #allocation9 [shape = 'u8[196608]{0}', space=vmem, size = 0x30000, scoped, tag = 'input window, operand 4']
    #allocation10 [shape = 'u8[3072]{0}', space=vmem, size = 0xc00, scoped, tag = 'input window, operand 5']
    #allocation11 [shape = 'u8[65536]{0}', space=vmem, size = 0x10000, scoped, tag = 'input window, operand 6']
    #allocation12 [shape = 'u8[1024]{0}', space=vmem, size = 0x400, scoped, tag = 'input window, operand 7']
    #allocation13 [shape = 'u8[1024]{0}', space=vmem, size = 0x400, scoped, tag = 'input window, operand 8']
    #allocation14 [shape = 'u8[1024]{0}', space=vmem, size = 0x400, scoped, tag = 'input window, operand 9']
    #allocation15 [shape = 'u8[262144]{0}', space=vmem, size = 0x40000, scoped, tag = 'input window, operand 10']
    #allocation16 [shape = 'u8[262144]{0}', space=vmem, size = 0x40000, scoped, tag = 'input window, operand 12']
    #allocation17 [shape = 'u8[32768]{0}', space=vmem, size = 0x8000, scoped, tag = 'input window, operand 16, single buffered']
    #allocation18 [shape = 'u8[8192]{0}', space=vmem, size = 0x2000, scoped, tag = 'output window, operand 0, single buffered']
    #allocation19 [shape = 'u8[8192]{0}', space=vmem, size = 0x2000, scoped, tag = 'output window, operand 1, single buffered']
    #allocation20 [shape = 's32[1]{0}', space=sflag, size = 0x4, scoped, tag = 'scoped memory for tpu_custom_call.1']
    %24 = vsyncpa [#allocation4], 0
    %25 = vsyncpa [#allocation7], 0
    %26 = vsyncpa [#allocation5], 0
    %27 = vsyncpa [#allocation20], 0
    loop: start=0, step=1, limit=4
    $region2: #{tpu_custom_call.1} parent=1 // loop_pre_header
      _
    $region3: #{tpu_custom_call.1} parent=1 // loop_header
      %s29 = sphi 0, %s33
      %p30 = scmp.ge.s32.totalorder %s29, 4
      %s36 = sphi 0, %s48
      %s37 = sphi 0, %s44
      %s38 = sphi 0, %s36
      %s39 = sphi 0, %s37
      %s40 = sphi 0, %s38
      %s41 = sphi 0, %s39
      %s51 = sphi 0, %s53
      %s54 = sphi 0, %s51
      %s55 = sphi 0, %s54
      %s71 = sphi 0, %s55
      %s75 = sphi 0, %s75
      %s77 = sphi 0, %s75
      %s78 = sphi 0, %s77
      %s92 = sphi 0, %s78
      %s98 = sphi 0, %s100
      %s101 = sphi 0, %s98
      %s102 = sphi 0, %s101
      %s118 = sphi 0, %s102
      %s124 = sphi 0, %s126
      %s127 = sphi 0, %s124
      %s128 = sphi 0, %s127
      %s144 = sphi 0, %s128
      %s150 = sphi 0, %s152
      %s153 = sphi 0, %s150
      %s154 = sphi 0, %s153
      %s170 = sphi 0, %s154
      %s176 = sphi 0, %s178
      %s179 = sphi 0, %s176
      %s180 = sphi 0, %s179
      %s196 = sphi 0, %s180
      %s202 = sphi 0, %s204
      %s205 = sphi 0, %s202
      %s206 = sphi 0, %s205
      %s222 = sphi 0, %s206
      %s228 = sphi 0, %s230
      %s231 = sphi 0, %s228
      %s232 = sphi 0, %s231
      %s248 = sphi 0, %s232
      %s254 = sphi 0, %s256
      %s257 = sphi 0, %s254
      %s258 = sphi 0, %s257
      %s274 = sphi 0, %s258
      %s280 = sphi 0, %s282
      %s283 = sphi 0, %s280
      %s284 = sphi 0, %s283
      %s300 = sphi 0, %s284
      %s306 = sphi 0, %s308
      %s309 = sphi 0, %s306
      %s310 = sphi 0, %s309
      %s326 = sphi 0, %s310
      %s332 = sphi 0, %s334
      %s335 = sphi 0, %s332
      %s336 = sphi 0, %s335
      %s352 = sphi 0, %s336
      %s358 = sphi 0, %s360
      %s361 = sphi 0, %s358
      %s362 = sphi 0, %s361
      %s378 = sphi 0, %s362
      %s384 = sphi 0, %s386
      %s387 = sphi 0, %s384
      %s388 = sphi 0, %s387
      %s404 = sphi 0, %s388
      %s408 = sphi 0, %s408
      %s410 = sphi 0, %s408
      %s411 = sphi 0, %s410
      %s425 = sphi 0, %s411
      %s429 = sphi 0, %s429
      %s431 = sphi 0, %s429
      %s432 = sphi 0, %s431
      %s446 = sphi 0, %s432
      %s450 = sphi 0, %s450
      %s452 = sphi 0, %s450
      %s453 = sphi 0, %s452
      %s467 = sphi 0, %s453
      %s473 = sphi 0, %s475
      %s476 = sphi 0, %s473
      %s477 = sphi 0, %s476
      %s493 = sphi 0, %s477
      %s499 = sphi 0, %s501
      %s502 = sphi 0, %s499
      %s503 = sphi 0, %s502
      %s519 = sphi 0, %s503
    $region4: #{tpu_custom_call.1} parent=1 // loop_header_branch
      %32 = sbr.rel (%p30) target = $region8
    $region5: #{tpu_custom_call.1} parent=1 // loop_body
      %s34 = ssub.s32 %s29, 1
      %s35 = ssub.s32 %s29, 2
      %s42 = sadd.s32 1, %s37
      %p43 = scmp.ge.s32.totalorder %s42, 2
      %s44 = scalar_select %p43, 0, %s42
      %s45 = sadd.s32 1, %s36
      %s46 = scalar_select %p43, %s45, %s36
      %p47 = scmp.ge.s32.totalorder %s46, 1
      %s48 = scalar_select %p47, 0, %s46
      %s49 = ssub.s32 %s36, %s48
      %p50 = scmp.eq.s32.totalorder %s49, 0
      %s52 = sadd.s32 %s51, 1
      %s53 = scalar_select %p50, %s51, %s52
      %p56 = pneg %p50
      %p57 = scmp.eq.s32.totalorder %s29, 1
      %p58 = por %p56, %p57
      %p59 = scmp.ne.s32.totalorder %s51, %s54
      %p60 = scmp.eq.s32.totalorder %s29, 0
      %p61 = por %p59, %p60
      %p62 = scmp.ne.s32.totalorder %s51, %s54
      %p63 = scmp.eq.s32.totalorder %s34, 1
      %p64 = por %p62, %p63
      %p65 = scmp.ne.s32.totalorder %s54, %s55
      %p66 = scmp.eq.s32.totalorder %s34, 0
      %p67 = por %p65, %p66
      %p68 = scmp.ne.s32.totalorder %s54, %s55
      %p69 = scmp.eq.s32.totalorder %s35, 1
      %p70 = por %p68, %p69
      %p72 = scmp.ne.s32.totalorder %s55, %s71
      %p73 = scmp.eq.s32.totalorder %s35, 0
      %p74 = por %p72, %p73
      %s76 = sadd.s32 %s75, 1
      %p79 = scmp.eq.s32.totalorder %s29, 1
      %p80 = scmp.ne.s32.totalorder %s75, %s77
      %p81 = scmp.eq.s32.totalorder %s29, 0
      %p82 = por %p80, %p81
      %p83 = scmp.ne.s32.totalorder %s75, %s77
      %p84 = scmp.eq.s32.totalorder %s34, 1
      %p85 = por %p83, %p84
      %p86 = scmp.ne.s32.totalorder %s77, %s78
      %p87 = scmp.eq.s32.totalorder %s34, 0
      %p88 = por %p86, %p87
      %p89 = scmp.ne.s32.totalorder %s77, %s78
      %p90 = scmp.eq.s32.totalorder %s35, 1
      %p91 = por %p89, %p90
      %p93 = scmp.ne.s32.totalorder %s78, %s92
      %p94 = scmp.eq.s32.totalorder %s35, 0
      %p95 = por %p93, %p94
      %s96 = ssub.s32 %s37, %s44
      %p97 = scmp.eq.s32.totalorder %s96, 0
      %s99 = sadd.s32 %s98, 1
      %s100 = scalar_select %p97, %s98, %s99
      %p103 = pneg %p97
      %p104 = scmp.eq.s32.totalorder %s29, 1
      %p105 = por %p103, %p104
      %p106 = scmp.ne.s32.totalorder %s98, %s101
      %p107 = scmp.eq.s32.totalorder %s29, 0
      %p108 = por %p106, %p107
      %p109 = scmp.ne.s32.totalorder %s98, %s101
      %p110 = scmp.eq.s32.totalorder %s34, 1
      %p111 = por %p109, %p110
      %p112 = scmp.ne.s32.totalorder %s101, %s102
      %p113 = scmp.eq.s32.totalorder %s34, 0
      %p114 = por %p112, %p113
      %p115 = scmp.ne.s32.totalorder %s101, %s102
      %p116 = scmp.eq.s32.totalorder %s35, 1
      %p117 = por %p115, %p116
      %p119 = scmp.ne.s32.totalorder %s102, %s118
      %p120 = scmp.eq.s32.totalorder %s35, 0
      %p121 = por %p119, %p120
      %s122 = ssub.s32 %s37, %s44
      %p123 = scmp.eq.s32.totalorder %s122, 0
      %s125 = sadd.s32 %s124, 1
      %s126 = scalar_select %p123, %s124, %s125
      %p129 = pneg %p123
      %p130 = scmp.eq.s32.totalorder %s29, 1
      %p131 = por %p129, %p130
      %p132 = scmp.ne.s32.totalorder %s124, %s127
      %p133 = scmp.eq.s32.totalorder %s29, 0
      %p134 = por %p132, %p133
      %p135 = scmp.ne.s32.totalorder %s124, %s127
      %p136 = scmp.eq.s32.totalorder %s34, 1
      %p137 = por %p135, %p136
      %p138 = scmp.ne.s32.totalorder %s127, %s128
      %p139 = scmp.eq.s32.totalorder %s34, 0
      %p140 = por %p138, %p139
      %p141 = scmp.ne.s32.totalorder %s127, %s128
      %p142 = scmp.eq.s32.totalorder %s35, 1
      %p143 = por %p141, %p142
      %p145 = scmp.ne.s32.totalorder %s128, %s144
      %p146 = scmp.eq.s32.totalorder %s35, 0
      %p147 = por %p145, %p146
      %s148 = ssub.s32 %s37, %s44
      %p149 = scmp.eq.s32.totalorder %s148, 0
      %s151 = sadd.s32 %s150, 1
      %s152 = scalar_select %p149, %s150, %s151
      %p155 = pneg %p149
      %p156 = scmp.eq.s32.totalorder %s29, 1
      %p157 = por %p155, %p156
      %p158 = scmp.ne.s32.totalorder %s150, %s153
      %p159 = scmp.eq.s32.totalorder %s29, 0
      %p160 = por %p158, %p159
      %p161 = scmp.ne.s32.totalorder %s150, %s153
      %p162 = scmp.eq.s32.totalorder %s34, 1
      %p163 = por %p161, %p162
      %p164 = scmp.ne.s32.totalorder %s153, %s154
      %p165 = scmp.eq.s32.totalorder %s34, 0
      %p166 = por %p164, %p165
      %p167 = scmp.ne.s32.totalorder %s153, %s154
      %p168 = scmp.eq.s32.totalorder %s35, 1
      %p169 = por %p167, %p168
      %p171 = scmp.ne.s32.totalorder %s154, %s170
      %p172 = scmp.eq.s32.totalorder %s35, 0
      %p173 = por %p171, %p172
      %s174 = ssub.s32 %s37, %s44
      %p175 = scmp.eq.s32.totalorder %s174, 0
      %s177 = sadd.s32 %s176, 1
      %s178 = scalar_select %p175, %s176, %s177
      %p181 = pneg %p175
      %p182 = scmp.eq.s32.totalorder %s29, 1
      %p183 = por %p181, %p182
      %p184 = scmp.ne.s32.totalorder %s176, %s179
      %p185 = scmp.eq.s32.totalorder %s29, 0
      %p186 = por %p184, %p185
      %p187 = scmp.ne.s32.totalorder %s176, %s179
      %p188 = scmp.eq.s32.totalorder %s34, 1
      %p189 = por %p187, %p188
      %p190 = scmp.ne.s32.totalorder %s179, %s180
      %p191 = scmp.eq.s32.totalorder %s34, 0
      %p192 = por %p190, %p191
      %p193 = scmp.ne.s32.totalorder %s179, %s180
      %p194 = scmp.eq.s32.totalorder %s35, 1
      %p195 = por %p193, %p194
      %p197 = scmp.ne.s32.totalorder %s180, %s196
      %p198 = scmp.eq.s32.totalorder %s35, 0
      %p199 = por %p197, %p198
      %s200 = ssub.s32 %s37, %s44
      %p201 = scmp.eq.s32.totalorder %s200, 0
      %s203 = sadd.s32 %s202, 1
      %s204 = scalar_select %p201, %s202, %s203
      %p207 = pneg %p201
      %p208 = scmp.eq.s32.totalorder %s29, 1
      %p209 = por %p207, %p208
      %p210 = scmp.ne.s32.totalorder %s202, %s205
      %p211 = scmp.eq.s32.totalorder %s29, 0
      %p212 = por %p210, %p211
      %p213 = scmp.ne.s32.totalorder %s202, %s205
      %p214 = scmp.eq.s32.totalorder %s34, 1
      %p215 = por %p213, %p214
      %p216 = scmp.ne.s32.totalorder %s205, %s206
      %p217 = scmp.eq.s32.totalorder %s34, 0
      %p218 = por %p216, %p217
      %p219 = scmp.ne.s32.totalorder %s205, %s206
      %p220 = scmp.eq.s32.totalorder %s35, 1
      %p221 = por %p219, %p220
      %p223 = scmp.ne.s32.totalorder %s206, %s222
      %p224 = scmp.eq.s32.totalorder %s35, 0
      %p225 = por %p223, %p224
      %s226 = ssub.s32 %s37, %s44
      %p227 = scmp.eq.s32.totalorder %s226, 0
      %s229 = sadd.s32 %s228, 1
      %s230 = scalar_select %p227, %s228, %s229
      %p233 = pneg %p227
      %p234 = scmp.eq.s32.totalorder %s29, 1
      %p235 = por %p233, %p234
      %p236 = scmp.ne.s32.totalorder %s228, %s231
      %p237 = scmp.eq.s32.totalorder %s29, 0
      %p238 = por %p236, %p237
      %p239 = scmp.ne.s32.totalorder %s228, %s231
      %p240 = scmp.eq.s32.totalorder %s34, 1
      %p241 = por %p239, %p240
      %p242 = scmp.ne.s32.totalorder %s231, %s232
      %p243 = scmp.eq.s32.totalorder %s34, 0
      %p244 = por %p242, %p243
      %p245 = scmp.ne.s32.totalorder %s231, %s232
      %p246 = scmp.eq.s32.totalorder %s35, 1
      %p247 = por %p245, %p246
      %p249 = scmp.ne.s32.totalorder %s232, %s248
      %p250 = scmp.eq.s32.totalorder %s35, 0
      %p251 = por %p249, %p250
      %s252 = ssub.s32 %s37, %s44
      %p253 = scmp.eq.s32.totalorder %s252, 0
      %s255 = sadd.s32 %s254, 1
      %s256 = scalar_select %p253, %s254, %s255
      %p259 = pneg %p253
      %p260 = scmp.eq.s32.totalorder %s29, 1
      %p261 = por %p259, %p260
      %p262 = scmp.ne.s32.totalorder %s254, %s257
      %p263 = scmp.eq.s32.totalorder %s29, 0
      %p264 = por %p262, %p263
      %p265 = scmp.ne.s32.totalorder %s254, %s257
      %p266 = scmp.eq.s32.totalorder %s34, 1
      %p267 = por %p265, %p266
      %p268 = scmp.ne.s32.totalorder %s257, %s258
      %p269 = scmp.eq.s32.totalorder %s34, 0
      %p270 = por %p268, %p269
      %p271 = scmp.ne.s32.totalorder %s257, %s258
      %p272 = scmp.eq.s32.totalorder %s35, 1
      %p273 = por %p271, %p272
      %p275 = scmp.ne.s32.totalorder %s258, %s274
      %p276 = scmp.eq.s32.totalorder %s35, 0
      %p277 = por %p275, %p276
      %s278 = ssub.s32 %s37, %s44
      %p279 = scmp.eq.s32.totalorder %s278, 0
      %s281 = sadd.s32 %s280, 1
      %s282 = scalar_select %p279, %s280, %s281
      %p285 = pneg %p279
      %p286 = scmp.eq.s32.totalorder %s29, 1
      %p287 = por %p285, %p286
      %p288 = scmp.ne.s32.totalorder %s280, %s283
      %p289 = scmp.eq.s32.totalorder %s29, 0
      %p290 = por %p288, %p289
      %p291 = scmp.ne.s32.totalorder %s280, %s283
      %p292 = scmp.eq.s32.totalorder %s34, 1
      %p293 = por %p291, %p292
      %p294 = scmp.ne.s32.totalorder %s283, %s284
      %p295 = scmp.eq.s32.totalorder %s34, 0
      %p296 = por %p294, %p295
      %p297 = scmp.ne.s32.totalorder %s283, %s284
      %p298 = scmp.eq.s32.totalorder %s35, 1
      %p299 = por %p297, %p298
      %p301 = scmp.ne.s32.totalorder %s284, %s300
      %p302 = scmp.eq.s32.totalorder %s35, 0
      %p303 = por %p301, %p302
      %s304 = ssub.s32 %s37, %s44
      %p305 = scmp.eq.s32.totalorder %s304, 0
      %s307 = sadd.s32 %s306, 1
      %s308 = scalar_select %p305, %s306, %s307
      %p311 = pneg %p305
      %p312 = scmp.eq.s32.totalorder %s29, 1
      %p313 = por %p311, %p312
      %p314 = scmp.ne.s32.totalorder %s306, %s309
      %p315 = scmp.eq.s32.totalorder %s29, 0
      %p316 = por %p314, %p315
      %p317 = scmp.ne.s32.totalorder %s306, %s309
      %p318 = scmp.eq.s32.totalorder %s34, 1
      %p319 = por %p317, %p318
      %p320 = scmp.ne.s32.totalorder %s309, %s310
      %p321 = scmp.eq.s32.totalorder %s34, 0
      %p322 = por %p320, %p321
      %p323 = scmp.ne.s32.totalorder %s309, %s310
      %p324 = scmp.eq.s32.totalorder %s35, 1
      %p325 = por %p323, %p324
      %p327 = scmp.ne.s32.totalorder %s310, %s326
      %p328 = scmp.eq.s32.totalorder %s35, 0
      %p329 = por %p327, %p328
      %s330 = ssub.s32 %s37, %s44
      %p331 = scmp.eq.s32.totalorder %s330, 0
      %s333 = sadd.s32 %s332, 1
      %s334 = scalar_select %p331, %s332, %s333
      %p337 = pneg %p331
      %p338 = scmp.eq.s32.totalorder %s29, 1
      %p339 = por %p337, %p338
      %p340 = scmp.ne.s32.totalorder %s332, %s335
      %p341 = scmp.eq.s32.totalorder %s29, 0
      %p342 = por %p340, %p341
      %p343 = scmp.ne.s32.totalorder %s332, %s335
      %p344 = scmp.eq.s32.totalorder %s34, 1
      %p345 = por %p343, %p344
      %p346 = scmp.ne.s32.totalorder %s335, %s336
      %p347 = scmp.eq.s32.totalorder %s34, 0
      %p348 = por %p346, %p347
      %p349 = scmp.ne.s32.totalorder %s335, %s336
      %p350 = scmp.eq.s32.totalorder %s35, 1
      %p351 = por %p349, %p350
      %p353 = scmp.ne.s32.totalorder %s336, %s352
      %p354 = scmp.eq.s32.totalorder %s35, 0
      %p355 = por %p353, %p354
      %s356 = ssub.s32 %s37, %s44
      %p357 = scmp.eq.s32.totalorder %s356, 0
      %s359 = sadd.s32 %s358, 1
      %s360 = scalar_select %p357, %s358, %s359
      %p363 = pneg %p357
      %p364 = scmp.eq.s32.totalorder %s29, 1
      %p365 = por %p363, %p364
      %p366 = scmp.ne.s32.totalorder %s358, %s361
      %p367 = scmp.eq.s32.totalorder %s29, 0
      %p368 = por %p366, %p367
      %p369 = scmp.ne.s32.totalorder %s358, %s361
      %p370 = scmp.eq.s32.totalorder %s34, 1
      %p371 = por %p369, %p370
      %p372 = scmp.ne.s32.totalorder %s361, %s362
      %p373 = scmp.eq.s32.totalorder %s34, 0
      %p374 = por %p372, %p373
      %p375 = scmp.ne.s32.totalorder %s361, %s362
      %p376 = scmp.eq.s32.totalorder %s35, 1
      %p377 = por %p375, %p376
      %p379 = scmp.ne.s32.totalorder %s362, %s378
      %p380 = scmp.eq.s32.totalorder %s35, 0
      %p381 = por %p379, %p380
      %s382 = ssub.s32 %s37, %s44
      %p383 = scmp.eq.s32.totalorder %s382, 0
      %s385 = sadd.s32 %s384, 1
      %s386 = scalar_select %p383, %s384, %s385
      %p389 = pneg %p383
      %p390 = scmp.eq.s32.totalorder %s29, 1
      %p391 = por %p389, %p390
      %p392 = scmp.ne.s32.totalorder %s384, %s387
      %p393 = scmp.eq.s32.totalorder %s29, 0
      %p394 = por %p392, %p393
      %p395 = scmp.ne.s32.totalorder %s384, %s387
      %p396 = scmp.eq.s32.totalorder %s34, 1
      %p397 = por %p395, %p396
      %p398 = scmp.ne.s32.totalorder %s387, %s388
      %p399 = scmp.eq.s32.totalorder %s34, 0
      %p400 = por %p398, %p399
      %p401 = scmp.ne.s32.totalorder %s387, %s388
      %p402 = scmp.eq.s32.totalorder %s35, 1
      %p403 = por %p401, %p402
      %p405 = scmp.ne.s32.totalorder %s388, %s404
      %p406 = scmp.eq.s32.totalorder %s35, 0
      %p407 = por %p405, %p406
      %s409 = sadd.s32 %s408, 1
      %p412 = scmp.eq.s32.totalorder %s29, 1
      %p413 = scmp.ne.s32.totalorder %s408, %s410
      %p414 = scmp.eq.s32.totalorder %s29, 0
      %p415 = por %p413, %p414
      %p416 = scmp.ne.s32.totalorder %s408, %s410
      %p417 = scmp.eq.s32.totalorder %s34, 1
      %p418 = por %p416, %p417
      %p419 = scmp.ne.s32.totalorder %s410, %s411
      %p420 = scmp.eq.s32.totalorder %s34, 0
      %p421 = por %p419, %p420
      %p422 = scmp.ne.s32.totalorder %s410, %s411
      %p423 = scmp.eq.s32.totalorder %s35, 1
      %p424 = por %p422, %p423
      %p426 = scmp.ne.s32.totalorder %s411, %s425
      %p427 = scmp.eq.s32.totalorder %s35, 0
      %p428 = por %p426, %p427
      %s430 = sadd.s32 %s429, 1
      %p433 = scmp.eq.s32.totalorder %s29, 1
      %p434 = scmp.ne.s32.totalorder %s429, %s431
      %p435 = scmp.eq.s32.totalorder %s29, 0
      %p436 = por %p434, %p435
      %p437 = scmp.ne.s32.totalorder %s429, %s431
      %p438 = scmp.eq.s32.totalorder %s34, 1
      %p439 = por %p437, %p438
      %p440 = scmp.ne.s32.totalorder %s431, %s432
      %p441 = scmp.eq.s32.totalorder %s34, 0
      %p442 = por %p440, %p441
      %p443 = scmp.ne.s32.totalorder %s431, %s432
      %p444 = scmp.eq.s32.totalorder %s35, 1
      %p445 = por %p443, %p444
      %p447 = scmp.ne.s32.totalorder %s432, %s446
      %p448 = scmp.eq.s32.totalorder %s35, 0
      %p449 = por %p447, %p448
      %s451 = sadd.s32 %s450, 1
      %p454 = scmp.eq.s32.totalorder %s29, 1
      %p455 = scmp.ne.s32.totalorder %s450, %s452
      %p456 = scmp.eq.s32.totalorder %s29, 0
      %p457 = por %p455, %p456
      %p458 = scmp.ne.s32.totalorder %s450, %s452
      %p459 = scmp.eq.s32.totalorder %s34, 1
      %p460 = por %p458, %p459
      %p461 = scmp.ne.s32.totalorder %s452, %s453
      %p462 = scmp.eq.s32.totalorder %s34, 0
      %p463 = por %p461, %p462
      %p464 = scmp.ne.s32.totalorder %s452, %s453
      %p465 = scmp.eq.s32.totalorder %s35, 1
      %p466 = por %p464, %p465
      %p468 = scmp.ne.s32.totalorder %s453, %s467
      %p469 = scmp.eq.s32.totalorder %s35, 0
      %p470 = por %p468, %p469
      %s471 = ssub.s32 %s36, %s48
      %p472 = scmp.eq.s32.totalorder %s471, 0
      %s474 = sadd.s32 %s473, 1
      %s475 = scalar_select %p472, %s473, %s474
      %p478 = pneg %p472
      %p479 = scmp.eq.s32.totalorder %s29, 1
      %p480 = por %p478, %p479
      %p481 = scmp.ne.s32.totalorder %s473, %s476
      %p482 = scmp.eq.s32.totalorder %s29, 0
      %p483 = por %p481, %p482
      %p484 = scmp.ne.s32.totalorder %s473, %s476
      %p485 = scmp.eq.s32.totalorder %s34, 1
      %p486 = por %p484, %p485
      %p487 = scmp.ne.s32.totalorder %s476, %s477
      %p488 = scmp.eq.s32.totalorder %s34, 0
      %p489 = por %p487, %p488
      %p490 = scmp.ne.s32.totalorder %s476, %s477
      %p491 = scmp.eq.s32.totalorder %s35, 1
      %p492 = por %p490, %p491
      %p494 = scmp.ne.s32.totalorder %s477, %s493
      %p495 = scmp.eq.s32.totalorder %s35, 0
      %p496 = por %p494, %p495
      %s497 = ssub.s32 %s36, %s48
      %p498 = scmp.eq.s32.totalorder %s497, 0
      %s500 = sadd.s32 %s499, 1
      %s501 = scalar_select %p498, %s499, %s500
      %p504 = pneg %p498
      %p505 = scmp.eq.s32.totalorder %s29, 1
      %p506 = por %p504, %p505
      %p507 = scmp.ne.s32.totalorder %s499, %s502
      %p508 = scmp.eq.s32.totalorder %s29, 0
      %p509 = por %p507, %p508
      %p510 = scmp.ne.s32.totalorder %s499, %s502
      %p511 = scmp.eq.s32.totalorder %s34, 1
      %p512 = por %p510, %p511
      %p513 = scmp.ne.s32.totalorder %s502, %s503
      %p514 = scmp.eq.s32.totalorder %s34, 0
      %p515 = por %p513, %p514
      %p516 = scmp.ne.s32.totalorder %s502, %s503
      %p517 = scmp.eq.s32.totalorder %s35, 1
      %p518 = por %p516, %p517
      %p520 = scmp.ne.s32.totalorder %s503, %s519
      %p521 = scmp.eq.s32.totalorder %s35, 0
      %p522 = por %p520, %p521
      %p523 = scmp.le.s32.totalorder 1, %s29
      %p524 = scmp.lt.s32.totalorder %s29, 3
      %p525 = pnand %p523, %p524
      %p526 = pneg %p525
      // Predicated region
      $region9: #{tpu_custom_call.1} parent=5 // pred_check
        _
      $region10: #{tpu_custom_call.1} parent=5 // pred_check_branch
        %528 = sbr.rel (%p525) target = $region12
      $region11: #{tpu_custom_call.1} parent=5 // pred_region
        %s529 = ssub.s32 %s29, 1
        // Predicated region
        $region13: #{tpu_custom_call.1} parent=11 // pred_check
          %p530 = pneg %p67
        $region14: #{tpu_custom_call.1} parent=11 // pred_check_branch
          %532 = sbr.rel (%p530) target = $region16
        $region15: #{tpu_custom_call.1} parent=11 // pred_region
          %s533 = smul.u32 2, %s38
          %535 = vsyncadd [#allocation4], 0
          %s536 = smul.addr %s533, 8
          %s537 = scalar_lea.hbm %s0, %s536
          %s538 = sshll.u32 %s537, 4
          %s539 = int_to_ptr.hbm [resolvable:$true] %s538
          %s540 = sshll.u32 [#allocation3], 4
          %s541 = int_to_ptr.vmem [resolvable:$true] %s540
          %546 = dma.hbm_to_vmem [thread:$0]  %s539, 256, %s541, [#allocation4], 128, 128, 8
        $region16: #{tpu_custom_call.1} parent=11 // pred_fallthru
          _
        // Predicated region
        $region17: #{tpu_custom_call.1} parent=11 // pred_check
          %p547 = pneg %p88
        $region18: #{tpu_custom_call.1} parent=11 // pred_check_branch
          %549 = sbr.rel (%p547) target = $region20
        $region19: #{tpu_custom_call.1} parent=11 // pred_region
          %551 = vsyncadd [#allocation7], 0
          %s553 = sshll.u32 %s1, 4
          %s554 = int_to_ptr.hbm [resolvable:$true] %s553
          %s555 = sshll.u32 [#allocation6], 4
          %s556 = int_to_ptr.vmem [resolvable:$true] %s555
          %558 = dma.hbm_to_vmem [thread:$0]  %s554, 128, %s556, [#allocation7]
        $region20: #{tpu_custom_call.1} parent=11 // pred_fallthru
          _
        // Predicated region
        $region21: #{tpu_custom_call.1} parent=11 // pred_check
          %p559 = pneg %p421
        $region22: #{tpu_custom_call.1} parent=11 // pred_check_branch
          %561 = sbr.rel (%p559) target = $region24
        $region23: #{tpu_custom_call.1} parent=11 // pred_region
          _
        $region24: #{tpu_custom_call.1} parent=11 // pred_fallthru
          _
        // Predicated region
        $region25: #{tpu_custom_call.1} parent=11 // pred_check
          %p562 = pneg %p442
        $region26: #{tpu_custom_call.1} parent=11 // pred_check_branch
          %564 = sbr.rel (%p562) target = $region28
        $region27: #{tpu_custom_call.1} parent=11 // pred_region
          _
        $region28: #{tpu_custom_call.1} parent=11 // pred_fallthru
          _
        // Predicated region
        $region29: #{tpu_custom_call.1} parent=11 // pred_check
          %p565 = pneg %p463
        $region30: #{tpu_custom_call.1} parent=11 // pred_check_branch
          %567 = sbr.rel (%p565) target = $region32
        $region31: #{tpu_custom_call.1} parent=11 // pred_region
          %569 = vsyncadd [#allocation7], 0
          %s570 = sshll.u32 %s16, 4
          %s571 = int_to_ptr.hbm [resolvable:$true] %s570
          %s572 = sshll.u32 [#allocation17], 4
          %s573 = int_to_ptr.vmem [resolvable:$true] %s572
          %578 = dma.hbm_to_vmem [thread:$0]  %s571, 1024, %s573, [#allocation7], 64, 64, 4
        $region32: #{tpu_custom_call.1} parent=11 // pred_fallthru
          _
      $region12: #{tpu_custom_call.1} parent=5 // pred_fallthru
        _
      %p579 = scmp.lt.s32.totalorder %s29, 2
      // Predicated region
      $region33: #{tpu_custom_call.1} parent=5 // pred_check
        %p580 = pneg %p579
      $region34: #{tpu_custom_call.1} parent=5 // pred_check_branch
        %582 = sbr.rel (%p580) target = $region36
      $region35: #{tpu_custom_call.1} parent=5 // pred_region
        // Predicated region
        $region37: #{tpu_custom_call.1} parent=35 // pred_check
          %p583 = pneg %p108
        $region38: #{tpu_custom_call.1} parent=35 // pred_check_branch
          %585 = sbr.rel (%p583) target = $region40
        $region39: #{tpu_custom_call.1} parent=35 // pred_region
          %s586 = sand.u32 %s29, 1
          %s587 = scalar_lea.sflag [#allocation4], %s586
          %s588 = sand.u32 %s98, 1
          %s589 = scalar_lea.vmem [#allocation8], %s588
          %591 = vsyncadd %s587, 0
          %s592 = scalar_lea.hbm %s2, %s37
          %s594 = sshll.u32 %s592, 4
          %s595 = int_to_ptr.hbm [resolvable:$true] %s594
          %s596 = sshll.u32 %s589, 4
          %s597 = int_to_ptr.vmem [resolvable:$true] %s596
          %599 = dma.hbm_to_vmem [thread:$0]  %s595, 16, %s597, %s587
        $region40: #{tpu_custom_call.1} parent=35 // pred_fallthru
          _
        // Predicated region
        $region41: #{tpu_custom_call.1} parent=35 // pred_check
          %p600 = pneg %p134
        $region42: #{tpu_custom_call.1} parent=35 // pred_check_branch
          %602 = sbr.rel (%p600) target = $region44
        $region43: #{tpu_custom_call.1} parent=35 // pred_region
          %p603 = scmp.lt.s32.totalorder %s37, 1
          %s604 = scalar_select %p603, %s37, 1
          %s605 = scalar_lea.vmem %s3, %s604
        $region44: #{tpu_custom_call.1} parent=35 // pred_fallthru
          _
        // Predicated region
        $region45: #{tpu_custom_call.1} parent=35 // pred_check
          %p606 = pneg %p160
        $region46: #{tpu_custom_call.1} parent=35 // pred_check_branch
          %608 = sbr.rel (%p606) target = $region48
        $region47: #{tpu_custom_call.1} parent=35 // pred_region
          %s609 = sand.u32 %s29, 1
          %s610 = scalar_lea.sflag [#allocation4], %s609
          %s611 = sand.u32 %s150, 1
          %s612 = smul.addr %s611, 192
          %s613 = scalar_lea.vmem [#allocation9], %s612
          %615 = vsyncadd %s610, 0
          %s616 = smul.addr %s37, 48
          %s617 = smul.addr %s616, 4
          %s618 = scalar_lea.hbm %s4, %s617
          %s619 = sshll.u32 %s618, 4
          %s620 = int_to_ptr.hbm [resolvable:$true] %s619
          %s621 = sshll.u32 %s613, 4
          %s622 = int_to_ptr.vmem [resolvable:$true] %s621
          %627 = dma.hbm_to_vmem [thread:$0]  %s620, 3072, %s622, %s610, 192, 192, 12
        $region48: #{tpu_custom_call.1} parent=35 // pred_fallthru
          _
        // Predicated region
        $region49: #{tpu_custom_call.1} parent=35 // pred_check
          %p628 = pneg %p186
        $region50: #{tpu_custom_call.1} parent=35 // pred_check_branch
          %630 = sbr.rel (%p628) target = $region52
        $region51: #{tpu_custom_call.1} parent=35 // pred_region
          %s631 = sand.u32 %s29, 1
          %s632 = scalar_lea.sflag [#allocation4], %s631
          %s633 = sand.u32 %s176, 1
          %s634 = smul.addr %s633, 3
          %s635 = scalar_lea.vmem [#allocation10], %s634
          %637 = vsyncadd %s632, 0
          %s638 = smul.addr %s37, 3
          %s639 = scalar_lea.hbm %s5, %s638
          %s641 = sshll.u32 %s639, 4
          %s642 = int_to_ptr.hbm [resolvable:$true] %s641
          %s643 = sshll.u32 %s635, 4
          %s644 = int_to_ptr.vmem [resolvable:$true] %s643
          %646 = dma.hbm_to_vmem [thread:$0]  %s642, 48, %s644, %s632
        $region52: #{tpu_custom_call.1} parent=35 // pred_fallthru
          _
        // Predicated region
        $region53: #{tpu_custom_call.1} parent=35 // pred_check
          %p647 = pneg %p212
        $region54: #{tpu_custom_call.1} parent=35 // pred_check_branch
          %649 = sbr.rel (%p647) target = $region56
        $region55: #{tpu_custom_call.1} parent=35 // pred_region
          %s650 = sand.u32 %s29, 1
          %s651 = scalar_lea.sflag [#allocation4], %s650
          %s652 = sand.u32 %s202, 1
          %s653 = smul.addr %s652, 64
          %s654 = scalar_lea.vmem [#allocation11], %s653
          %656 = vsyncadd %s651, 0
          %s657 = smul.addr %s37, 16
          %s658 = smul.addr %s657, 4
          %s659 = scalar_lea.hbm %s6, %s658
          %s660 = sshll.u32 %s659, 4
          %s661 = int_to_ptr.hbm [resolvable:$true] %s660
          %s662 = sshll.u32 %s654, 4
          %s663 = int_to_ptr.vmem [resolvable:$true] %s662
          %668 = dma.hbm_to_vmem [thread:$0]  %s661, 1024, %s663, %s651, 64, 64, 4
        $region56: #{tpu_custom_call.1} parent=35 // pred_fallthru
          _
        // Predicated region
        $region57: #{tpu_custom_call.1} parent=35 // pred_check
          %p669 = pneg %p238
        $region58: #{tpu_custom_call.1} parent=35 // pred_check_branch
          %671 = sbr.rel (%p669) target = $region60
        $region59: #{tpu_custom_call.1} parent=35 // pred_region
          %s672 = sand.u32 %s29, 1
          %s673 = scalar_lea.sflag [#allocation4], %s672
          %s674 = sand.u32 %s228, 1
          %s675 = scalar_lea.vmem [#allocation12], %s674
          %677 = vsyncadd %s673, 0
          %s678 = scalar_lea.hbm %s7, %s37
          %s680 = sshll.u32 %s678, 4
          %s681 = int_to_ptr.hbm [resolvable:$true] %s680
          %s682 = sshll.u32 %s675, 4
          %s683 = int_to_ptr.vmem [resolvable:$true] %s682
          %685 = dma.hbm_to_vmem [thread:$0]  %s681, 16, %s683, %s673
        $region60: #{tpu_custom_call.1} parent=35 // pred_fallthru
          _
        // Predicated region
        $region61: #{tpu_custom_call.1} parent=35 // pred_check
          %p686 = pneg %p264
        $region62: #{tpu_custom_call.1} parent=35 // pred_check_branch
          %688 = sbr.rel (%p686) target = $region64
        $region63: #{tpu_custom_call.1} parent=35 // pred_region
          %s689 = sand.u32 %s29, 1
          %s690 = scalar_lea.sflag [#allocation4], %s689
          %s691 = sand.u32 %s254, 1
          %s692 = scalar_lea.vmem [#allocation13], %s691
          %694 = vsyncadd %s690, 0
          %s695 = scalar_lea.hbm %s8, %s37
          %s697 = sshll.u32 %s695, 4
          %s698 = int_to_ptr.hbm [resolvable:$true] %s697
          %s699 = sshll.u32 %s692, 4
          %s700 = int_to_ptr.vmem [resolvable:$true] %s699
          %702 = dma.hbm_to_vmem [thread:$0]  %s698, 16, %s700, %s690
        $region64: #{tpu_custom_call.1} parent=35 // pred_fallthru
          _
        // Predicated region
        $region65: #{tpu_custom_call.1} parent=35 // pred_check
          %p703 = pneg %p290
        $region66: #{tpu_custom_call.1} parent=35 // pred_check_branch
          %705 = sbr.rel (%p703) target = $region68
        $region67: #{tpu_custom_call.1} parent=35 // pred_region
          %s706 = sand.u32 %s29, 1
          %s707 = scalar_lea.sflag [#allocation4], %s706
          %s708 = sand.u32 %s280, 1
          %s709 = scalar_lea.vmem [#allocation14], %s708
          %711 = vsyncadd %s707, 0
          %s712 = scalar_lea.hbm %s9, %s37
          %s714 = sshll.u32 %s712, 4
          %s715 = int_to_ptr.hbm [resolvable:$true] %s714
          %s716 = sshll.u32 %s709, 4
          %s717 = int_to_ptr.vmem [resolvable:$true] %s716
          %719 = dma.hbm_to_vmem [thread:$0]  %s715, 16, %s717, %s707
        $region68: #{tpu_custom_call.1} parent=35 // pred_fallthru
          _
        // Predicated region
        $region69: #{tpu_custom_call.1} parent=35 // pred_check
          %p720 = pneg %p316
        $region70: #{tpu_custom_call.1} parent=35 // pred_check_branch
          %722 = sbr.rel (%p720) target = $region72
        $region71: #{tpu_custom_call.1} parent=35 // pred_region
          %s723 = sand.u32 %s29, 1
          %s724 = scalar_lea.sflag [#allocation4], %s723
          %s725 = sand.u32 %s306, 1
          %s726 = smul.addr %s725, 256
          %s727 = scalar_lea.vmem [#allocation15], %s726
          %729 = vsyncadd %s724, 0
          %s730 = smul.addr %s37, 64
          %s731 = smul.addr %s730, 4
          %s732 = scalar_lea.hbm %s10, %s731
          %s733 = sshll.u32 %s732, 4
          %s734 = int_to_ptr.hbm [resolvable:$true] %s733
          %s735 = sshll.u32 %s727, 4
          %s736 = int_to_ptr.vmem [resolvable:$true] %s735
          %741 = dma.hbm_to_vmem [thread:$0]  %s734, 4096, %s736, %s724, 256, 256, 16
        $region72: #{tpu_custom_call.1} parent=35 // pred_fallthru
          _
        // Predicated region
        $region73: #{tpu_custom_call.1} parent=35 // pred_check
          %p742 = pneg %p342
        $region74: #{tpu_custom_call.1} parent=35 // pred_check_branch
          %744 = sbr.rel (%p742) target = $region76
        $region75: #{tpu_custom_call.1} parent=35 // pred_region
          %p745 = scmp.lt.s32.totalorder %s37, 1
          %s746 = scalar_select %p745, %s37, 1
          %s747 = smul.addr %s746, 4
          %s748 = scalar_lea.vmem %s11, %s747
        $region76: #{tpu_custom_call.1} parent=35 // pred_fallthru
          _
        // Predicated region
        $region77: #{tpu_custom_call.1} parent=35 // pred_check
          %p749 = pneg %p368
        $region78: #{tpu_custom_call.1} parent=35 // pred_check_branch
          %751 = sbr.rel (%p749) target = $region80
        $region79: #{tpu_custom_call.1} parent=35 // pred_region
          %s752 = sand.u32 %s29, 1
          %s753 = scalar_lea.sflag [#allocation4], %s752
          %s754 = sand.u32 %s358, 1
          %s755 = smul.addr %s754, 256
          %s756 = scalar_lea.vmem [#allocation16], %s755
          %758 = vsyncadd %s753, 0
          %s759 = smul.addr %s37, 64
          %s760 = smul.addr %s759, 4
          %s761 = scalar_lea.hbm %s12, %s760
          %s762 = sshll.u32 %s761, 4
          %s763 = int_to_ptr.hbm [resolvable:$true] %s762
          %s764 = sshll.u32 %s756, 4
          %s765 = int_to_ptr.vmem [resolvable:$true] %s764
          %770 = dma.hbm_to_vmem [thread:$0]  %s763, 4096, %s765, %s753, 64, 64, 4
        $region80: #{tpu_custom_call.1} parent=35 // pred_fallthru
          _
        // Predicated region
        $region81: #{tpu_custom_call.1} parent=35 // pred_check
          %p771 = pneg %p394
        $region82: #{tpu_custom_call.1} parent=35 // pred_check_branch
          %773 = sbr.rel (%p771) target = $region84
        $region83: #{tpu_custom_call.1} parent=35 // pred_region
          %p774 = scmp.lt.s32.totalorder %s37, 1
          %s775 = scalar_select %p774, %s37, 1
          %s776 = scalar_lea.vmem %s13, %s775
        $region84: #{tpu_custom_call.1} parent=35 // pred_fallthru
          _
      $region36: #{tpu_custom_call.1} parent=5 // pred_fallthru
        _
      %p777 = scmp.le.s32.totalorder 1, %s29
      %p778 = scmp.lt.s32.totalorder %s29, 3
      %p779 = pnand %p777, %p778
      %p780 = pneg %p779
      // Predicated region
      $region85: #{tpu_custom_call.1} parent=5 // pred_check
        _
      $region86: #{tpu_custom_call.1} parent=5 // pred_check_branch
        %782 = sbr.rel (%p779) target = $region88
      $region87: #{tpu_custom_call.1} parent=5 // pred_region
        %s783 = ssub.s32 %s29, 1
        // Predicated region
        $region89: #{tpu_custom_call.1} parent=87 // pred_check
          %p784 = pneg %p67
        $region90: #{tpu_custom_call.1} parent=87 // pred_check_branch
          %786 = sbr.rel (%p784) target = $region92
        $region91: #{tpu_custom_call.1} parent=87 // pred_region
          %788 = dma.done [#allocation4], 256
        $region92: #{tpu_custom_call.1} parent=87 // pred_fallthru
          _
        // Predicated region
        $region93: #{tpu_custom_call.1} parent=87 // pred_check
          %p789 = pneg %p88
        $region94: #{tpu_custom_call.1} parent=87 // pred_check_branch
          %791 = sbr.rel (%p789) target = $region96
        $region95: #{tpu_custom_call.1} parent=87 // pred_region
          %793 = dma.done [#allocation7], 128
        $region96: #{tpu_custom_call.1} parent=87 // pred_fallthru
          _
        %s794 = sand.u32 %s34, 1
        %s795 = scalar_lea.sflag [#allocation4], %s794
        %s796 = sand.u32 %s101, 1
        %s797 = scalar_lea.vmem [#allocation8], %s796
        // Predicated region
        $region97: #{tpu_custom_call.1} parent=87 // pred_check
          %p798 = pneg %p114
        $region98: #{tpu_custom_call.1} parent=87 // pred_check_branch
          %800 = sbr.rel (%p798) target = $region100
        $region99: #{tpu_custom_call.1} parent=87 // pred_region
          %802 = dma.done %s795, 16
        $region100: #{tpu_custom_call.1} parent=87 // pred_fallthru
          _
        %s803 = sand.u32 %s34, 1
        %s804 = scalar_lea.sflag [#allocation4], %s803
        %s805 = sand.u32 %s153, 1
        %s806 = smul.addr %s805, 192
        %s807 = scalar_lea.vmem [#allocation9], %s806
        // Predicated region
        $region101: #{tpu_custom_call.1} parent=87 // pred_check
          %p808 = pneg %p166
        $region102: #{tpu_custom_call.1} parent=87 // pred_check_branch
          %810 = sbr.rel (%p808) target = $region104
        $region103: #{tpu_custom_call.1} parent=87 // pred_region
          %812 = dma.done %s804, 3072
        $region104: #{tpu_custom_call.1} parent=87 // pred_fallthru
          _
        %s813 = sand.u32 %s34, 1
        %s814 = scalar_lea.sflag [#allocation4], %s813
        %s815 = sand.u32 %s179, 1
        %s816 = smul.addr %s815, 3
        %s817 = scalar_lea.vmem [#allocation10], %s816
        // Predicated region
        $region105: #{tpu_custom_call.1} parent=87 // pred_check
          %p818 = pneg %p192
        $region106: #{tpu_custom_call.1} parent=87 // pred_check_branch
          %820 = sbr.rel (%p818) target = $region108
        $region107: #{tpu_custom_call.1} parent=87 // pred_region
          %822 = dma.done %s814, 48
        $region108: #{tpu_custom_call.1} parent=87 // pred_fallthru
          _
        %s823 = sand.u32 %s34, 1
        %s824 = scalar_lea.sflag [#allocation4], %s823
        %s825 = sand.u32 %s205, 1
        %s826 = smul.addr %s825, 64
        %s827 = scalar_lea.vmem [#allocation11], %s826
        // Predicated region
        $region109: #{tpu_custom_call.1} parent=87 // pred_check
          %p828 = pneg %p218
        $region110: #{tpu_custom_call.1} parent=87 // pred_check_branch
          %830 = sbr.rel (%p828) target = $region112
        $region111: #{tpu_custom_call.1} parent=87 // pred_region
          %832 = dma.done %s824, 1024
        $region112: #{tpu_custom_call.1} parent=87 // pred_fallthru
          _
        %s833 = sand.u32 %s34, 1
        %s834 = scalar_lea.sflag [#allocation4], %s833
        %s835 = sand.u32 %s231, 1
        %s836 = scalar_lea.vmem [#allocation12], %s835
        // Predicated region
        $region113: #{tpu_custom_call.1} parent=87 // pred_check
          %p837 = pneg %p244
        $region114: #{tpu_custom_call.1} parent=87 // pred_check_branch
          %839 = sbr.rel (%p837) target = $region116
        $region115: #{tpu_custom_call.1} parent=87 // pred_region
          %841 = dma.done %s834, 16
        $region116: #{tpu_custom_call.1} parent=87 // pred_fallthru
          _
        %s842 = sand.u32 %s34, 1
        %s843 = scalar_lea.sflag [#allocation4], %s842
        %s844 = sand.u32 %s257, 1
        %s845 = scalar_lea.vmem [#allocation13], %s844
        // Predicated region
        $region117: #{tpu_custom_call.1} parent=87 // pred_check
          %p846 = pneg %p270
        $region118: #{tpu_custom_call.1} parent=87 // pred_check_branch
          %848 = sbr.rel (%p846) target = $region120
        $region119: #{tpu_custom_call.1} parent=87 // pred_region
          %850 = dma.done %s843, 16
        $region120: #{tpu_custom_call.1} parent=87 // pred_fallthru
          _
        %s851 = sand.u32 %s34, 1
        %s852 = scalar_lea.sflag [#allocation4], %s851
        %s853 = sand.u32 %s283, 1
        %s854 = scalar_lea.vmem [#allocation14], %s853
        // Predicated region
        $region121: #{tpu_custom_call.1} parent=87 // pred_check
          %p855 = pneg %p296
        $region122: #{tpu_custom_call.1} parent=87 // pred_check_branch
          %857 = sbr.rel (%p855) target = $region124
        $region123: #{tpu_custom_call.1} parent=87 // pred_region
          %859 = dma.done %s852, 16
        $region124: #{tpu_custom_call.1} parent=87 // pred_fallthru
          _
        %s860 = sand.u32 %s34, 1
        %s861 = scalar_lea.sflag [#allocation4], %s860
        %s862 = sand.u32 %s309, 1
        %s863 = smul.addr %s862, 256
        %s864 = scalar_lea.vmem [#allocation15], %s863
        // Predicated region
        $region125: #{tpu_custom_call.1} parent=87 // pred_check
          %p865 = pneg %p322
        $region126: #{tpu_custom_call.1} parent=87 // pred_check_branch
          %867 = sbr.rel (%p865) target = $region128
        $region127: #{tpu_custom_call.1} parent=87 // pred_region
          %869 = dma.done %s861, 4096
        $region128: #{tpu_custom_call.1} parent=87 // pred_fallthru
          _
        %s870 = sand.u32 %s34, 1
        %s871 = scalar_lea.sflag [#allocation4], %s870
        %s872 = sand.u32 %s361, 1
        %s873 = smul.addr %s872, 256
        %s874 = scalar_lea.vmem [#allocation16], %s873
        // Predicated region
        $region129: #{tpu_custom_call.1} parent=87 // pred_check
          %p875 = pneg %p374
        $region130: #{tpu_custom_call.1} parent=87 // pred_check_branch
          %877 = sbr.rel (%p875) target = $region132
        $region131: #{tpu_custom_call.1} parent=87 // pred_region
          %879 = dma.done %s871, 4096
        $region132: #{tpu_custom_call.1} parent=87 // pred_fallthru
          _
        // Predicated region
        $region133: #{tpu_custom_call.1} parent=87 // pred_check
          %p880 = pneg %p463
        $region134: #{tpu_custom_call.1} parent=87 // pred_check_branch
          %882 = sbr.rel (%p880) target = $region136
        $region135: #{tpu_custom_call.1} parent=87 // pred_region
          %884 = dma.done [#allocation7], 1024
        $region136: #{tpu_custom_call.1} parent=87 // pred_fallthru
          _
        %p885 = pneg %p67
        %p886 = pneg %p64
        %p887 = pneg %p88
        %p888 = pneg %p85
        %s889 = sand.u32 %s34, 1
        %s890 = scalar_lea.sflag [#allocation4], %s889
        %s891 = sand.u32 %s101, 1
        %s892 = scalar_lea.vmem [#allocation8], %s891
        %p893 = pneg %p114
        %p894 = pneg %p111
        %p895 = scmp.lt.s32.totalorder %s39, 1
        %s896 = scalar_select %p895, %s39, 1
        %s897 = scalar_lea.vmem %s3, %s896
        %p898 = pneg %p140
        %p899 = pneg %p137
        %s900 = sand.u32 %s34, 1
        %s901 = scalar_lea.sflag [#allocation4], %s900
        %s902 = sand.u32 %s153, 1
        %s903 = smul.addr %s902, 192
        %s904 = scalar_lea.vmem [#allocation9], %s903
        %p905 = pneg %p166
        %p906 = pneg %p163
        %s907 = sand.u32 %s34, 1
        %s908 = scalar_lea.sflag [#allocation4], %s907
        %s909 = sand.u32 %s179, 1
        %s910 = smul.addr %s909, 3
        %s911 = scalar_lea.vmem [#allocation10], %s910
        %p912 = pneg %p192
        %p913 = pneg %p189
        %s914 = sand.u32 %s34, 1
        %s915 = scalar_lea.sflag [#allocation4], %s914
        %s916 = sand.u32 %s205, 1
        %s917 = smul.addr %s916, 64
        %s918 = scalar_lea.vmem [#allocation11], %s917
        %p919 = pneg %p218
        %p920 = pneg %p215
        %s921 = sand.u32 %s34, 1
        %s922 = scalar_lea.sflag [#allocation4], %s921
        %s923 = sand.u32 %s231, 1
        %s924 = scalar_lea.vmem [#allocation12], %s923
        %p925 = pneg %p244
        %p926 = pneg %p241
        %s927 = sand.u32 %s34, 1
        %s928 = scalar_lea.sflag [#allocation4], %s927
        %s929 = sand.u32 %s257, 1
        %s930 = scalar_lea.vmem [#allocation13], %s929
        %p931 = pneg %p270
        %p932 = pneg %p267
        %s933 = sand.u32 %s34, 1
        %s934 = scalar_lea.sflag [#allocation4], %s933
        %s935 = sand.u32 %s283, 1
        %s936 = scalar_lea.vmem [#allocation14], %s935
        %p937 = pneg %p296
        %p938 = pneg %p293
        %s939 = sand.u32 %s34, 1
        %s940 = scalar_lea.sflag [#allocation4], %s939
        %s941 = sand.u32 %s309, 1
        %s942 = smul.addr %s941, 256
        %s943 = scalar_lea.vmem [#allocation15], %s942
        %p944 = pneg %p322
        %p945 = pneg %p319
        %p946 = scmp.lt.s32.totalorder %s39, 1
        %s947 = scalar_select %p946, %s39, 1
        %s948 = smul.addr %s947, 4
        %s949 = scalar_lea.vmem %s11, %s948
        %p950 = pneg %p348
        %p951 = pneg %p345
        %s952 = sand.u32 %s34, 1
        %s953 = scalar_lea.sflag [#allocation4], %s952
        %s954 = sand.u32 %s361, 1
        %s955 = smul.addr %s954, 256
        %s956 = scalar_lea.vmem [#allocation16], %s955
        %p957 = pneg %p374
        %p958 = pneg %p371
        %p959 = scmp.lt.s32.totalorder %s39, 1
        %s960 = scalar_select %p959, %s39, 1
        %s961 = scalar_lea.vmem %s13, %s960
        %p962 = pneg %p400
        %p963 = pneg %p397
        %p964 = pneg %p421
        %p965 = pneg %p418
        %p966 = pneg %p442
        %p967 = pneg %p439
        %p968 = pneg %p463
        %p969 = pneg %p460
        %p970 = pneg %p489
        %p971 = pneg %p486
        %p972 = pneg %p515
        %p973 = pneg %p512
        %s974 = smul.u32 2, %s38
        %p975 = scmp.lt.s32.totalorder %s39, 1
        %s976 = scalar_select %p975, %s39, 1
        %s977 = scalar_lea.vmem %s3, %s976
        %p978 = scmp.lt.s32.totalorder %s39, 1
        %s979 = scalar_select %p978, %s39, 1
        %s980 = smul.addr %s979, 4
        %s981 = scalar_lea.vmem %s11, %s980
        %p982 = scmp.lt.s32.totalorder %s39, 1
        %s983 = scalar_select %p982, %s39, 1
        %s984 = scalar_lea.vmem %s13, %s983
        %s985 = smul.u32 2, %s38
        %s986 = smul.u32 2, %s38
        %p988 = scmp.eq.s32.totalorder %s39, 0
        // Predicated region
        $region137: #{tpu_custom_call.1} parent=87 // pred_check
          %p989 = pneg %p988
        $region138: #{tpu_custom_call.1} parent=87 // pred_check_branch
          %991 = sbr.rel (%p989) target = $region140
        $region139: #{tpu_custom_call.1} parent=87 // pred_region
          %v992 = vld [vmem:[#allocation3] sm:$0xff]
          %v993 = vld [vmem:[#allocation3 + $0x8] sm:$0xff]
          %994 = vst [vmem:[#allocation2] sm:$0xff] %v992
          %995 = vst [vmem:[#allocation2 + $0x8] sm:$0xff] %v993
        $region140: #{tpu_custom_call.1} parent=87 // pred_fallthru
          _
        %v996 = vld [vmem:[#allocation2] sm:$0xff]
        %v997 = vld [vmem:[#allocation2 + $0x8] sm:$0xff]
        %v998 = vld [vmem:[%s797] sm:$0x1]
        %v999 = vld [vmem:[%s977] sm:$0x1]
        %1000 = vadd.xlane.f32.xlu0 %v996
        %v1001 = vpop.xlane.xlu0 %1000
        %1002 = vadd.xlane.f32.xlu0 %v997
        %v1003 = vpop.xlane.xlu0 %1002
        %v1004 = vrcp.pop 128.0
        %v1005 = vmul.f32 128.0, %v1004
        %v1006 = vsub.f32 1.0, %v1005
        %v1007 = vmul.f32 %v1004, %v1006
        %v1008 = vadd.f32 %v1004, %v1007
        %vm1009 = vweird.f32 %v1004
        %v1010 = vsel %vm1009, %v1004, %v1008
        %v1011 = vmul.f32 %v1001, %v1010
        %v1012 = vmul.f32 %v1003, %v1010
        %v1013 = vsub.f32 %v996, %v1011
        %v1014 = vsub.f32 %v997, %v1012
        %v1015 = vmul.f32 %v1013, %v1013
        %v1016 = vmul.f32 %v1014, %v1014
        %1017 = vadd.xlane.f32.xlu0 %v1015
        %v1018 = vpop.xlane.xlu0 %1017
        %1019 = vadd.xlane.f32.xlu0 %v1016
        %v1020 = vpop.xlane.xlu0 %1019
        %v1021 = vmul.f32 %v1018, %v1010
        %v1022 = vmul.f32 %v1020, %v1010
        %v1023 = vadd.f32 %v1021, 1e-05
        %v1024 = vadd.f32 %v1022, 1e-05
        %v1025 = vrsqrt.pop %v1023
        %v1026 = vmul.f32 %v1025, %v1023
        %v1027 = vmul.f32 %v1026, %v1025
        %v1028 = vmul.f32 0.5, %v1027
        %v1029 = vsub.f32 1.5, %v1028
        %v1030 = vmul.f32 %v1025, %v1029
        %vm1031 = vweird.f32 %v1023
        %vm1032 = vweird.f32 %v1025
        %vm1033 = vmor %vm1031, %vm1032
        %v1034 = vsel %vm1033, %v1025, %v1030
        %v1035 = vrsqrt.pop %v1024
        %v1036 = vmul.f32 %v1035, %v1024
        %v1037 = vmul.f32 %v1036, %v1035
        %v1038 = vmul.f32 0.5, %v1037
        %v1039 = vsub.f32 1.5, %v1038
        %v1040 = vmul.f32 %v1035, %v1039
        %vm1041 = vweird.f32 %v1024
        %vm1042 = vweird.f32 %v1035
        %vm1043 = vmor %vm1041, %vm1042
        %v1044 = vsel %vm1043, %v1035, %v1040
        %v1045 = vmul.f32 %v1013, %v1034
        %v1046 = vmul.f32 %v1014, %v1044
        %v1048 = vperm.slane %v998, 0
        %v1050 = vmul.f32 %v1045, %v1048
        %v1051 = vmul.f32 %v1046, %v1048
        %v1053 = vperm.slane %v999, 0
        %v1055 = vadd.f32 %v1050, %v1053
        %v1056 = vadd.f32 %v1051, %v1053
        %v1057 = vpack.c.bf16 %v1056, %v1055
        %v1058 = vld [vmem:[%s807] sm:$0xff]
        %v1059 = vld [vmem:[%s807 + $0x8] sm:$0xf]
        %v1060 = vld [vmem:[%s807 + $0xc] sm:$0xff]
        %v1061 = vld [vmem:[%s807 + $0x14] sm:$0xf]
        %v1062 = vld [vmem:[%s807 + $0x18] sm:$0xff]
        %v1063 = vld [vmem:[%s807 + $0x20] sm:$0xf]
        %v1064 = vld [vmem:[%s807 + $0x24] sm:$0xff]
        %v1065 = vld [vmem:[%s807 + $0x2c] sm:$0xf]
        %v1066 = vld [vmem:[%s807 + $0x30] sm:$0xff]
        %v1067 = vld [vmem:[%s807 + $0x38] sm:$0xf]
        %v1068 = vld [vmem:[%s807 + $0x3c] sm:$0xff]
        %v1069 = vld [vmem:[%s807 + $0x44] sm:$0xf]
        %v1070 = vld [vmem:[%s807 + $0x48] sm:$0xff]
        %v1071 = vld [vmem:[%s807 + $0x50] sm:$0xf]
        %v1072 = vld [vmem:[%s807 + $0x54] sm:$0xff]
        %v1073 = vld [vmem:[%s807 + $0x5c] sm:$0xf]
        %v1074 = vld [vmem:[%s807 + $0x60] sm:$0xff]
        %v1075 = vld [vmem:[%s807 + $0x68] sm:$0xf]
        %v1076 = vld [vmem:[%s807 + $0x6c] sm:$0xff]
        %v1077 = vld [vmem:[%s807 + $0x74] sm:$0xf]
        %v1078 = vld [vmem:[%s807 + $0x78] sm:$0xff]
        %v1079 = vld [vmem:[%s807 + $0x80] sm:$0xf]
        %v1080 = vld [vmem:[%s807 + $0x84] sm:$0xff]
        %v1081 = vld [vmem:[%s807 + $0x8c] sm:$0xf]
        %v1082 = vld [vmem:[%s807 + $0x90] sm:$0xff]
        %v1083 = vld [vmem:[%s807 + $0x98] sm:$0xf]
        %v1084 = vld [vmem:[%s807 + $0x9c] sm:$0xff]
        %v1085 = vld [vmem:[%s807 + $0xa4] sm:$0xf]
        %v1086 = vld [vmem:[%s807 + $0xa8] sm:$0xff]
        %v1087 = vld [vmem:[%s807 + $0xb0] sm:$0xf]
        %v1088 = vld [vmem:[%s807 + $0xb4] sm:$0xff]
        %v1089 = vld [vmem:[%s807 + $0xbc] sm:$0xf]
        %v1090 = vld [vmem:[%s817] sm:$0x7]
        %v1092 = vperm.slane %v1090, 0
        %v1093 = vperm.slane %v1090, 1
        %v1094 = vperm.slane %v1090, 2
        %v1130 = vunpack.c.l.b16 %v1058
        %v1131 = vunpack.c.h.b16 %v1058
        %v1132 = vunpack.c.l.b16 %v1059
        %v1133 = vunpack.c.l.b16 %v1060
        %v1134 = vunpack.c.h.b16 %v1060
        %v1135 = vunpack.c.l.b16 %v1061
        %v1136 = vunpack.c.l.b16 %v1062
        %v1137 = vunpack.c.h.b16 %v1062
        %v1138 = vunpack.c.l.b16 %v1063
        %v1139 = vunpack.c.l.b16 %v1064
        %v1140 = vunpack.c.h.b16 %v1064
        %v1141 = vunpack.c.l.b16 %v1065
        %v1142 = vunpack.c.l.b16 %v1066
        %v1143 = vunpack.c.h.b16 %v1066
        %v1144 = vunpack.c.l.b16 %v1067
        %v1145 = vunpack.c.l.b16 %v1068
        %v1146 = vunpack.c.h.b16 %v1068
        %v1147 = vunpack.c.l.b16 %v1069
        %v1148 = vunpack.c.l.b16 %v1070
        %v1149 = vunpack.c.h.b16 %v1070
        %v1150 = vunpack.c.l.b16 %v1071
        %v1151 = vunpack.c.l.b16 %v1072
        %v1152 = vunpack.c.h.b16 %v1072
        %v1153 = vunpack.c.l.b16 %v1073
        %v1154 = vunpack.c.l.b16 %v1074
        %v1155 = vunpack.c.h.b16 %v1074
        %v1156 = vunpack.c.l.b16 %v1075
        %v1157 = vunpack.c.l.b16 %v1076
        %v1158 = vunpack.c.h.b16 %v1076
        %v1159 = vunpack.c.l.b16 %v1077
        %v1160 = vunpack.c.l.b16 %v1078
        %v1161 = vunpack.c.h.b16 %v1078
        %v1162 = vunpack.c.l.b16 %v1079
        %v1163 = vunpack.c.l.b16 %v1080
        %v1164 = vunpack.c.h.b16 %v1080
        %v1165 = vunpack.c.l.b16 %v1081
        %v1166 = vunpack.c.l.b16 %v1082
        %v1167 = vunpack.c.h.b16 %v1082
        %v1168 = vunpack.c.l.b16 %v1083
        %v1169 = vunpack.c.l.b16 %v1084
        %v1170 = vunpack.c.h.b16 %v1084
        %v1171 = vunpack.c.l.b16 %v1085
        %v1172 = vunpack.c.l.b16 %v1086
        %v1173 = vunpack.c.h.b16 %v1086
        %v1174 = vunpack.c.l.b16 %v1087
        %v1175 = vunpack.c.l.b16 %v1088
        %v1176 = vunpack.c.h.b16 %v1088
        %v1177 = vunpack.c.l.b16 %v1089
        %v1178 = vpack.c.b16 %v1133, %v1130
        %v1179 = vpack.c.b16 %v1134, %v1131
        %v1180 = vpack.c.b16 %v1135, %v1132
        %v1181 = vpack.c.b16 %v1139, %v1136
        %v1182 = vpack.c.b16 %v1140, %v1137
        %v1183 = vpack.c.b16 %v1141, %v1138
        %v1184 = vpack.c.b16 %v1145, %v1142
        %v1185 = vpack.c.b16 %v1146, %v1143
        %v1186 = vpack.c.b16 %v1147, %v1144
        %v1187 = vpack.c.b16 %v1151, %v1148
        %v1188 = vpack.c.b16 %v1152, %v1149
        %v1189 = vpack.c.b16 %v1153, %v1150
        %v1190 = vpack.c.b16 %v1157, %v1154
        %v1191 = vpack.c.b16 %v1158, %v1155
        %v1192 = vpack.c.b16 %v1159, %v1156
        %v1193 = vpack.c.b16 %v1163, %v1160
        %v1194 = vpack.c.b16 %v1164, %v1161
        %v1195 = vpack.c.b16 %v1165, %v1162
        %v1196 = vpack.c.b16 %v1169, %v1166
        %v1197 = vpack.c.b16 %v1170, %v1167
        %v1198 = vpack.c.b16 %v1171, %v1168
        %v1199 = vpack.c.b16 %v1175, %v1172
        %v1200 = vpack.c.b16 %v1176, %v1173
        %v1201 = vpack.c.b16 %v1177, %v1174
        %1226 = vmatpush.bf16.msra.mxu0 %v1199
        %1227 = vmatpush.bf16.msra.mxu0 %v1196
        %1228 = vmatpush.bf16.msra.mxu0 %v1193
        %1229 = vmatpush.bf16.msra.mxu0 %v1190
        %1230 = vmatpush.bf16.msra.mxu0 %v1187
        %1231 = vmatpush.bf16.msra.mxu0 %v1184
        %1232 = vmatpush.bf16.msra.mxu0 %v1181
        %1233 = vmatpush.bf16.msra.mxu0 %v1178
        %1234 = vmatmul.bf16.gmra.mxu0 %v1057
        %v1235 = vpop.f32.mrf.mxu0
        %v1236 = vadd.f32 %v1092, %v1235
        %v1237 = vpop.f32.mrf.mxu0
        %v1238 = vadd.f32 %v1092, %v1237
        %1239 = vdwg.mxu0
        %1240 = vmatpush.bf16.msra.mxu0 %v1200
        %1241 = vmatpush.bf16.msra.mxu0 %v1197
        %1242 = vmatpush.bf16.msra.mxu0 %v1194
        %1243 = vmatpush.bf16.msra.mxu0 %v1191
        %1244 = vmatpush.bf16.msra.mxu0 %v1188
        %1245 = vmatpush.bf16.msra.mxu0 %v1185
        %1246 = vmatpush.bf16.msra.mxu0 %v1182
        %1247 = vmatpush.bf16.msra.mxu0 %v1179
        %1248 = vmatmul.bf16.gmra.mxu0 %v1057
        %v1249 = vpop.f32.mrf.mxu0
        %v1250 = vadd.f32 %v1093, %v1249
        %v1251 = vpop.f32.mrf.mxu0
        %v1252 = vadd.f32 %v1093, %v1251
        %1253 = vdwg.mxu0
        %1254 = vmatpush.bf16.msra.mxu0 %v1201
        %1255 = vmatpush.bf16.msra.mxu0 %v1198
        %1256 = vmatpush.bf16.msra.mxu0 %v1195
        %1257 = vmatpush.bf16.msra.mxu0 %v1192
        %1258 = vmatpush.bf16.msra.mxu0 %v1189
        %1259 = vmatpush.bf16.msra.mxu0 %v1186
        %1260 = vmatpush.bf16.msra.mxu0 %v1183
        %1261 = vmatpush.bf16.msra.mxu0 %v1180
        %1262 = vmatmul.bf16.gmra.mxu0 %v1057
        %v1263 = vpop.f32.mrf.mxu0
        %v1264 = vadd.f32 %v1094, %v1263
        %v1265 = vpop.f32.mrf.mxu0
        %v1266 = vadd.f32 %v1094, %v1265
        %1267 = vdwg.mxu0
        %v1268 = vpack.c.bf16 %v1250, %v1236
        %v1269 = vpack.c.bf16 %v1264, %v1264
        %v1270 = vpack.c.bf16 %v1252, %v1238
        %v1271 = vpack.c.bf16 %v1266, %v1266
        %v1273 = vrot.slane %v1268, 4
        %vm1274 = vcmask 261120
        %v1276 = vsel %vm1274, %v1268, 0
        %v1279 = vsel %vm1274, %v1273, 0
        %1281 = vmatpush.bf16.xpose.msra.mxu0 0
        %1282 = vmatpush.bf16.xpose.msra.mxu0 0
        %1283 = vmatpush.bf16.xpose.msra.mxu0 0
        %1284 = vmatpush.bf16.xpose.msra.mxu0 0
        %1285 = vmatpush.bf16.xpose.msra.mxu0 0
        %1286 = vmatpush.bf16.xpose.msra.mxu0 0
        %1287 = vmatpush.bf16.xpose.msra.mxu0 0
        %1288 = vmatpush.bf16.xpose.msra.mxu0 %v1279
        %1289 = vmatmul.bf16.gmra.mxu0 %v1276
        %v1290 = vpop.f32.mrf.mxu0
        %v1291 = vadd.f32 0.0, %v1290
        %v1292 = vpop.f32.mrf.mxu0
        %1293 = vdwg.mxu0
        %v1295 = vrot.slane %v1270, 4
        %v1297 = vsel %vm1274, %v1270, 0
        %v1300 = vsel %vm1274, %v1295, 0
        %1302 = vmatpush.bf16.xpose.msra.mxu0 0
        %1303 = vmatpush.bf16.xpose.msra.mxu0 0
        %1304 = vmatpush.bf16.xpose.msra.mxu0 0
        %1305 = vmatpush.bf16.xpose.msra.mxu0 0
        %1306 = vmatpush.bf16.xpose.msra.mxu0 0
        %1307 = vmatpush.bf16.xpose.msra.mxu0 0
        %1308 = vmatpush.bf16.xpose.msra.mxu0 0
        %1309 = vmatpush.bf16.xpose.msra.mxu0 %v1300
        %1310 = vmatmul.bf16.gmra.mxu0 %v1297
        %v1311 = vpop.f32.mrf.mxu0
        %v1312 = vadd.f32 0.0, %v1311
        %v1313 = vpop.f32.mrf.mxu0
        %1314 = vdwg.mxu0
        %v1315 = vmul.f32 %v1291, 0.17677669
        %v1316 = vmul.f32 %v1312, 0.17677669
        %v1317 = vld [vmem:[#allocation6] sm:$0xff]
        %v1318 = vadd.f32 %v1315, %v1317
        %v1319 = vadd.f32 %v1316, %v1317
        %vm1320 = vcmask 64512
        %v1321 = vsel %vm1320, %v1318, -inf
        %1322 = vmax.xlane.f32.xlu0 %v1321
        %v1323 = vpop.xlane.xlu0 %1322
        %v1324 = vsel %vm1320, %v1319, -inf
        %1325 = vmax.xlane.f32.xlu0 %v1324
        %v1326 = vpop.xlane.xlu0 %1325
        %v1327 = vsub.f32 %v1318, %v1323
        %v1328 = vsub.f32 %v1319, %v1326
        %v1329 = vmul.f32 %v1327, 1.442695
        %v1330 = vpow.pop %v1329
        %v1331 = vmul.f32 %v1328, 1.442695
        %v1332 = vpow.pop %v1331
        %v1333 = vsel %vm1320, %v1330, 0.0
        %1334 = vadd.xlane.f32.xlu0 %v1333
        %v1335 = vpop.xlane.xlu0 %1334
        %v1336 = vsel %vm1320, %v1332, 0.0
        %1337 = vadd.xlane.f32.xlu0 %v1336
        %v1338 = vpop.xlane.xlu0 %1337
        %v1339 = vrcp.pop %v1335
        %v1340 = vrcp.pop %v1338
        %v1341 = vmul.f32 %v1330, %v1339
        %v1342 = vmul.f32 %v1332, %v1340
        %v1343 = vpack.c.bf16 %v1341, %v1341
        %v1344 = vpack.c.bf16 %v1342, %v1342
        %v1346 = vsel %vm1320, %v1343, 0
        %vm1348 = vcmask 1043456
        %v1350 = vsel %vm1348, %v1269, 0
        %1352 = vmatpush.bf16.msra.mxu0 0
        %1353 = vmatpush.bf16.msra.mxu0 0
        %1354 = vmatpush.bf16.msra.mxu0 0
        %1355 = vmatpush.bf16.msra.mxu0 0
        %1356 = vmatpush.bf16.msra.mxu0 0
        %1357 = vmatpush.bf16.msra.mxu0 0
        %1358 = vmatpush.bf16.msra.mxu0 0
        %1359 = vmatpush.bf16.msra.mxu0 %v1350
        %1360 = vmatmul.bf16.gmra.mxu0 %v1346
        %v1361 = vpop.f32.mrf.mxu0
        %v1362 = vadd.f32 0.0, %v1361
        %v1363 = vpop.f32.mrf.mxu0
        %1364 = vdwg.mxu0
        %v1366 = vsel %vm1320, %v1344, 0
        %v1369 = vsel %vm1348, %v1271, 0
        %1371 = vmatpush.bf16.msra.mxu0 0
        %1372 = vmatpush.bf16.msra.mxu0 0
        %1373 = vmatpush.bf16.msra.mxu0 0
        %1374 = vmatpush.bf16.msra.mxu0 0
        %1375 = vmatpush.bf16.msra.mxu0 0
        %1376 = vmatpush.bf16.msra.mxu0 0
        %1377 = vmatpush.bf16.msra.mxu0 0
        %1378 = vmatpush.bf16.msra.mxu0 %v1369
        %1379 = vmatmul.bf16.gmra.mxu0 %v1366
        %v1380 = vpop.f32.mrf.mxu0
        %v1381 = vadd.f32 0.0, %v1380
        %v1382 = vpop.f32.mrf.mxu0
        %1383 = vdwg.mxu0
        %1384 = vrot.lane.b32.xlu0 %v1268, 96
        %v1385 = vpop.permute.xlu0 %1384
        %v1386 = vrot.slane %v1385, 4
        %v1387 = vunpack.c.l.b16 %v1268
        %v1388 = vpack.c.b16 %v1387, %v1387
        %1389 = vrot.lane.b32.xlu0 %v1388, 96
        %v1390 = vpop.permute.xlu0 %1389
        %v1392 = vsel %vm1274, %v1390, 0
        %v1395 = vsel %vm1274, %v1386, 0
        %1397 = vmatpush.bf16.xpose.msra.mxu0 0
        %1398 = vmatpush.bf16.xpose.msra.mxu0 0
        %1399 = vmatpush.bf16.xpose.msra.mxu0 0
        %1400 = vmatpush.bf16.xpose.msra.mxu0 0
        %1401 = vmatpush.bf16.xpose.msra.mxu0 0
        %1402 = vmatpush.bf16.xpose.msra.mxu0 0
        %1403 = vmatpush.bf16.xpose.msra.mxu0 0
        %1404 = vmatpush.bf16.xpose.msra.mxu0 %v1395
        %1405 = vmatmul.bf16.gmra.mxu0 %v1392
        %v1406 = vpop.f32.mrf.mxu0
        %v1407 = vadd.f32 0.0, %v1406
        %v1408 = vpop.f32.mrf.mxu0
        %1409 = vdwg.mxu0
        %1410 = vrot.lane.b32.xlu0 %v1270, 96
        %v1411 = vpop.permute.xlu0 %1410
        %v1412 = vrot.slane %v1411, 4
        %v1413 = vunpack.c.l.b16 %v1270
        %v1414 = vpack.c.b16 %v1413, %v1413
        %1415 = vrot.lane.b32.xlu0 %v1414, 96
        %v1416 = vpop.permute.xlu0 %1415
        %v1418 = vsel %vm1274, %v1416, 0
        %v1421 = vsel %vm1274, %v1412, 0
        %1423 = vmatpush.bf16.xpose.msra.mxu0 0
        %1424 = vmatpush.bf16.xpose.msra.mxu0 0
        %1425 = vmatpush.bf16.xpose.msra.mxu0 0
        %1426 = vmatpush.bf16.xpose.msra.mxu0 0
        %1427 = vmatpush.bf16.xpose.msra.mxu0 0
        %1428 = vmatpush.bf16.xpose.msra.mxu0 0
        %1429 = vmatpush.bf16.xpose.msra.mxu0 0
        %1430 = vmatpush.bf16.xpose.msra.mxu0 %v1421
        %1431 = vmatmul.bf16.gmra.mxu0 %v1418
        %v1432 = vpop.f32.mrf.mxu0
        %v1433 = vadd.f32 0.0, %v1432
        %v1434 = vpop.f32.mrf.mxu0
        %1435 = vdwg.mxu0
        %v1436 = vmul.f32 %v1407, 0.17677669
        %v1437 = vmul.f32 %v1433, 0.17677669
        %v1438 = vld [vmem:[#allocation6] sm:$0xff]
        %v1439 = vadd.f32 %v1436, %v1438
        %v1440 = vadd.f32 %v1437, %v1438
        %v1441 = vsel %vm1320, %v1439, -inf
        %1442 = vmax.xlane.f32.xlu0 %v1441
        %v1443 = vpop.xlane.xlu0 %1442
        %v1444 = vsel %vm1320, %v1440, -inf
        %1445 = vmax.xlane.f32.xlu0 %v1444
        %v1446 = vpop.xlane.xlu0 %1445
        %v1447 = vsub.f32 %v1439, %v1443
        %v1448 = vsub.f32 %v1440, %v1446
        %v1449 = vmul.f32 %v1447, 1.442695
        %v1450 = vpow.pop %v1449
        %v1451 = vmul.f32 %v1448, 1.442695
        %v1452 = vpow.pop %v1451
        %v1453 = vsel %vm1320, %v1450, 0.0
        %1454 = vadd.xlane.f32.xlu0 %v1453
        %v1455 = vpop.xlane.xlu0 %1454
        %v1456 = vsel %vm1320, %v1452, 0.0
        %1457 = vadd.xlane.f32.xlu0 %v1456
        %v1458 = vpop.xlane.xlu0 %1457
        %v1459 = vrcp.pop %v1455
        %v1460 = vrcp.pop %v1458
        %v1461 = vmul.f32 %v1450, %v1459
        %v1462 = vmul.f32 %v1452, %v1460
        %v1463 = vpack.c.bf16 %v1461, %v1461
        %v1464 = vpack.c.bf16 %v1462, %v1462
        %v1466 = vunpack.c.l.b16 %v1269
        %v1467 = vpack.c.b16 %v1466, %v1466
        %1468 = vrot.lane.b32.xlu0 %v1467, 96
        %v1469 = vpop.permute.xlu0 %1468
        %v1471 = vsel %vm1320, %v1463, 0
        %v1474 = vsel %vm1348, %v1469, 0
        %1476 = vmatpush.bf16.msra.mxu0 0
        %1477 = vmatpush.bf16.msra.mxu0 0
        %1478 = vmatpush.bf16.msra.mxu0 0
        %1479 = vmatpush.bf16.msra.mxu0 0
        %1480 = vmatpush.bf16.msra.mxu0 0
        %1481 = vmatpush.bf16.msra.mxu0 0
        %1482 = vmatpush.bf16.msra.mxu0 0
        %1483 = vmatpush.bf16.msra.mxu0 %v1474
        %1484 = vmatmul.bf16.gmra.mxu0 %v1471
        %v1485 = vpop.f32.mrf.mxu0
        %v1486 = vadd.f32 0.0, %v1485
        %v1487 = vpop.f32.mrf.mxu0
        %1488 = vdwg.mxu0
        %v1490 = vunpack.c.l.b16 %v1271
        %v1491 = vpack.c.b16 %v1490, %v1490
        %1492 = vrot.lane.b32.xlu0 %v1491, 96
        %v1493 = vpop.permute.xlu0 %1492
        %v1495 = vsel %vm1320, %v1464, 0
        %v1498 = vsel %vm1348, %v1493, 0
        %1500 = vmatpush.bf16.msra.mxu0 0
        %1501 = vmatpush.bf16.msra.mxu0 0
        %1502 = vmatpush.bf16.msra.mxu0 0
        %1503 = vmatpush.bf16.msra.mxu0 0
        %1504 = vmatpush.bf16.msra.mxu0 0
        %1505 = vmatpush.bf16.msra.mxu0 0
        %1506 = vmatpush.bf16.msra.mxu0 0
        %1507 = vmatpush.bf16.msra.mxu0 %v1498
        %1508 = vmatmul.bf16.gmra.mxu0 %v1495
        %v1509 = vpop.f32.mrf.mxu0
        %v1510 = vadd.f32 0.0, %v1509
        %v1511 = vpop.f32.mrf.mxu0
        %1512 = vdwg.mxu0
        %1513 = vrot.lane.b32.xlu0 %v1268, 64
        %v1514 = vpop.permute.xlu0 %1513
        %v1515 = vrot.slane %v1514, 4
        %1516 = vrot.lane.b32.xlu0 %v1388, 64
        %v1517 = vpop.permute.xlu0 %1516
        %v1519 = vsel %vm1274, %v1517, 0
        %v1522 = vsel %vm1274, %v1515, 0
        %1524 = vmatpush.bf16.xpose.msra.mxu0 0
        %1525 = vmatpush.bf16.xpose.msra.mxu0 0
        %1526 = vmatpush.bf16.xpose.msra.mxu0 0
        %1527 = vmatpush.bf16.xpose.msra.mxu0 0
        %1528 = vmatpush.bf16.xpose.msra.mxu0 0
        %1529 = vmatpush.bf16.xpose.msra.mxu0 0
        %1530 = vmatpush.bf16.xpose.msra.mxu0 0
        %1531 = vmatpush.bf16.xpose.msra.mxu0 %v1522
        %1532 = vmatmul.bf16.gmra.mxu0 %v1519
        %v1533 = vpop.f32.mrf.mxu0
        %v1534 = vadd.f32 0.0, %v1533
        %v1535 = vpop.f32.mrf.mxu0
        %1536 = vdwg.mxu0
        %1537 = vrot.lane.b32.xlu0 %v1270, 64
        %v1538 = vpop.permute.xlu0 %1537
        %v1539 = vrot.slane %v1538, 4
        %1540 = vrot.lane.b32.xlu0 %v1414, 64
        %v1541 = vpop.permute.xlu0 %1540
        %v1543 = vsel %vm1274, %v1541, 0
        %v1546 = vsel %vm1274, %v1539, 0
        %1548 = vmatpush.bf16.xpose.msra.mxu0 0
        %1549 = vmatpush.bf16.xpose.msra.mxu0 0
        %1550 = vmatpush.bf16.xpose.msra.mxu0 0
        %1551 = vmatpush.bf16.xpose.msra.mxu0 0
        %1552 = vmatpush.bf16.xpose.msra.mxu0 0
        %1553 = vmatpush.bf16.xpose.msra.mxu0 0
        %1554 = vmatpush.bf16.xpose.msra.mxu0 0
        %1555 = vmatpush.bf16.xpose.msra.mxu0 %v1546
        %1556 = vmatmul.bf16.gmra.mxu0 %v1543
        %v1557 = vpop.f32.mrf.mxu0
        %v1558 = vadd.f32 0.0, %v1557
        %v1559 = vpop.f32.mrf.mxu0
        %1560 = vdwg.mxu0
        %v1561 = vmul.f32 %v1534, 0.17677669
        %v1562 = vmul.f32 %v1558, 0.17677669
        %v1563 = vld [vmem:[#allocation6] sm:$0xff]
        %v1564 = vadd.f32 %v1561, %v1563
        %v1565 = vadd.f32 %v1562, %v1563
        %v1566 = vsel %vm1320, %v1564, -inf
        %1567 = vmax.xlane.f32.xlu0 %v1566
        %v1568 = vpop.xlane.xlu0 %1567
        %v1569 = vsel %vm1320, %v1565, -inf
        %1570 = vmax.xlane.f32.xlu0 %v1569
        %v1571 = vpop.xlane.xlu0 %1570
        %v1572 = vsub.f32 %v1564, %v1568
        %v1573 = vsub.f32 %v1565, %v1571
        %v1574 = vmul.f32 %v1572, 1.442695
        %v1575 = vpow.pop %v1574
        %v1576 = vmul.f32 %v1573, 1.442695
        %v1577 = vpow.pop %v1576
        %v1578 = vsel %vm1320, %v1575, 0.0
        %1579 = vadd.xlane.f32.xlu0 %v1578
        %v1580 = vpop.xlane.xlu0 %1579
        %v1581 = vsel %vm1320, %v1577, 0.0
        %1582 = vadd.xlane.f32.xlu0 %v1581
        %v1583 = vpop.xlane.xlu0 %1582
        %v1584 = vrcp.pop %v1580
        %v1585 = vrcp.pop %v1583
        %v1586 = vmul.f32 %v1575, %v1584
        %v1587 = vmul.f32 %v1577, %v1585
        %v1588 = vpack.c.bf16 %v1586, %v1586
        %v1589 = vpack.c.bf16 %v1587, %v1587
        %1590 = vrot.lane.b32.xlu0 %v1467, 64
        %v1591 = vpop.permute.xlu0 %1590
        %v1593 = vsel %vm1320, %v1588, 0
        %v1596 = vsel %vm1348, %v1591, 0
        %1598 = vmatpush.bf16.msra.mxu0 0
        %1599 = vmatpush.bf16.msra.mxu0 0
        %1600 = vmatpush.bf16.msra.mxu0 0
        %1601 = vmatpush.bf16.msra.mxu0 0
        %1602 = vmatpush.bf16.msra.mxu0 0
        %1603 = vmatpush.bf16.msra.mxu0 0
        %1604 = vmatpush.bf16.msra.mxu0 0
        %1605 = vmatpush.bf16.msra.mxu0 %v1596
        %1606 = vmatmul.bf16.gmra.mxu0 %v1593
        %v1607 = vpop.f32.mrf.mxu0
        %v1608 = vadd.f32 0.0, %v1607
        %v1609 = vpop.f32.mrf.mxu0
        %1610 = vdwg.mxu0
        %1611 = vrot.lane.b32.xlu0 %v1491, 64
        %v1612 = vpop.permute.xlu0 %1611
        %v1614 = vsel %vm1320, %v1589, 0
        %v1617 = vsel %vm1348, %v1612, 0
        %1619 = vmatpush.bf16.msra.mxu0 0
        %1620 = vmatpush.bf16.msra.mxu0 0
        %1621 = vmatpush.bf16.msra.mxu0 0
        %1622 = vmatpush.bf16.msra.mxu0 0
        %1623 = vmatpush.bf16.msra.mxu0 0
        %1624 = vmatpush.bf16.msra.mxu0 0
        %1625 = vmatpush.bf16.msra.mxu0 0
        %1626 = vmatpush.bf16.msra.mxu0 %v1617
        %1627 = vmatmul.bf16.gmra.mxu0 %v1614
        %v1628 = vpop.f32.mrf.mxu0
        %v1629 = vadd.f32 0.0, %v1628
        %v1630 = vpop.f32.mrf.mxu0
        %1631 = vdwg.mxu0
        %1632 = vrot.lane.b32.xlu0 %v1268, 32
        %v1633 = vpop.permute.xlu0 %1632
        %v1634 = vrot.slane %v1633, 4
        %1635 = vrot.lane.b32.xlu0 %v1388, 32
        %v1636 = vpop.permute.xlu0 %1635
        %v1638 = vsel %vm1274, %v1636, 0
        %v1641 = vsel %vm1274, %v1634, 0
        %1643 = vmatpush.bf16.xpose.msra.mxu0 0
        %1644 = vmatpush.bf16.xpose.msra.mxu0 0
        %1645 = vmatpush.bf16.xpose.msra.mxu0 0
        %1646 = vmatpush.bf16.xpose.msra.mxu0 0
        %1647 = vmatpush.bf16.xpose.msra.mxu0 0
        %1648 = vmatpush.bf16.xpose.msra.mxu0 0
        %1649 = vmatpush.bf16.xpose.msra.mxu0 0
        %1650 = vmatpush.bf16.xpose.msra.mxu0 %v1641
        %1651 = vmatmul.bf16.gmra.mxu0 %v1638
        %v1652 = vpop.f32.mrf.mxu0
        %v1653 = vadd.f32 0.0, %v1652
        %v1654 = vpop.f32.mrf.mxu0
        %1655 = vdwg.mxu0
        %1656 = vrot.lane.b32.xlu0 %v1270, 32
        %v1657 = vpop.permute.xlu0 %1656
        %v1658 = vrot.slane %v1657, 4
        %1659 = vrot.lane.b32.xlu0 %v1414, 32
        %v1660 = vpop.permute.xlu0 %1659
        %v1662 = vsel %vm1274, %v1660, 0
        %v1665 = vsel %vm1274, %v1658, 0
        %1667 = vmatpush.bf16.xpose.msra.mxu0 0
        %1668 = vmatpush.bf16.xpose.msra.mxu0 0
        %1669 = vmatpush.bf16.xpose.msra.mxu0 0
        %1670 = vmatpush.bf16.xpose.msra.mxu0 0
        %1671 = vmatpush.bf16.xpose.msra.mxu0 0
        %1672 = vmatpush.bf16.xpose.msra.mxu0 0
        %1673 = vmatpush.bf16.xpose.msra.mxu0 0
        %1674 = vmatpush.bf16.xpose.msra.mxu0 %v1665
        %1675 = vmatmul.bf16.gmra.mxu0 %v1662
        %v1676 = vpop.f32.mrf.mxu0
        %v1677 = vadd.f32 0.0, %v1676
        %v1678 = vpop.f32.mrf.mxu0
        %1679 = vdwg.mxu0
        %v1680 = vmul.f32 %v1653, 0.17677669
        %v1681 = vmul.f32 %v1677, 0.17677669
        %v1682 = vld [vmem:[#allocation6] sm:$0xff]
        %v1683 = vadd.f32 %v1680, %v1682
        %v1684 = vadd.f32 %v1681, %v1682
        %v1685 = vsel %vm1320, %v1683, -inf
        %1686 = vmax.xlane.f32.xlu0 %v1685
        %v1687 = vpop.xlane.xlu0 %1686
        %v1688 = vsel %vm1320, %v1684, -inf
        %1689 = vmax.xlane.f32.xlu0 %v1688
        %v1690 = vpop.xlane.xlu0 %1689
        %v1691 = vsub.f32 %v1683, %v1687
        %v1692 = vsub.f32 %v1684, %v1690
        %v1693 = vmul.f32 %v1691, 1.442695
        %v1694 = vpow.pop %v1693
        %v1695 = vmul.f32 %v1692, 1.442695
        %v1696 = vpow.pop %v1695
        %v1697 = vsel %vm1320, %v1694, 0.0
        %1698 = vadd.xlane.f32.xlu0 %v1697
        %v1699 = vpop.xlane.xlu0 %1698
        %v1700 = vsel %vm1320, %v1696, 0.0
        %1701 = vadd.xlane.f32.xlu0 %v1700
        %v1702 = vpop.xlane.xlu0 %1701
        %v1703 = vrcp.pop %v1699
        %v1704 = vrcp.pop %v1702
        %v1705 = vmul.f32 %v1694, %v1703
        %v1706 = vmul.f32 %v1696, %v1704
        %v1707 = vpack.c.bf16 %v1705, %v1705
        %v1708 = vpack.c.bf16 %v1706, %v1706
        %1709 = vrot.lane.b32.xlu0 %v1467, 32
        %v1710 = vpop.permute.xlu0 %1709
        %v1712 = vsel %vm1320, %v1707, 0
        %v1715 = vsel %vm1348, %v1710, 0
        %1717 = vmatpush.bf16.msra.mxu0 0
        %1718 = vmatpush.bf16.msra.mxu0 0
        %1719 = vmatpush.bf16.msra.mxu0 0
        %1720 = vmatpush.bf16.msra.mxu0 0
        %1721 = vmatpush.bf16.msra.mxu0 0
        %1722 = vmatpush.bf16.msra.mxu0 0
        %1723 = vmatpush.bf16.msra.mxu0 0
        %1724 = vmatpush.bf16.msra.mxu0 %v1715
        %1725 = vmatmul.bf16.gmra.mxu0 %v1712
        %v1726 = vpop.f32.mrf.mxu0
        %v1727 = vadd.f32 0.0, %v1726
        %v1728 = vpop.f32.mrf.mxu0
        %1729 = vdwg.mxu0
        %1730 = vrot.lane.b32.xlu0 %v1491, 32
        %v1731 = vpop.permute.xlu0 %1730
        %v1733 = vsel %vm1320, %v1708, 0
        %v1736 = vsel %vm1348, %v1731, 0
        %1738 = vmatpush.bf16.msra.mxu0 0
        %1739 = vmatpush.bf16.msra.mxu0 0
        %1740 = vmatpush.bf16.msra.mxu0 0
        %1741 = vmatpush.bf16.msra.mxu0 0
        %1742 = vmatpush.bf16.msra.mxu0 0
        %1743 = vmatpush.bf16.msra.mxu0 0
        %1744 = vmatpush.bf16.msra.mxu0 0
        %1745 = vmatpush.bf16.msra.mxu0 %v1736
        %1746 = vmatmul.bf16.gmra.mxu0 %v1733
        %v1747 = vpop.f32.mrf.mxu0
        %v1748 = vadd.f32 0.0, %v1747
        %v1749 = vpop.f32.mrf.mxu0
        %1750 = vdwg.mxu0
        %1753 = vrot.lane.b32.xlu0 %v1486, 32
        %v1754 = vpop.permute.xlu0 %1753
        %1755 = vrot.lane.b32.xlu0 %v1510, 32
        %v1756 = vpop.permute.xlu0 %1755
        %1761 = vrot.lane.b32.xlu0 %v1608, 64
        %v1762 = vpop.permute.xlu0 %1761
        %1763 = vrot.lane.b32.xlu0 %v1629, 64
        %v1764 = vpop.permute.xlu0 %1763
        %1769 = vrot.lane.b32.xlu0 %v1727, 96
        %v1770 = vpop.permute.xlu0 %1769
        %1771 = vrot.lane.b32.xlu0 %v1748, 96
        %v1772 = vpop.permute.xlu0 %1771
        %v1775 = vsel %vm1274, %v1362, %v1754
        %v1776 = vsel %vm1274, %v1381, %v1756
        %vm1777 = vcmask 523264
        %v1778 = vsel %vm1777, %v1775, %v1762
        %v1779 = vsel %vm1777, %v1776, %v1764
        %vm1780 = vcmask 785408
        %v1781 = vsel %vm1780, %v1778, %v1770
        %v1782 = vsel %vm1780, %v1779, %v1772
        %v1783 = vpack.c.bf16 %v1782, %v1781
        %v1784 = vld [vmem:[%s827] sm:$0xf]
        %v1785 = vld [vmem:[%s827 + $0x4] sm:$0xf]
        %v1786 = vld [vmem:[%s827 + $0x8] sm:$0xf]
        %v1787 = vld [vmem:[%s827 + $0xc] sm:$0xf]
        %v1788 = vld [vmem:[%s827 + $0x10] sm:$0xf]
        %v1789 = vld [vmem:[%s827 + $0x14] sm:$0xf]
        %v1790 = vld [vmem:[%s827 + $0x18] sm:$0xf]
        %v1791 = vld [vmem:[%s827 + $0x1c] sm:$0xf]
        %v1792 = vld [vmem:[%s827 + $0x20] sm:$0xf]
        %v1793 = vld [vmem:[%s827 + $0x24] sm:$0xf]
        %v1794 = vld [vmem:[%s827 + $0x28] sm:$0xf]
        %v1795 = vld [vmem:[%s827 + $0x2c] sm:$0xf]
        %v1796 = vld [vmem:[%s827 + $0x30] sm:$0xf]
        %v1797 = vld [vmem:[%s827 + $0x34] sm:$0xf]
        %v1798 = vld [vmem:[%s827 + $0x38] sm:$0xf]
        %v1799 = vld [vmem:[%s827 + $0x3c] sm:$0xf]
        %v1800 = vld [vmem:[%s836] sm:$0x1]
        %v1802 = vperm.slane %v1800, 0
        %v1820 = vunpack.c.l.b16 %v1784
        %v1821 = vunpack.c.l.b16 %v1785
        %v1822 = vunpack.c.l.b16 %v1786
        %v1823 = vunpack.c.l.b16 %v1787
        %v1824 = vunpack.c.l.b16 %v1788
        %v1825 = vunpack.c.l.b16 %v1789
        %v1826 = vunpack.c.l.b16 %v1790
        %v1827 = vunpack.c.l.b16 %v1791
        %v1828 = vunpack.c.l.b16 %v1792
        %v1829 = vunpack.c.l.b16 %v1793
        %v1830 = vunpack.c.l.b16 %v1794
        %v1831 = vunpack.c.l.b16 %v1795
        %v1832 = vunpack.c.l.b16 %v1796
        %v1833 = vunpack.c.l.b16 %v1797
        %v1834 = vunpack.c.l.b16 %v1798
        %v1835 = vunpack.c.l.b16 %v1799
        %v1836 = vpack.c.b16 %v1821, %v1820
        %v1837 = vpack.c.b16 %v1823, %v1822
        %v1838 = vpack.c.b16 %v1825, %v1824
        %v1839 = vpack.c.b16 %v1827, %v1826
        %v1840 = vpack.c.b16 %v1829, %v1828
        %v1841 = vpack.c.b16 %v1831, %v1830
        %v1842 = vpack.c.b16 %v1833, %v1832
        %v1843 = vpack.c.b16 %v1835, %v1834
        %1852 = vmatpush.bf16.msra.mxu0 %v1843
        %1853 = vmatpush.bf16.msra.mxu0 %v1842
        %1854 = vmatpush.bf16.msra.mxu0 %v1841
        %1855 = vmatpush.bf16.msra.mxu0 %v1840
        %1856 = vmatpush.bf16.msra.mxu0 %v1839
        %1857 = vmatpush.bf16.msra.mxu0 %v1838
        %1858 = vmatpush.bf16.msra.mxu0 %v1837
        %1859 = vmatpush.bf16.msra.mxu0 %v1836
        %1860 = vmatmul.bf16.gmra.mxu0 %v1783
        %v1861 = vpop.f32.mrf.mxu0
        %v1862 = vadd.f32 %v1802, %v1861
        %v1863 = vpop.f32.mrf.mxu0
        %v1864 = vadd.f32 %v1802, %v1863
        %1865 = vdwg.mxu0
        %v1866 = vadd.f32 %v996, %v1862
        %v1867 = vadd.f32 %v997, %v1864
        %v1868 = vld [vmem:[%s845] sm:$0x1]
        %v1869 = vld [vmem:[%s854] sm:$0x1]
        %1870 = vadd.xlane.f32.xlu0 %v1866
        %v1871 = vpop.xlane.xlu0 %1870
        %1872 = vadd.xlane.f32.xlu0 %v1867
        %v1873 = vpop.xlane.xlu0 %1872
        %v1874 = vmul.f32 %v1871, %v1010
        %v1875 = vmul.f32 %v1873, %v1010
        %v1876 = vsub.f32 %v1866, %v1874
        %v1877 = vsub.f32 %v1867, %v1875
        %v1878 = vmul.f32 %v1876, %v1876
        %v1879 = vmul.f32 %v1877, %v1877
        %1880 = vadd.xlane.f32.xlu0 %v1878
        %v1881 = vpop.xlane.xlu0 %1880
        %1882 = vadd.xlane.f32.xlu0 %v1879
        %v1883 = vpop.xlane.xlu0 %1882
        %v1884 = vmul.f32 %v1881, %v1010
        %v1885 = vmul.f32 %v1883, %v1010
        %v1886 = vadd.f32 %v1884, 1e-05
        %v1887 = vadd.f32 %v1885, 1e-05
        %v1888 = vrsqrt.pop %v1886
        %v1889 = vmul.f32 %v1888, %v1886
        %v1890 = vmul.f32 %v1889, %v1888
        %v1891 = vmul.f32 0.5, %v1890
        %v1892 = vsub.f32 1.5, %v1891
        %v1893 = vmul.f32 %v1888, %v1892
        %vm1894 = vweird.f32 %v1886
        %vm1895 = vweird.f32 %v1888
        %vm1896 = vmor %vm1894, %vm1895
        %v1897 = vsel %vm1896, %v1888, %v1893
        %v1898 = vrsqrt.pop %v1887
        %v1899 = vmul.f32 %v1898, %v1887
        %v1900 = vmul.f32 %v1899, %v1898
        %v1901 = vmul.f32 0.5, %v1900
        %v1902 = vsub.f32 1.5, %v1901
        %v1903 = vmul.f32 %v1898, %v1902
        %vm1904 = vweird.f32 %v1887
        %vm1905 = vweird.f32 %v1898
        %vm1906 = vmor %vm1904, %vm1905
        %v1907 = vsel %vm1906, %v1898, %v1903
        %v1908 = vmul.f32 %v1876, %v1897
        %v1909 = vmul.f32 %v1877, %v1907
        %v1911 = vperm.slane %v1868, 0
        %v1913 = vmul.f32 %v1908, %v1911
        %v1914 = vmul.f32 %v1909, %v1911
        %v1916 = vperm.slane %v1869, 0
        %v1918 = vadd.f32 %v1913, %v1916
        %v1919 = vadd.f32 %v1914, %v1916
        %v1920 = vpack.c.bf16 %v1919, %v1918
        %v1921 = vld [vmem:[%s864] sm:$0xff]
        %v1922 = vld [vmem:[%s864 + $0x8] sm:$0xff]
        %v1923 = vld [vmem:[%s864 + $0x10] sm:$0xff]
        %v1924 = vld [vmem:[%s864 + $0x18] sm:$0xff]
        %v1925 = vld [vmem:[%s864 + $0x20] sm:$0xff]
        %v1926 = vld [vmem:[%s864 + $0x28] sm:$0xff]
        %v1927 = vld [vmem:[%s864 + $0x30] sm:$0xff]
        %v1928 = vld [vmem:[%s864 + $0x38] sm:$0xff]
        %v1929 = vld [vmem:[%s864 + $0x40] sm:$0xff]
        %v1930 = vld [vmem:[%s864 + $0x48] sm:$0xff]
        %v1931 = vld [vmem:[%s864 + $0x50] sm:$0xff]
        %v1932 = vld [vmem:[%s864 + $0x58] sm:$0xff]
        %v1933 = vld [vmem:[%s864 + $0x60] sm:$0xff]
        %v1934 = vld [vmem:[%s864 + $0x68] sm:$0xff]
        %v1935 = vld [vmem:[%s864 + $0x70] sm:$0xff]
        %v1936 = vld [vmem:[%s864 + $0x78] sm:$0xff]
        %v1937 = vld [vmem:[%s864 + $0x80] sm:$0xff]
        %v1938 = vld [vmem:[%s864 + $0x88] sm:$0xff]
        %v1939 = vld [vmem:[%s864 + $0x90] sm:$0xff]
        %v1940 = vld [vmem:[%s864 + $0x98] sm:$0xff]
        %v1941 = vld [vmem:[%s864 + $0xa0] sm:$0xff]
        %v1942 = vld [vmem:[%s864 + $0xa8] sm:$0xff]
        %v1943 = vld [vmem:[%s864 + $0xb0] sm:$0xff]
        %v1944 = vld [vmem:[%s864 + $0xb8] sm:$0xff]
        %v1945 = vld [vmem:[%s864 + $0xc0] sm:$0xff]
        %v1946 = vld [vmem:[%s864 + $0xc8] sm:$0xff]
        %v1947 = vld [vmem:[%s864 + $0xd0] sm:$0xff]
        %v1948 = vld [vmem:[%s864 + $0xd8] sm:$0xff]
        %v1949 = vld [vmem:[%s864 + $0xe0] sm:$0xff]
        %v1950 = vld [vmem:[%s864 + $0xe8] sm:$0xff]
        %v1951 = vld [vmem:[%s864 + $0xf0] sm:$0xff]
        %v1952 = vld [vmem:[%s864 + $0xf8] sm:$0xff]
        %v1953 = vld [vmem:[%s981] sm:$0xf]
        %v1955 = vperm.slane %v1953, 0
        %v1956 = vperm.slane %v1953, 1
        %v1957 = vperm.slane %v1953, 2
        %v1958 = vperm.slane %v1953, 3
        %v1995 = vunpack.c.l.b16 %v1921
        %v1996 = vunpack.c.h.b16 %v1921
        %v1997 = vunpack.c.l.b16 %v1922
        %v1998 = vunpack.c.h.b16 %v1922
        %v1999 = vunpack.c.l.b16 %v1923
        %v2000 = vunpack.c.h.b16 %v1923
        %v2001 = vunpack.c.l.b16 %v1924
        %v2002 = vunpack.c.h.b16 %v1924
        %v2003 = vunpack.c.l.b16 %v1925
        %v2004 = vunpack.c.h.b16 %v1925
        %v2005 = vunpack.c.l.b16 %v1926
        %v2006 = vunpack.c.h.b16 %v1926
        %v2007 = vunpack.c.l.b16 %v1927
        %v2008 = vunpack.c.h.b16 %v1927
        %v2009 = vunpack.c.l.b16 %v1928
        %v2010 = vunpack.c.h.b16 %v1928
        %v2011 = vunpack.c.l.b16 %v1929
        %v2012 = vunpack.c.h.b16 %v1929
        %v2013 = vunpack.c.l.b16 %v1930
        %v2014 = vunpack.c.h.b16 %v1930
        %v2015 = vunpack.c.l.b16 %v1931
        %v2016 = vunpack.c.h.b16 %v1931
        %v2017 = vunpack.c.l.b16 %v1932
        %v2018 = vunpack.c.h.b16 %v1932
        %v2019 = vunpack.c.l.b16 %v1933
        %v2020 = vunpack.c.h.b16 %v1933
        %v2021 = vunpack.c.l.b16 %v1934
        %v2022 = vunpack.c.h.b16 %v1934
        %v2023 = vunpack.c.l.b16 %v1935
        %v2024 = vunpack.c.h.b16 %v1935
        %v2025 = vunpack.c.l.b16 %v1936
        %v2026 = vunpack.c.h.b16 %v1936
        %v2027 = vunpack.c.l.b16 %v1937
        %v2028 = vunpack.c.h.b16 %v1937
        %v2029 = vunpack.c.l.b16 %v1938
        %v2030 = vunpack.c.h.b16 %v1938
        %v2031 = vunpack.c.l.b16 %v1939
        %v2032 = vunpack.c.h.b16 %v1939
        %v2033 = vunpack.c.l.b16 %v1940
        %v2034 = vunpack.c.h.b16 %v1940
        %v2035 = vunpack.c.l.b16 %v1941
        %v2036 = vunpack.c.h.b16 %v1941
        %v2037 = vunpack.c.l.b16 %v1942
        %v2038 = vunpack.c.h.b16 %v1942
        %v2039 = vunpack.c.l.b16 %v1943
        %v2040 = vunpack.c.h.b16 %v1943
        %v2041 = vunpack.c.l.b16 %v1944
        %v2042 = vunpack.c.h.b16 %v1944
        %v2043 = vunpack.c.l.b16 %v1945
        %v2044 = vunpack.c.h.b16 %v1945
        %v2045 = vunpack.c.l.b16 %v1946
        %v2046 = vunpack.c.h.b16 %v1946
        %v2047 = vunpack.c.l.b16 %v1947
        %v2048 = vunpack.c.h.b16 %v1947
        %v2049 = vunpack.c.l.b16 %v1948
        %v2050 = vunpack.c.h.b16 %v1948
        %v2051 = vunpack.c.l.b16 %v1949
        %v2052 = vunpack.c.h.b16 %v1949
        %v2053 = vunpack.c.l.b16 %v1950
        %v2054 = vunpack.c.h.b16 %v1950
        %v2055 = vunpack.c.l.b16 %v1951
        %v2056 = vunpack.c.h.b16 %v1951
        %v2057 = vunpack.c.l.b16 %v1952
        %v2058 = vunpack.c.h.b16 %v1952
        %v2059 = vpack.c.b16 %v1999, %v1995
        %v2060 = vpack.c.b16 %v2000, %v1996
        %v2061 = vpack.c.b16 %v2001, %v1997
        %v2062 = vpack.c.b16 %v2002, %v1998
        %v2063 = vpack.c.b16 %v2007, %v2003
        %v2064 = vpack.c.b16 %v2008, %v2004
        %v2065 = vpack.c.b16 %v2009, %v2005
        %v2066 = vpack.c.b16 %v2010, %v2006
        %v2067 = vpack.c.b16 %v2015, %v2011
        %v2068 = vpack.c.b16 %v2016, %v2012
        %v2069 = vpack.c.b16 %v2017, %v2013
        %v2070 = vpack.c.b16 %v2018, %v2014
        %v2071 = vpack.c.b16 %v2023, %v2019
        %v2072 = vpack.c.b16 %v2024, %v2020
        %v2073 = vpack.c.b16 %v2025, %v2021
        %v2074 = vpack.c.b16 %v2026, %v2022
        %v2075 = vpack.c.b16 %v2031, %v2027
        %v2076 = vpack.c.b16 %v2032, %v2028
        %v2077 = vpack.c.b16 %v2033, %v2029
        %v2078 = vpack.c.b16 %v2034, %v2030
        %v2079 = vpack.c.b16 %v2039, %v2035
        %v2080 = vpack.c.b16 %v2040, %v2036
        %v2081 = vpack.c.b16 %v2041, %v2037
        %v2082 = vpack.c.b16 %v2042, %v2038
        %v2083 = vpack.c.b16 %v2047, %v2043
        %v2084 = vpack.c.b16 %v2048, %v2044
        %v2085 = vpack.c.b16 %v2049, %v2045
        %v2086 = vpack.c.b16 %v2050, %v2046
        %v2087 = vpack.c.b16 %v2055, %v2051
        %v2088 = vpack.c.b16 %v2056, %v2052
        %v2089 = vpack.c.b16 %v2057, %v2053
        %v2090 = vpack.c.b16 %v2058, %v2054
        %2123 = vmatpush.bf16.msra.mxu0 %v2087
        %2124 = vmatpush.bf16.msra.mxu0 %v2083
        %2125 = vmatpush.bf16.msra.mxu0 %v2079
        %2126 = vmatpush.bf16.msra.mxu0 %v2075
        %2127 = vmatpush.bf16.msra.mxu0 %v2071
        %2128 = vmatpush.bf16.msra.mxu0 %v2067
        %2129 = vmatpush.bf16.msra.mxu0 %v2063
        %2130 = vmatpush.bf16.msra.mxu0 %v2059
        %2131 = vmatmul.bf16.gmra.mxu0 %v1920
        %v2132 = vpop.f32.mrf.mxu0
        %v2133 = vadd.f32 %v1955, %v2132
        %v2134 = vpop.f32.mrf.mxu0
        %v2135 = vadd.f32 %v1955, %v2134
        %2136 = vdwg.mxu0
        %2137 = vmatpush.bf16.msra.mxu0 %v2088
        %2138 = vmatpush.bf16.msra.mxu0 %v2084
        %2139 = vmatpush.bf16.msra.mxu0 %v2080
        %2140 = vmatpush.bf16.msra.mxu0 %v2076
        %2141 = vmatpush.bf16.msra.mxu0 %v2072
        %2142 = vmatpush.bf16.msra.mxu0 %v2068
        %2143 = vmatpush.bf16.msra.mxu0 %v2064
        %2144 = vmatpush.bf16.msra.mxu0 %v2060
        %2145 = vmatmul.bf16.gmra.mxu0 %v1920
        %v2146 = vpop.f32.mrf.mxu0
        %v2147 = vadd.f32 %v1956, %v2146
        %v2148 = vpop.f32.mrf.mxu0
        %v2149 = vadd.f32 %v1956, %v2148
        %2150 = vdwg.mxu0
        %2151 = vmatpush.bf16.msra.mxu0 %v2089
        %2152 = vmatpush.bf16.msra.mxu0 %v2085
        %2153 = vmatpush.bf16.msra.mxu0 %v2081
        %2154 = vmatpush.bf16.msra.mxu0 %v2077
        %2155 = vmatpush.bf16.msra.mxu0 %v2073
        %2156 = vmatpush.bf16.msra.mxu0 %v2069
        %2157 = vmatpush.bf16.msra.mxu0 %v2065
        %2158 = vmatpush.bf16.msra.mxu0 %v2061
        %2159 = vmatmul.bf16.gmra.mxu0 %v1920
        %v2160 = vpop.f32.mrf.mxu0
        %v2161 = vadd.f32 %v1957, %v2160
        %v2162 = vpop.f32.mrf.mxu0
        %v2163 = vadd.f32 %v1957, %v2162
        %2164 = vdwg.mxu0
        %2165 = vmatpush.bf16.msra.mxu0 %v2090
        %2166 = vmatpush.bf16.msra.mxu0 %v2086
        %2167 = vmatpush.bf16.msra.mxu0 %v2082
        %2168 = vmatpush.bf16.msra.mxu0 %v2078
        %2169 = vmatpush.bf16.msra.mxu0 %v2074
        %2170 = vmatpush.bf16.msra.mxu0 %v2070
        %2171 = vmatpush.bf16.msra.mxu0 %v2066
        %2172 = vmatpush.bf16.msra.mxu0 %v2062
        %2173 = vmatmul.bf16.gmra.mxu0 %v1920
        %v2174 = vpop.f32.mrf.mxu0
        %v2175 = vadd.f32 %v1958, %v2174
        %v2176 = vpop.f32.mrf.mxu0
        %v2177 = vadd.f32 %v1958, %v2176
        %2178 = vdwg.mxu0
        %v2179 = vmul.f32 %v2133, 1.702
        %v2180 = vmul.f32 %v2147, 1.702
        %v2181 = vmul.f32 %v2161, 1.702
        %v2182 = vmul.f32 %v2175, 1.702
        %v2183 = vmul.f32 %v2135, 1.702
        %v2184 = vmul.f32 %v2149, 1.702
        %v2185 = vmul.f32 %v2163, 1.702
        %v2186 = vmul.f32 %v2177, 1.702
        %v2187 = vxor.u32 %v2179, 2147483648
        %v2188 = vxor.u32 %v2180, 2147483648
        %v2189 = vxor.u32 %v2181, 2147483648
        %v2190 = vxor.u32 %v2182, 2147483648
        %v2191 = vxor.u32 %v2183, 2147483648
        %v2192 = vxor.u32 %v2184, 2147483648
        %v2193 = vxor.u32 %v2185, 2147483648
        %v2194 = vxor.u32 %v2186, 2147483648
        %v2195 = vmul.f32 %v2187, 1.442695
        %v2196 = vpow.pop %v2195
        %v2197 = vmul.f32 %v2188, 1.442695
        %v2198 = vpow.pop %v2197
        %v2199 = vmul.f32 %v2189, 1.442695
        %v2200 = vpow.pop %v2199
        %v2201 = vmul.f32 %v2190, 1.442695
        %v2202 = vpow.pop %v2201
        %v2203 = vmul.f32 %v2191, 1.442695
        %v2204 = vpow.pop %v2203
        %v2205 = vmul.f32 %v2192, 1.442695
        %v2206 = vpow.pop %v2205
        %v2207 = vmul.f32 %v2193, 1.442695
        %v2208 = vpow.pop %v2207
        %v2209 = vmul.f32 %v2194, 1.442695
        %v2210 = vpow.pop %v2209
        %v2211 = vadd.f32 %v2196, 1.0
        %v2212 = vadd.f32 %v2198, 1.0
        %v2213 = vadd.f32 %v2200, 1.0
        %v2214 = vadd.f32 %v2202, 1.0
        %v2215 = vadd.f32 %v2204, 1.0
        %v2216 = vadd.f32 %v2206, 1.0
        %v2217 = vadd.f32 %v2208, 1.0
        %v2218 = vadd.f32 %v2210, 1.0
        %v2219 = vrcp.pop %v2211
        %v2220 = vmul.f32 %v2211, %v2219
        %v2221 = vsub.f32 1.0, %v2220
        %v2222 = vmul.f32 %v2219, %v2221
        %v2223 = vadd.f32 %v2219, %v2222
        %vm2224 = vweird.f32 %v2211
        %vm2225 = vweird.f32 %v2219
        %vm2226 = vmor %vm2224, %vm2225
        %v2227 = vsel %vm2226, %v2219, %v2223
        %v2228 = vand.u32 2147483647, %v2211
        %vm2229 = vcmp.eq.f32.partialorder %v2228, 8.507059e+37
        %v2230 = vand.u32 %v2211, 2147483648
        %v2231 = vor.u32 1.1754944e-38, %v2230
        %v2232 = vsel %vm2229, %v2231, %v2227
        %v2233 = vmul.f32 1.0, %v2232
        %v2234 = vrcp.pop %v2212
        %v2235 = vmul.f32 %v2212, %v2234
        %v2236 = vsub.f32 1.0, %v2235
        %v2237 = vmul.f32 %v2234, %v2236
        %v2238 = vadd.f32 %v2234, %v2237
        %vm2239 = vweird.f32 %v2212
        %vm2240 = vweird.f32 %v2234
        %vm2241 = vmor %vm2239, %vm2240
        %v2242 = vsel %vm2241, %v2234, %v2238
        %v2243 = vand.u32 2147483647, %v2212
        %vm2244 = vcmp.eq.f32.partialorder %v2243, 8.507059e+37
        %v2245 = vand.u32 %v2212, 2147483648
        %v2246 = vor.u32 1.1754944e-38, %v2245
        %v2247 = vsel %vm2244, %v2246, %v2242
        %v2248 = vmul.f32 1.0, %v2247
        %v2249 = vrcp.pop %v2213
        %v2250 = vmul.f32 %v2213, %v2249
        %v2251 = vsub.f32 1.0, %v2250
        %v2252 = vmul.f32 %v2249, %v2251
        %v2253 = vadd.f32 %v2249, %v2252
        %vm2254 = vweird.f32 %v2213
        %vm2255 = vweird.f32 %v2249
        %vm2256 = vmor %vm2254, %vm2255
        %v2257 = vsel %vm2256, %v2249, %v2253
        %v2258 = vand.u32 2147483647, %v2213
        %vm2259 = vcmp.eq.f32.partialorder %v2258, 8.507059e+37
        %v2260 = vand.u32 %v2213, 2147483648
        %v2261 = vor.u32 1.1754944e-38, %v2260
        %v2262 = vsel %vm2259, %v2261, %v2257
        %v2263 = vmul.f32 1.0, %v2262
        %v2264 = vrcp.pop %v2214
        %v2265 = vmul.f32 %v2214, %v2264
        %v2266 = vsub.f32 1.0, %v2265
        %v2267 = vmul.f32 %v2264, %v2266
        %v2268 = vadd.f32 %v2264, %v2267
        %vm2269 = vweird.f32 %v2214
        %vm2270 = vweird.f32 %v2264
        %vm2271 = vmor %vm2269, %vm2270
        %v2272 = vsel %vm2271, %v2264, %v2268
        %v2273 = vand.u32 2147483647, %v2214
        %vm2274 = vcmp.eq.f32.partialorder %v2273, 8.507059e+37
        %v2275 = vand.u32 %v2214, 2147483648
        %v2276 = vor.u32 1.1754944e-38, %v2275
        %v2277 = vsel %vm2274, %v2276, %v2272
        %v2278 = vmul.f32 1.0, %v2277
        %v2279 = vrcp.pop %v2215
        %v2280 = vmul.f32 %v2215, %v2279
        %v2281 = vsub.f32 1.0, %v2280
        %v2282 = vmul.f32 %v2279, %v2281
        %v2283 = vadd.f32 %v2279, %v2282
        %vm2284 = vweird.f32 %v2215
        %vm2285 = vweird.f32 %v2279
        %vm2286 = vmor %vm2284, %vm2285
        %v2287 = vsel %vm2286, %v2279, %v2283
        %v2288 = vand.u32 2147483647, %v2215
        %vm2289 = vcmp.eq.f32.partialorder %v2288, 8.507059e+37
        %v2290 = vand.u32 %v2215, 2147483648
        %v2291 = vor.u32 1.1754944e-38, %v2290
        %v2292 = vsel %vm2289, %v2291, %v2287
        %v2293 = vmul.f32 1.0, %v2292
        %v2294 = vrcp.pop %v2216
        %v2295 = vmul.f32 %v2216, %v2294
        %v2296 = vsub.f32 1.0, %v2295
        %v2297 = vmul.f32 %v2294, %v2296
        %v2298 = vadd.f32 %v2294, %v2297
        %vm2299 = vweird.f32 %v2216
        %vm2300 = vweird.f32 %v2294
        %vm2301 = vmor %vm2299, %vm2300
        %v2302 = vsel %vm2301, %v2294, %v2298
        %v2303 = vand.u32 2147483647, %v2216
        %vm2304 = vcmp.eq.f32.partialorder %v2303, 8.507059e+37
        %v2305 = vand.u32 %v2216, 2147483648
        %v2306 = vor.u32 1.1754944e-38, %v2305
        %v2307 = vsel %vm2304, %v2306, %v2302
        %v2308 = vmul.f32 1.0, %v2307
        %v2309 = vrcp.pop %v2217
        %v2310 = vmul.f32 %v2217, %v2309
        %v2311 = vsub.f32 1.0, %v2310
        %v2312 = vmul.f32 %v2309, %v2311
        %v2313 = vadd.f32 %v2309, %v2312
        %vm2314 = vweird.f32 %v2217
        %vm2315 = vweird.f32 %v2309
        %vm2316 = vmor %vm2314, %vm2315
        %v2317 = vsel %vm2316, %v2309, %v2313
        %v2318 = vand.u32 2147483647, %v2217
        %vm2319 = vcmp.eq.f32.partialorder %v2318, 8.507059e+37
        %v2320 = vand.u32 %v2217, 2147483648
        %v2321 = vor.u32 1.1754944e-38, %v2320
        %v2322 = vsel %vm2319, %v2321, %v2317
        %v2323 = vmul.f32 1.0, %v2322
        %v2324 = vrcp.pop %v2218
        %v2325 = vmul.f32 %v2218, %v2324
        %v2326 = vsub.f32 1.0, %v2325
        %v2327 = vmul.f32 %v2324, %v2326
        %v2328 = vadd.f32 %v2324, %v2327
        %vm2329 = vweird.f32 %v2218
        %vm2330 = vweird.f32 %v2324
        %vm2331 = vmor %vm2329, %vm2330
        %v2332 = vsel %vm2331, %v2324, %v2328
        %v2333 = vand.u32 2147483647, %v2218
        %vm2334 = vcmp.eq.f32.partialorder %v2333, 8.507059e+37
        %v2335 = vand.u32 %v2218, 2147483648
        %v2336 = vor.u32 1.1754944e-38, %v2335
        %v2337 = vsel %vm2334, %v2336, %v2332
        %v2338 = vmul.f32 1.0, %v2337
        %v2339 = vmul.f32 %v2133, %v2233
        %v2340 = vmul.f32 %v2147, %v2248
        %v2341 = vmul.f32 %v2161, %v2263
        %v2342 = vmul.f32 %v2175, %v2278
        %v2343 = vmul.f32 %v2135, %v2293
        %v2344 = vmul.f32 %v2149, %v2308
        %v2345 = vmul.f32 %v2163, %v2323
        %v2346 = vmul.f32 %v2177, %v2338
        %v2347 = vpack.c.bf16 %v2343, %v2339
        %v2348 = vpack.c.bf16 %v2344, %v2340
        %v2349 = vpack.c.bf16 %v2345, %v2341
        %v2350 = vpack.c.bf16 %v2346, %v2342
        %v2351 = vld [vmem:[%s874] sm:$0xf]
        %v2352 = vld [vmem:[%s874 + $0x4] sm:$0xf]
        %v2353 = vld [vmem:[%s874 + $0x8] sm:$0xf]
        %v2354 = vld [vmem:[%s874 + $0xc] sm:$0xf]
        %v2355 = vld [vmem:[%s874 + $0x10] sm:$0xf]
        %v2356 = vld [vmem:[%s874 + $0x14] sm:$0xf]
        %v2357 = vld [vmem:[%s874 + $0x18] sm:$0xf]
        %v2358 = vld [vmem:[%s874 + $0x1c] sm:$0xf]
        %v2359 = vld [vmem:[%s874 + $0x20] sm:$0xf]
        %v2360 = vld [vmem:[%s874 + $0x24] sm:$0xf]
        %v2361 = vld [vmem:[%s874 + $0x28] sm:$0xf]
        %v2362 = vld [vmem:[%s874 + $0x2c] sm:$0xf]
        %v2363 = vld [vmem:[%s874 + $0x30] sm:$0xf]
        %v2364 = vld [vmem:[%s874 + $0x34] sm:$0xf]
        %v2365 = vld [vmem:[%s874 + $0x38] sm:$0xf]
        %v2366 = vld [vmem:[%s874 + $0x3c] sm:$0xf]
        %v2367 = vld [vmem:[%s874 + $0x40] sm:$0xf]
        %v2368 = vld [vmem:[%s874 + $0x44] sm:$0xf]
        %v2369 = vld [vmem:[%s874 + $0x48] sm:$0xf]
        %v2370 = vld [vmem:[%s874 + $0x4c] sm:$0xf]
        %v2371 = vld [vmem:[%s874 + $0x50] sm:$0xf]
        %v2372 = vld [vmem:[%s874 + $0x54] sm:$0xf]
        %v2373 = vld [vmem:[%s874 + $0x58] sm:$0xf]
        %v2374 = vld [vmem:[%s874 + $0x5c] sm:$0xf]
        %v2375 = vld [vmem:[%s874 + $0x60] sm:$0xf]
        %v2376 = vld [vmem:[%s874 + $0x64] sm:$0xf]
        %v2377 = vld [vmem:[%s874 + $0x68] sm:$0xf]
        %v2378 = vld [vmem:[%s874 + $0x6c] sm:$0xf]
        %v2379 = vld [vmem:[%s874 + $0x70] sm:$0xf]
        %v2380 = vld [vmem:[%s874 + $0x74] sm:$0xf]
        %v2381 = vld [vmem:[%s874 + $0x78] sm:$0xf]
        %v2382 = vld [vmem:[%s874 + $0x7c] sm:$0xf]
        %v2383 = vld [vmem:[%s874 + $0x80] sm:$0xf]
        %v2384 = vld [vmem:[%s874 + $0x84] sm:$0xf]
        %v2385 = vld [vmem:[%s874 + $0x88] sm:$0xf]
        %v2386 = vld [vmem:[%s874 + $0x8c] sm:$0xf]
        %v2387 = vld [vmem:[%s874 + $0x90] sm:$0xf]
        %v2388 = vld [vmem:[%s874 + $0x94] sm:$0xf]
        %v2389 = vld [vmem:[%s874 + $0x98] sm:$0xf]
        %v2390 = vld [vmem:[%s874 + $0x9c] sm:$0xf]
        %v2391 = vld [vmem:[%s874 + $0xa0] sm:$0xf]
        %v2392 = vld [vmem:[%s874 + $0xa4] sm:$0xf]
        %v2393 = vld [vmem:[%s874 + $0xa8] sm:$0xf]
        %v2394 = vld [vmem:[%s874 + $0xac] sm:$0xf]
        %v2395 = vld [vmem:[%s874 + $0xb0] sm:$0xf]
        %v2396 = vld [vmem:[%s874 + $0xb4] sm:$0xf]
        %v2397 = vld [vmem:[%s874 + $0xb8] sm:$0xf]
        %v2398 = vld [vmem:[%s874 + $0xbc] sm:$0xf]
        %v2399 = vld [vmem:[%s874 + $0xc0] sm:$0xf]
        %v2400 = vld [vmem:[%s874 + $0xc4] sm:$0xf]
        %v2401 = vld [vmem:[%s874 + $0xc8] sm:$0xf]
        %v2402 = vld [vmem:[%s874 + $0xcc] sm:$0xf]
        %v2403 = vld [vmem:[%s874 + $0xd0] sm:$0xf]
        %v2404 = vld [vmem:[%s874 + $0xd4] sm:$0xf]
        %v2405 = vld [vmem:[%s874 + $0xd8] sm:$0xf]
        %v2406 = vld [vmem:[%s874 + $0xdc] sm:$0xf]
        %v2407 = vld [vmem:[%s874 + $0xe0] sm:$0xf]
        %v2408 = vld [vmem:[%s874 + $0xe4] sm:$0xf]
        %v2409 = vld [vmem:[%s874 + $0xe8] sm:$0xf]
        %v2410 = vld [vmem:[%s874 + $0xec] sm:$0xf]
        %v2411 = vld [vmem:[%s874 + $0xf0] sm:$0xf]
        %v2412 = vld [vmem:[%s874 + $0xf4] sm:$0xf]
        %v2413 = vld [vmem:[%s874 + $0xf8] sm:$0xf]
        %v2414 = vld [vmem:[%s874 + $0xfc] sm:$0xf]
        %v2415 = vld [vmem:[%s984] sm:$0x1]
        %v2417 = vperm.slane %v2415, 0
        %v2483 = vunpack.c.l.b16 %v2351
        %v2484 = vunpack.c.l.b16 %v2352
        %v2485 = vunpack.c.l.b16 %v2353
        %v2486 = vunpack.c.l.b16 %v2354
        %v2487 = vunpack.c.l.b16 %v2355
        %v2488 = vunpack.c.l.b16 %v2356
        %v2489 = vunpack.c.l.b16 %v2357
        %v2490 = vunpack.c.l.b16 %v2358
        %v2491 = vunpack.c.l.b16 %v2359
        %v2492 = vunpack.c.l.b16 %v2360
        %v2493 = vunpack.c.l.b16 %v2361
        %v2494 = vunpack.c.l.b16 %v2362
        %v2495 = vunpack.c.l.b16 %v2363
        %v2496 = vunpack.c.l.b16 %v2364
        %v2497 = vunpack.c.l.b16 %v2365
        %v2498 = vunpack.c.l.b16 %v2366
        %v2499 = vunpack.c.l.b16 %v2367
        %v2500 = vunpack.c.l.b16 %v2368
        %v2501 = vunpack.c.l.b16 %v2369
        %v2502 = vunpack.c.l.b16 %v2370
        %v2503 = vunpack.c.l.b16 %v2371
        %v2504 = vunpack.c.l.b16 %v2372
        %v2505 = vunpack.c.l.b16 %v2373
        %v2506 = vunpack.c.l.b16 %v2374
        %v2507 = vunpack.c.l.b16 %v2375
        %v2508 = vunpack.c.l.b16 %v2376
        %v2509 = vunpack.c.l.b16 %v2377
        %v2510 = vunpack.c.l.b16 %v2378
        %v2511 = vunpack.c.l.b16 %v2379
        %v2512 = vunpack.c.l.b16 %v2380
        %v2513 = vunpack.c.l.b16 %v2381
        %v2514 = vunpack.c.l.b16 %v2382
        %v2515 = vunpack.c.l.b16 %v2383
        %v2516 = vunpack.c.l.b16 %v2384
        %v2517 = vunpack.c.l.b16 %v2385
        %v2518 = vunpack.c.l.b16 %v2386
        %v2519 = vunpack.c.l.b16 %v2387
        %v2520 = vunpack.c.l.b16 %v2388
        %v2521 = vunpack.c.l.b16 %v2389
        %v2522 = vunpack.c.l.b16 %v2390
        %v2523 = vunpack.c.l.b16 %v2391
        %v2524 = vunpack.c.l.b16 %v2392
        %v2525 = vunpack.c.l.b16 %v2393
        %v2526 = vunpack.c.l.b16 %v2394
        %v2527 = vunpack.c.l.b16 %v2395
        %v2528 = vunpack.c.l.b16 %v2396
        %v2529 = vunpack.c.l.b16 %v2397
        %v2530 = vunpack.c.l.b16 %v2398
        %v2531 = vunpack.c.l.b16 %v2399
        %v2532 = vunpack.c.l.b16 %v2400
        %v2533 = vunpack.c.l.b16 %v2401
        %v2534 = vunpack.c.l.b16 %v2402
        %v2535 = vunpack.c.l.b16 %v2403
        %v2536 = vunpack.c.l.b16 %v2404
        %v2537 = vunpack.c.l.b16 %v2405
        %v2538 = vunpack.c.l.b16 %v2406
        %v2539 = vunpack.c.l.b16 %v2407
        %v2540 = vunpack.c.l.b16 %v2408
        %v2541 = vunpack.c.l.b16 %v2409
        %v2542 = vunpack.c.l.b16 %v2410
        %v2543 = vunpack.c.l.b16 %v2411
        %v2544 = vunpack.c.l.b16 %v2412
        %v2545 = vunpack.c.l.b16 %v2413
        %v2546 = vunpack.c.l.b16 %v2414
        %v2547 = vpack.c.b16 %v2484, %v2483
        %v2548 = vpack.c.b16 %v2486, %v2485
        %v2549 = vpack.c.b16 %v2488, %v2487
        %v2550 = vpack.c.b16 %v2490, %v2489
        %v2551 = vpack.c.b16 %v2492, %v2491
        %v2552 = vpack.c.b16 %v2494, %v2493
        %v2553 = vpack.c.b16 %v2496, %v2495
        %v2554 = vpack.c.b16 %v2498, %v2497
        %v2555 = vpack.c.b16 %v2500, %v2499
        %v2556 = vpack.c.b16 %v2502, %v2501
        %v2557 = vpack.c.b16 %v2504, %v2503
        %v2558 = vpack.c.b16 %v2506, %v2505
        %v2559 = vpack.c.b16 %v2508, %v2507
        %v2560 = vpack.c.b16 %v2510, %v2509
        %v2561 = vpack.c.b16 %v2512, %v2511
        %v2562 = vpack.c.b16 %v2514, %v2513
        %v2563 = vpack.c.b16 %v2516, %v2515
        %v2564 = vpack.c.b16 %v2518, %v2517
        %v2565 = vpack.c.b16 %v2520, %v2519
        %v2566 = vpack.c.b16 %v2522, %v2521
        %v2567 = vpack.c.b16 %v2524, %v2523
        %v2568 = vpack.c.b16 %v2526, %v2525
        %v2569 = vpack.c.b16 %v2528, %v2527
        %v2570 = vpack.c.b16 %v2530, %v2529
        %v2571 = vpack.c.b16 %v2532, %v2531
        %v2572 = vpack.c.b16 %v2534, %v2533
        %v2573 = vpack.c.b16 %v2536, %v2535
        %v2574 = vpack.c.b16 %v2538, %v2537
        %v2575 = vpack.c.b16 %v2540, %v2539
        %v2576 = vpack.c.b16 %v2542, %v2541
        %v2577 = vpack.c.b16 %v2544, %v2543
        %v2578 = vpack.c.b16 %v2546, %v2545
        %2611 = vmatpush.bf16.msra.mxu0 %v2554
        %2612 = vmatpush.bf16.msra.mxu0 %v2553
        %2613 = vmatpush.bf16.msra.mxu0 %v2552
        %2614 = vmatpush.bf16.msra.mxu0 %v2551
        %2615 = vmatpush.bf16.msra.mxu0 %v2550
        %2616 = vmatpush.bf16.msra.mxu0 %v2549
        %2617 = vmatpush.bf16.msra.mxu0 %v2548
        %2618 = vmatpush.bf16.msra.mxu0 %v2547
        %2619 = vmatmul.bf16.gmra.mxu0 %v2347
        %v2620 = vpop.f32.mrf.mxu0
        %v2621 = vadd.f32 %v2417, %v2620
        %v2622 = vpop.f32.mrf.mxu0
        %v2623 = vadd.f32 %v2417, %v2622
        %2624 = vdwg.mxu0
        %2625 = vmatpush.bf16.msra.mxu0 %v2562
        %2626 = vmatpush.bf16.msra.mxu0 %v2561
        %2627 = vmatpush.bf16.msra.mxu0 %v2560
        %2628 = vmatpush.bf16.msra.mxu0 %v2559
        %2629 = vmatpush.bf16.msra.mxu0 %v2558
        %2630 = vmatpush.bf16.msra.mxu0 %v2557
        %2631 = vmatpush.bf16.msra.mxu0 %v2556
        %2632 = vmatpush.bf16.msra.mxu0 %v2555
        %2633 = vmatmul.bf16.gmra.mxu0 %v2348
        %v2634 = vpop.f32.mrf.mxu0
        %v2635 = vadd.f32 %v2621, %v2634
        %v2636 = vpop.f32.mrf.mxu0
        %v2637 = vadd.f32 %v2623, %v2636
        %2638 = vdwg.mxu0
        %2639 = vmatpush.bf16.msra.mxu0 %v2570
        %2640 = vmatpush.bf16.msra.mxu0 %v2569
        %2641 = vmatpush.bf16.msra.mxu0 %v2568
        %2642 = vmatpush.bf16.msra.mxu0 %v2567
        %2643 = vmatpush.bf16.msra.mxu0 %v2566
        %2644 = vmatpush.bf16.msra.mxu0 %v2565
        %2645 = vmatpush.bf16.msra.mxu0 %v2564
        %2646 = vmatpush.bf16.msra.mxu0 %v2563
        %2647 = vmatmul.bf16.gmra.mxu0 %v2349
        %v2648 = vpop.f32.mrf.mxu0
        %v2649 = vadd.f32 %v2635, %v2648
        %v2650 = vpop.f32.mrf.mxu0
        %v2651 = vadd.f32 %v2637, %v2650
        %2652 = vdwg.mxu0
        %2653 = vmatpush.bf16.msra.mxu0 %v2578
        %2654 = vmatpush.bf16.msra.mxu0 %v2577
        %2655 = vmatpush.bf16.msra.mxu0 %v2576
        %2656 = vmatpush.bf16.msra.mxu0 %v2575
        %2657 = vmatpush.bf16.msra.mxu0 %v2574
        %2658 = vmatpush.bf16.msra.mxu0 %v2573
        %2659 = vmatpush.bf16.msra.mxu0 %v2572
        %2660 = vmatpush.bf16.msra.mxu0 %v2571
        %2661 = vmatmul.bf16.gmra.mxu0 %v2350
        %v2662 = vpop.f32.mrf.mxu0
        %v2663 = vadd.f32 %v2649, %v2662
        %v2664 = vpop.f32.mrf.mxu0
        %v2665 = vadd.f32 %v2651, %v2664
        %2666 = vdwg.mxu0
        %v2667 = vadd.f32 %v1866, %v2663
        %v2668 = vadd.f32 %v1867, %v2665
        %2669 = vst [vmem:[#allocation2] sm:$0xff] %v2667
        %2670 = vst [vmem:[#allocation2 + $0x8] sm:$0xff] %v2668
        %p2671 = scmp.eq.s32.totalorder %s39, 1
        // Predicated region
        $region141: #{tpu_custom_call.1} parent=87 // pred_check
          %p2672 = pneg %p2671
        $region142: #{tpu_custom_call.1} parent=87 // pred_check_branch
          %2674 = sbr.rel (%p2672) target = $region144
        $region143: #{tpu_custom_call.1} parent=87 // pred_region
          %v2675 = vld [vmem:[%s14] sm:$0x1]
          %v2676 = vld [vmem:[%s15] sm:$0x1]
          %2677 = vadd.xlane.f32.xlu0 %v2667
          %v2678 = vpop.xlane.xlu0 %2677
          %2679 = vadd.xlane.f32.xlu0 %v2668
          %v2680 = vpop.xlane.xlu0 %2679
          %v2681 = vmul.f32 %v2678, %v1010
          %v2682 = vmul.f32 %v2680, %v1010
          %v2683 = vsub.f32 %v2667, %v2681
          %v2684 = vsub.f32 %v2668, %v2682
          %v2685 = vmul.f32 %v2683, %v2683
          %v2686 = vmul.f32 %v2684, %v2684
          %2687 = vadd.xlane.f32.xlu0 %v2685
          %v2688 = vpop.xlane.xlu0 %2687
          %2689 = vadd.xlane.f32.xlu0 %v2686
          %v2690 = vpop.xlane.xlu0 %2689
          %v2691 = vmul.f32 %v2688, %v1010
          %v2692 = vmul.f32 %v2690, %v1010
          %v2693 = vadd.f32 %v2691, 1e-05
          %v2694 = vadd.f32 %v2692, 1e-05
          %v2695 = vrsqrt.pop %v2693
          %v2696 = vmul.f32 %v2695, %v2693
          %v2697 = vmul.f32 %v2696, %v2695
          %v2698 = vmul.f32 0.5, %v2697
          %v2699 = vsub.f32 1.5, %v2698
          %v2700 = vmul.f32 %v2695, %v2699
          %vm2701 = vweird.f32 %v2693
          %vm2702 = vweird.f32 %v2695
          %vm2703 = vmor %vm2701, %vm2702
          %v2704 = vsel %vm2703, %v2695, %v2700
          %v2705 = vrsqrt.pop %v2694
          %v2706 = vmul.f32 %v2705, %v2694
          %v2707 = vmul.f32 %v2706, %v2705
          %v2708 = vmul.f32 0.5, %v2707
          %v2709 = vsub.f32 1.5, %v2708
          %v2710 = vmul.f32 %v2705, %v2709
          %vm2711 = vweird.f32 %v2694
          %vm2712 = vweird.f32 %v2705
          %vm2713 = vmor %vm2711, %vm2712
          %v2714 = vsel %vm2713, %v2705, %v2710
          %v2715 = vmul.f32 %v2683, %v2704
          %v2716 = vmul.f32 %v2684, %v2714
          %v2718 = vperm.slane %v2675, 0
          %v2720 = vmul.f32 %v2715, %v2718
          %v2721 = vmul.f32 %v2716, %v2718
          %v2723 = vperm.slane %v2676, 0
          %v2725 = vadd.f32 %v2720, %v2723
          %v2726 = vadd.f32 %v2721, %v2723
          %2727 = vst [vmem:[#allocation18] sm:$0xff] %v2725
          %2728 = vst [vmem:[#allocation18 + $0x8] sm:$0xff] %v2726
          %v2729 = vpack.c.bf16 %v2726, %v2725
          %v2730 = vld [vmem:[#allocation17] sm:$0xf]
          %v2731 = vld [vmem:[#allocation17 + $0x4] sm:$0xf]
          %v2732 = vld [vmem:[#allocation17 + $0x8] sm:$0xf]
          %v2733 = vld [vmem:[#allocation17 + $0xc] sm:$0xf]
          %v2734 = vld [vmem:[#allocation17 + $0x10] sm:$0xf]
          %v2735 = vld [vmem:[#allocation17 + $0x14] sm:$0xf]
          %v2736 = vld [vmem:[#allocation17 + $0x18] sm:$0xf]
          %v2737 = vld [vmem:[#allocation17 + $0x1c] sm:$0xf]
          %v2738 = vld [vmem:[#allocation17 + $0x20] sm:$0xf]
          %v2739 = vld [vmem:[#allocation17 + $0x24] sm:$0xf]
          %v2740 = vld [vmem:[#allocation17 + $0x28] sm:$0xf]
          %v2741 = vld [vmem:[#allocation17 + $0x2c] sm:$0xf]
          %v2742 = vld [vmem:[#allocation17 + $0x30] sm:$0xf]
          %v2743 = vld [vmem:[#allocation17 + $0x34] sm:$0xf]
          %v2744 = vld [vmem:[#allocation17 + $0x38] sm:$0xf]
          %v2745 = vld [vmem:[#allocation17 + $0x3c] sm:$0xf]
          %v2762 = vunpack.c.l.b16 %v2730
          %v2763 = vunpack.c.l.b16 %v2731
          %v2764 = vunpack.c.l.b16 %v2732
          %v2765 = vunpack.c.l.b16 %v2733
          %v2766 = vunpack.c.l.b16 %v2734
          %v2767 = vunpack.c.l.b16 %v2735
          %v2768 = vunpack.c.l.b16 %v2736
          %v2769 = vunpack.c.l.b16 %v2737
          %v2770 = vunpack.c.l.b16 %v2738
          %v2771 = vunpack.c.l.b16 %v2739
          %v2772 = vunpack.c.l.b16 %v2740
          %v2773 = vunpack.c.l.b16 %v2741
          %v2774 = vunpack.c.l.b16 %v2742
          %v2775 = vunpack.c.l.b16 %v2743
          %v2776 = vunpack.c.l.b16 %v2744
          %v2777 = vunpack.c.l.b16 %v2745
          %v2778 = vpack.c.b16 %v2763, %v2762
          %v2779 = vpack.c.b16 %v2765, %v2764
          %v2780 = vpack.c.b16 %v2767, %v2766
          %v2781 = vpack.c.b16 %v2769, %v2768
          %v2782 = vpack.c.b16 %v2771, %v2770
          %v2783 = vpack.c.b16 %v2773, %v2772
          %v2784 = vpack.c.b16 %v2775, %v2774
          %v2785 = vpack.c.b16 %v2777, %v2776
          %2794 = vmatpush.bf16.msra.mxu0 %v2785
          %2795 = vmatpush.bf16.msra.mxu0 %v2784
          %2796 = vmatpush.bf16.msra.mxu0 %v2783
          %2797 = vmatpush.bf16.msra.mxu0 %v2782
          %2798 = vmatpush.bf16.msra.mxu0 %v2781
          %2799 = vmatpush.bf16.msra.mxu0 %v2780
          %2800 = vmatpush.bf16.msra.mxu0 %v2779
          %2801 = vmatpush.bf16.msra.mxu0 %v2778
          %2802 = vmatmul.bf16.gmra.mxu0 %v2729
          %v2803 = vpop.f32.mrf.mxu0
          %v2804 = vadd.f32 0.0, %v2803
          %v2805 = vpop.f32.mrf.mxu0
          %v2806 = vadd.f32 0.0, %v2805
          %2807 = vdwg.mxu0
          %2808 = vst [vmem:[#allocation19] sm:$0xff] %v2804
          %2809 = vst [vmem:[#allocation19 + $0x8] sm:$0xff] %v2806
        $region144: #{tpu_custom_call.1} parent=87 // pred_fallthru
          _
        // Predicated region
        $region145: #{tpu_custom_call.1} parent=87 // pred_check
          %p2810 = pneg %p486
        $region146: #{tpu_custom_call.1} parent=87 // pred_check_branch
          %2812 = sbr.rel (%p2810) target = $region148
        $region147: #{tpu_custom_call.1} parent=87 // pred_region
          %s2813 = smul.u32 2, %s38
          %2815 = vsyncadd [#allocation5], 0
          %s2816 = smul.addr %s2813, 8
          %s2817 = scalar_lea.hbm %s17, %s2816
          %s2818 = sshll.u32 [#allocation18], 4
          %s2819 = int_to_ptr.vmem [resolvable:$true] %s2818
          %s2820 = sshll.u32 %s2817, 4
          %s2821 = int_to_ptr.hbm [resolvable:$true] %s2820
          %2826 = dma.vmem_to_hbm [thread:$0]  %s2819, 256, %s2821, [#allocation5], 128, 128, 8
        $region148: #{tpu_custom_call.1} parent=87 // pred_fallthru
          _
        // Predicated region
        $region149: #{tpu_custom_call.1} parent=87 // pred_check
          %p2827 = pneg %p512
        $region150: #{tpu_custom_call.1} parent=87 // pred_check_branch
          %2829 = sbr.rel (%p2827) target = $region152
        $region151: #{tpu_custom_call.1} parent=87 // pred_region
          %s2830 = smul.u32 2, %s38
          %2832 = vsyncadd [#allocation20], 0
          %s2833 = smul.addr %s2830, 8
          %s2834 = scalar_lea.hbm %s18, %s2833
          %s2835 = sshll.u32 [#allocation19], 4
          %s2836 = int_to_ptr.vmem [resolvable:$true] %s2835
          %s2837 = sshll.u32 %s2834, 4
          %s2838 = int_to_ptr.hbm [resolvable:$true] %s2837
          %2843 = dma.vmem_to_hbm [thread:$0]  %s2836, 256, %s2838, [#allocation20], 128, 128, 8
        $region152: #{tpu_custom_call.1} parent=87 // pred_fallthru
          _
        // Predicated region
        $region153: #{tpu_custom_call.1} parent=87 // pred_check
          %p2844 = pneg %p486
        $region154: #{tpu_custom_call.1} parent=87 // pred_check_branch
          %2846 = sbr.rel (%p2844) target = $region156
        $region155: #{tpu_custom_call.1} parent=87 // pred_region
          %2848 = dma.done [#allocation5], 256
        $region156: #{tpu_custom_call.1} parent=87 // pred_fallthru
          _
        // Predicated region
        $region157: #{tpu_custom_call.1} parent=87 // pred_check
          %p2849 = pneg %p512
        $region158: #{tpu_custom_call.1} parent=87 // pred_check_branch
          %2851 = sbr.rel (%p2849) target = $region160
        $region159: #{tpu_custom_call.1} parent=87 // pred_region
          %2853 = dma.done [#allocation20], 256
        $region160: #{tpu_custom_call.1} parent=87 // pred_fallthru
          _
      $region88: #{tpu_custom_call.1} parent=5 // pred_fallthru
        _
      %p2854 = scmp.le.s32.totalorder 2, %s29
      // Predicated region
      $region161: #{tpu_custom_call.1} parent=5 // pred_check
        %p2855 = pneg %p2854
      $region162: #{tpu_custom_call.1} parent=5 // pred_check_branch
        %2857 = sbr.rel (%p2855) target = $region164
      $region163: #{tpu_custom_call.1} parent=5 // pred_region
        %s2858 = ssub.s32 %s29, 2
      $region164: #{tpu_custom_call.1} parent=5 // pred_fallthru
        _
    $region6: #{tpu_custom_call.1} parent=1 // loop_footer
      %s33 = sadd.s32 1, %s29
    $region7: #{tpu_custom_call.1} parent=1 // loop_footer_branch
      %28 = sbr.rel target = $region3
    $region8: #{tpu_custom_call.1} parent=1 // loop_exit
      _
    %2859 = vsyncpa [#allocation4], 1
    %s2860 = scalar_lea.sflag [#allocation4], 1
    %2861 = vsyncpa %s2860, 1
    %2862 = vsyncpa [#allocation7], 1
    %2863 = vsyncpa [#allocation5], 1
    %s2864 = scalar_lea.sflag [#allocation5], 1
    %2865 = vsyncpa %s2864, 1
    %2866 = vsyncpa [#allocation20], 1

</llo_original>
